<compile_context>
chip_gen: v7x
topology: tpu7x:2x2x1
jax: 0.10.0
libtpu: 0.0.40
codegen_flags: <defaults>
</compile_context>

<pallas_src>
import functools

import jax
import jax.numpy as jnp
from jax import lax
from jax.experimental import pallas as pl
from jax.experimental.pallas import tpu as pltpu

BN_EPS = 1e-5
LANE = 128


def _round_up(x, m):
    return (x + m - 1) // m * m


def _pick_tile_h(h, w, target_rows=1024):
    """Largest divisor of `h` whose row tile (tile_h * w rows of the matmul)
    stays near `target_rows` (amortizes per-step overhead, fits VMEM)."""
    best = 1
    for th in range(1, h + 1):
        if h % th == 0 and th * w <= max(target_rows, w):
            best = th
    return best


def _compiler_params(est_bytes):
    # Request enough scoped VMEM for the double-buffered tiles, with headroom,
    # but cap safely below v7x's 64 MiB physical VMEM (v5e/v6e have 128 MiB).
    limit = int(min(48 * 2**20, max(16 * 2**20, int(1.5 * est_bytes))))
    return pltpu.CompilerParams(
        dimension_semantics=("parallel", "parallel"),
        vmem_limit_bytes=limit,
    )


def _conv3x3_stats_kernel(x_ref, w_ref, b_ref, y_ref, sum_ref, sq_ref, *,
                          tile_h, width):
    """3x3 conv (stride 1, pad 1) on one row tile + per-channel sum / sumsq.

    x_ref:   (1, H+2, W+2, Cin_p) bf16  whole padded image (resident across j)
    w_ref:   (9, Cin_p, Cout_p)   bf16  conv weights, tap-major
    b_ref:   (1, Cout_p)          f32   conv bias
    y_ref:   (1, TH, W, Cout_p)   f32   pre-BN conv output tile
    sum_ref: (1, 1, 1, Cout_p)    f32   per-tile channel sum(y)
    sq_ref:  (1, 1, 1, Cout_p)    f32   per-tile channel sum(y*y)
    """
    cin_p = x_ref.shape[-1]
    cout_p = w_ref.shape[-1]
    tm = tile_h * width

    r0 = pl.program_id(1) * tile_h
    if tile_h % 8 == 0:
        r0 = pl.multiple_of(r0, 8)

    acc = jnp.zeros((tm, cout_p), jnp.float32)
    for dy in range(3):                      # static 9-tap unroll
        for dx in range(3):
            a = x_ref[0, pl.ds(r0 + dy, tile_h), pl.ds(dx, width), :]
            a = a.reshape(tm, cin_p)
            acc = acc + jnp.dot(a, w_ref[dy * 3 + dx],
                                preferred_element_type=jnp.float32)

    y = acc + b_ref[...].astype(jnp.float32)
    y_ref[...] = y.reshape(1, tile_h, width, cout_p).astype(y_ref.dtype)
    sum_ref[...] = jnp.sum(y, axis=0, keepdims=True).reshape(1, 1, 1, cout_p)
    sq_ref[...] = jnp.sum(y * y, axis=0, keepdims=True).reshape(1, 1, 1, cout_p)


def _bn_relu_kernel(y_ref, scale_ref, shift_ref, o_ref):
    """Apply per-channel (y * scale + shift) then ReLU."""
    cout_p = scale_ref.shape[-1]
    y = y_ref[...].astype(jnp.float32)
    s = scale_ref[...].reshape(1, 1, 1, cout_p)
    b = shift_ref[...].reshape(1, 1, 1, cout_p)
    o_ref[...] = jnp.maximum(y * s + b, 0.0).astype(o_ref.dtype)


def _conv_bn_relu_stage(x_pad, w9, bias, gamma, beta, *, out_dtype):
    """One Conv3x3 + BatchNorm(batch stats) + ReLU stage.

    x_pad: (N, H+2, W+2, Cin_p) bf16, zero-padded spatially and on channels
    w9:    (9, Cin_p, Cout_p)   bf16
    bias, gamma, beta: (Cout_p,) f32 (zero-padded on channels)
    Returns (N, H, W, Cout_p) of `out_dtype`.
    """
    n, hp2, wp2, cin_p = x_pad.shape
    h, w = hp2 - 2, wp2 - 2
    cout_p = w9.shape[-1]

    tile_h = _pick_tile_h(h, w)
    n_t = h // tile_h
    tm = tile_h * w

    bias2d = bias.reshape(1, cout_p)

    # ---- pass 1: conv + bias, plus per-tile per-channel sums ---------------
    conv_est = (2 * hp2 * wp2 * cin_p * 2        # x slab (bf16, double-buffered)
                + 2 * 9 * cin_p * cout_p * 2     # resident weights
                + 2 * cout_p * 4                 # bias
                + 2 * tm * cout_p * 4            # y output tile
                + 4 * cout_p * 4                 # sum / sumsq tiles
                + tm * cout_p * 4)               # f32 accumulator
    y, psum, psq = pl.pallas_call(
        functools.partial(_conv3x3_stats_kernel, tile_h=tile_h, width=w),
        grid_spec=pltpu.PrefetchScalarGridSpec(
            num_scalar_prefetch=0,
            grid=(n, n_t),
            in_specs=[
                pl.BlockSpec((1, hp2, wp2, cin_p), lambda i, j: (i, 0, 0, 0)),
                pl.BlockSpec((9, cin_p, cout_p), lambda i, j: (0, 0, 0)),
                pl.BlockSpec((1, cout_p), lambda i, j: (0, 0)),
            ],
            out_specs=(
                pl.BlockSpec((1, tile_h, w, cout_p), lambda i, j: (i, j, 0, 0)),
                pl.BlockSpec((1, 1, 1, cout_p), lambda i, j: (i, j, 0, 0)),
                pl.BlockSpec((1, 1, 1, cout_p), lambda i, j: (i, j, 0, 0)),
            ),
        ),
        out_shape=(
            jax.ShapeDtypeStruct((n, h, w, cout_p), jnp.float32),
            jax.ShapeDtypeStruct((n, n_t, 1, cout_p), jnp.float32),
            jax.ShapeDtypeStruct((n, n_t, 1, cout_p), jnp.float32),
        ),
        compiler_params=_compiler_params(conv_est),
    )(x_pad, w9, bias2d)

    # ---- finalize BN batch statistics (tiny glue, exact over all N*H*W) ----
    count = jnp.float32(n * h * w)
    mean = jnp.sum(psum, axis=(0, 1, 2)) / count
    var = jnp.maximum(jnp.sum(psq, axis=(0, 1, 2)) / count - mean * mean, 0.0)
    inv_std = lax.rsqrt(var + BN_EPS)
    scale = (gamma * inv_std).reshape(1, cout_p)
    shift = (beta - mean * gamma * inv_std).reshape(1, cout_p)

    # ---- pass 2: normalize + affine + ReLU ---------------------------------
    bn_est = (2 * tm * cout_p * 4
              + 4 * cout_p * 4
              + 2 * tm * cout_p * jnp.dtype(out_dtype).itemsize)
    out = pl.pallas_call(
        _bn_relu_kernel,
        grid_spec=pltpu.PrefetchScalarGridSpec(
            num_scalar_prefetch=0,
            grid=(n, n_t),
            in_specs=[
                pl.BlockSpec((1, tile_h, w, cout_p), lambda i, j: (i, j, 0, 0)),
                pl.BlockSpec((1, cout_p), lambda i, j: (0, 0)),
                pl.BlockSpec((1, cout_p), lambda i, j: (0, 0)),
            ],
            out_specs=pl.BlockSpec((1, tile_h, w, cout_p),
                                   lambda i, j: (i, j, 0, 0)),
        ),
        out_shape=jax.ShapeDtypeStruct((n, h, w, cout_p), out_dtype),
        compiler_params=_compiler_params(bn_est),
    )(y, scale, shift)
    return out


def _prep_conv_weight(w_oihw, cin_p, cout_p):
    """(Cout, Cin, 3, 3) -> (9, Cin_p, Cout_p) bf16, tap-major, zero-padded."""
    c_out, c_in = w_oihw.shape[0], w_oihw.shape[1]
    w_hwio = jnp.transpose(w_oihw, (2, 3, 1, 0))                  # (3,3,Cin,Cout)
    w_hwio = jnp.pad(w_hwio, ((0, 0), (0, 0),
                              (0, cin_p - c_in), (0, cout_p - c_out)))
    return w_hwio.reshape(9, cin_p, cout_p).astype(jnp.bfloat16)


def _pad_vec(v, c_p):
    return jnp.pad(v.astype(jnp.float32), (0, c_p - v.shape[0]))


@jax.jit
def conv_block_forward(x_nchw, params):
    """Forward of conv_block. x_nchw: (N, C_in, H, W) float32 -> (N, C_out, H, W)."""
    n, c_in, h, w = x_nchw.shape
    c_out = params["w1"].shape[0]
    cin_p = _round_up(c_in, LANE)
    cout_p = _round_up(c_out, LANE)

    x = jnp.transpose(x_nchw, (0, 2, 3, 1))                       # NCHW -> NHWC
    x = jnp.pad(x, ((0, 0), (1, 1), (1, 1), (0, cin_p - c_in)))   # halo + lanes
    x = x.astype(jnp.bfloat16)

    a1 = _conv_bn_relu_stage(
        x,
        _prep_conv_weight(params["w1"], cin_p, cout_p),
        _pad_vec(params["b1"], cout_p),
        _pad_vec(params["g1"], cout_p),
        _pad_vec(params["be1"], cout_p),
        out_dtype=jnp.bfloat16,
    )
    # Inter-stage hand-off stays NHWC / channel-padded / bf16; only a cheap
    # spatial zero-pad here (no 9x im2col materialization between stages).
    a1 = jnp.pad(a1, ((0, 0), (1, 1), (1, 1), (0, 0)))

    a2 = _conv_bn_relu_stage(
        a1,
        _prep_conv_weight(params["w2"], cout_p, cout_p),
        _pad_vec(params["b2"], cout_p),
        _pad_vec(params["g2"], cout_p),
        _pad_vec(params["be2"], cout_p),
        out_dtype=jnp.float32,
    )
    return jnp.transpose(a2[..., :c_out], (0, 3, 1, 2))           # NHWC -> NCHW


def init_params(key, in_c, out_c):
    k1, k2, k3, k4 = jax.random.split(key, 4)
    scale1 = 1.0 / jnp.sqrt(in_c * 9.0)
    scale2 = 1.0 / jnp.sqrt(out_c * 9.0)
    return {
        "w1": jax.random.normal(k1, (out_c, in_c, 3, 3), jnp.float32) * scale1,
        "b1": jax.random.normal(k2, (out_c,), jnp.float32) * scale1,
        "g1": jnp.ones((out_c,), jnp.float32),      # BatchNorm2d default init
        "be1": jnp.zeros((out_c,), jnp.float32),
        "w2": jax.random.normal(k3, (out_c, out_c, 3, 3), jnp.float32) * scale2,
        "b2": jax.random.normal(k4, (out_c,), jnp.float32) * scale2,
        "g2": jnp.ones((out_c,), jnp.float32),
        "be2": jnp.zeros((out_c,), jnp.float32),
    }


def _reference_forward(x_nchw, params):
    """Pure-JAX f32 reference (Conv -> BN(batch stats) -> ReLU, twice)."""
    def stage(x, w, b, g, be):
        y = lax.conv_general_dilated(
            x, w, window_strides=(1, 1), padding="SAME",
            dimension_numbers=("NCHW", "OIHW", "NCHW"))
        y = y + b.reshape(1, -1, 1, 1)
        mean = jnp.mean(y, axis=(0, 2, 3), keepdims=True)
        var = jnp.mean(jnp.square(y - mean), axis=(0, 2, 3), keepdims=True)
        y = (y - mean) * lax.rsqrt(var + BN_EPS)
        y = y * g.reshape(1, -1, 1, 1) + be.reshape(1, -1, 1, 1)
        return jnp.maximum(y, 0.0)

    x = stage(x_nchw, params["w1"], params["b1"], params["g1"], params["be1"])
    x = stage(x, params["w2"], params["b2"], params["g2"], params["be2"])
    return x


if __name__ == "__main__":
    key = jax.random.PRNGKey(0)
    k_x, k_p = jax.random.split(key)

    N, C_IN, C_OUT, H, W = 2, 4, 8, 16, 16
    x = jax.random.normal(k_x, (N, C_IN, H, W), jnp.float32)
    params = init_params(k_p, C_IN, C_OUT)

    out = conv_block_forward(x, params)
    out = jax.block_until_ready(out)

    assert out.shape == (N, C_OUT, H, W)
    assert bool(jnp.all(jnp.isfinite(out)))
    assert bool(jnp.all(out >= 0.0))            # ReLU output

    # Loose tolerance: MXU inputs are bf16 (accumulation / BN math in f32).
    ref = _reference_forward(x, params)
    max_err = float(jnp.max(jnp.abs(out - ref)))
    assert max_err < 0.3, f"mismatch vs f32 reference: max abs err {max_err}"

    print("KERNEL_OK")
</pallas_src>

<mosaic_0001>
module attributes {stable_mosaic.version = 11 : i64} {
  func.func @_conv3x3_stats_kernel(%arg0: i32, %arg1: i32, %arg2: memref<1x18x18x128xbf16, #tpu.memory_space<vmem>>, %arg3: memref<9x128x128xbf16, #tpu.memory_space<vmem>>, %arg4: memref<1x128xf32, #tpu.memory_space<vmem>>, %arg5: memref<1x16x16x128xf32, #tpu.memory_space<vmem>>, %arg6: memref<1x1x1x128xf32, #tpu.memory_space<vmem>>, %arg7: memref<1x1x1x128xf32, #tpu.memory_space<vmem>>) attributes {dimension_semantics = [#tpu.dimension_semantics<parallel>, #tpu.dimension_semantics<parallel>], iteration_bounds = array<i64: 2, 1>, scalar_prefetch = 0 : i64, scratch_operands = 0 : i64, tpu.core_type = #tpu.core_type<tc>, window_params = [{transform_indices = @transform_0, window_bounds = array<i64: 1, 18, 18, 128>}, {pipeline_mode = #tpu.pipeline_mode<synchronous>, transform_indices = @transform_1, window_bounds = array<i64: 9, 128, 128>}, {pipeline_mode = #tpu.pipeline_mode<synchronous>, transform_indices = @transform_2, window_bounds = array<i64: 1, 128>}, {transform_indices = @transform_3, window_bounds = array<i64: 1, 16, 16, 128>}, {transform_indices = @transform_4, window_bounds = array<i64: 1, 1, 1, 128>}, {transform_indices = @transform_5, window_bounds = array<i64: 1, 1, 1, 128>}]} {
    %c16_i32 = arith.constant 16 : i32
    %0 = arith.muli %arg1, %c16_i32 : i32
    %1 = tpu.assume_multiple %0, 8 : i32
    %cst = arith.constant 0.000000e+00 : f32
    %2 = vector.broadcast %cst : f32 to vector<256x128xf32>
    %c0_i32 = arith.constant 0 : i32
    %3 = arith.addi %1, %c0_i32 : i32
    %c0 = arith.constant 0 : index
    %4 = arith.index_cast %3 : i32 to index
    %c0_0 = arith.constant 0 : index
    %c0_1 = arith.constant 0 : index
    %5 = vector.load %arg2[%c0, %4, %c0_0, %c0_1] : memref<1x18x18x128xbf16, #tpu.memory_space<vmem>>, vector<1x16x16x128xbf16>
    %6 = vector.shape_cast %5 : vector<1x16x16x128xbf16> to vector<16x16x128xbf16>
    %7 = vector.shape_cast %6 : vector<16x16x128xbf16> to vector<256x128xbf16>
    %c0_2 = arith.constant 0 : index
    %c0_3 = arith.constant 0 : index
    %c0_4 = arith.constant 0 : index
    %8 = vector.load %arg3[%c0_2, %c0_3, %c0_4] : memref<9x128x128xbf16, #tpu.memory_space<vmem>>, vector<1x128x128xbf16>
    %9 = vector.shape_cast %8 : vector<1x128x128xbf16> to vector<128x128xbf16>
    %cst_5 = arith.constant dense<0.000000e+00> : vector<256x128xf32>
    %10 = tpu.matmul %7, %9, %cst_5 {dimension_numbers = #tpu.dot_dimension_numbers<[1], [0], [0], [1], [0, 0, 1, 1], [], []>} : vector<256x128xbf16>, vector<128x128xbf16>, vector<256x128xf32> -> vector<256x128xf32>
    %11 = arith.addf %2, %10 : vector<256x128xf32>
    %c0_i32_6 = arith.constant 0 : i32
    %12 = arith.addi %1, %c0_i32_6 : i32
    %c0_7 = arith.constant 0 : index
    %13 = arith.index_cast %12 : i32 to index
    %c1 = arith.constant 1 : index
    %c0_8 = arith.constant 0 : index
    %14 = vector.load %arg2[%c0_7, %13, %c1, %c0_8] : memref<1x18x18x128xbf16, #tpu.memory_space<vmem>>, vector<1x16x16x128xbf16>
    %15 = vector.shape_cast %14 : vector<1x16x16x128xbf16> to vector<16x16x128xbf16>
    %16 = vector.shape_cast %15 : vector<16x16x128xbf16> to vector<256x128xbf16>
    %c1_9 = arith.constant 1 : index
    %c0_10 = arith.constant 0 : index
    %c0_11 = arith.constant 0 : index
    %17 = vector.load %arg3[%c1_9, %c0_10, %c0_11] : memref<9x128x128xbf16, #tpu.memory_space<vmem>>, vector<1x128x128xbf16>
    %18 = vector.shape_cast %17 : vector<1x128x128xbf16> to vector<128x128xbf16>
    %cst_12 = arith.constant dense<0.000000e+00> : vector<256x128xf32>
    %19 = tpu.matmul %16, %18, %cst_12 {dimension_numbers = #tpu.dot_dimension_numbers<[1], [0], [0], [1], [0, 0, 1, 1], [], []>} : vector<256x128xbf16>, vector<128x128xbf16>, vector<256x128xf32> -> vector<256x128xf32>
    %20 = arith.addf %11, %19 : vector<256x128xf32>
    %c0_i32_13 = arith.constant 0 : i32
    %21 = arith.addi %1, %c0_i32_13 : i32
    %c0_14 = arith.constant 0 : index
    %22 = arith.index_cast %21 : i32 to index
    %c2 = arith.constant 2 : index
    %c0_15 = arith.constant 0 : index
    %23 = vector.load %arg2[%c0_14, %22, %c2, %c0_15] : memref<1x18x18x128xbf16, #tpu.memory_space<vmem>>, vector<1x16x16x128xbf16>
    %24 = vector.shape_cast %23 : vector<1x16x16x128xbf16> to vector<16x16x128xbf16>
    %25 = vector.shape_cast %24 : vector<16x16x128xbf16> to vector<256x128xbf16>
    %c2_16 = arith.constant 2 : index
    %c0_17 = arith.constant 0 : index
    %c0_18 = arith.constant 0 : index
    %26 = vector.load %arg3[%c2_16, %c0_17, %c0_18] : memref<9x128x128xbf16, #tpu.memory_space<vmem>>, vector<1x128x128xbf16>
    %27 = vector.shape_cast %26 : vector<1x128x128xbf16> to vector<128x128xbf16>
    %cst_19 = arith.constant dense<0.000000e+00> : vector<256x128xf32>
    %28 = tpu.matmul %25, %27, %cst_19 {dimension_numbers = #tpu.dot_dimension_numbers<[1], [0], [0], [1], [0, 0, 1, 1], [], []>} : vector<256x128xbf16>, vector<128x128xbf16>, vector<256x128xf32> -> vector<256x128xf32>
    %29 = arith.addf %20, %28 : vector<256x128xf32>
    %c1_i32 = arith.constant 1 : i32
    %30 = arith.addi %1, %c1_i32 : i32
    %c0_20 = arith.constant 0 : index
    %31 = arith.index_cast %30 : i32 to index
    %c0_21 = arith.constant 0 : index
    %c0_22 = arith.constant 0 : index
    %32 = vector.load %arg2[%c0_20, %31, %c0_21, %c0_22] : memref<1x18x18x128xbf16, #tpu.memory_space<vmem>>, vector<1x16x16x128xbf16>
    %33 = vector.shape_cast %32 : vector<1x16x16x128xbf16> to vector<16x16x128xbf16>
    %34 = vector.shape_cast %33 : vector<16x16x128xbf16> to vector<256x128xbf16>
    %c3 = arith.constant 3 : index
    %c0_23 = arith.constant 0 : index
    %c0_24 = arith.constant 0 : index
    %35 = vector.load %arg3[%c3, %c0_23, %c0_24] : memref<9x128x128xbf16, #tpu.memory_space<vmem>>, vector<1x128x128xbf16>
    %36 = vector.shape_cast %35 : vector<1x128x128xbf16> to vector<128x128xbf16>
    %cst_25 = arith.constant dense<0.000000e+00> : vector<256x128xf32>
    %37 = tpu.matmul %34, %36, %cst_25 {dimension_numbers = #tpu.dot_dimension_numbers<[1], [0], [0], [1], [0, 0, 1, 1], [], []>} : vector<256x128xbf16>, vector<128x128xbf16>, vector<256x128xf32> -> vector<256x128xf32>
    %38 = arith.addf %29, %37 : vector<256x128xf32>
    %c1_i32_26 = arith.constant 1 : i32
    %39 = arith.addi %1, %c1_i32_26 : i32
    %c0_27 = arith.constant 0 : index
    %40 = arith.index_cast %39 : i32 to index
    %c1_28 = arith.constant 1 : index
    %c0_29 = arith.constant 0 : index
    %41 = vector.load %arg2[%c0_27, %40, %c1_28, %c0_29] : memref<1x18x18x128xbf16, #tpu.memory_space<vmem>>, vector<1x16x16x128xbf16>
    %42 = vector.shape_cast %41 : vector<1x16x16x128xbf16> to vector<16x16x128xbf16>
    %43 = vector.shape_cast %42 : vector<16x16x128xbf16> to vector<256x128xbf16>
    %c4 = arith.constant 4 : index
    %c0_30 = arith.constant 0 : index
    %c0_31 = arith.constant 0 : index
    %44 = vector.load %arg3[%c4, %c0_30, %c0_31] : memref<9x128x128xbf16, #tpu.memory_space<vmem>>, vector<1x128x128xbf16>
    %45 = vector.shape_cast %44 : vector<1x128x128xbf16> to vector<128x128xbf16>
    %cst_32 = arith.constant dense<0.000000e+00> : vector<256x128xf32>
    %46 = tpu.matmul %43, %45, %cst_32 {dimension_numbers = #tpu.dot_dimension_numbers<[1], [0], [0], [1], [0, 0, 1, 1], [], []>} : vector<256x128xbf16>, vector<128x128xbf16>, vector<256x128xf32> -> vector<256x128xf32>
    %47 = arith.addf %38, %46 : vector<256x128xf32>
    %c1_i32_33 = arith.constant 1 : i32
    %48 = arith.addi %1, %c1_i32_33 : i32
    %c0_34 = arith.constant 0 : index
    %49 = arith.index_cast %48 : i32 to index
    %c2_35 = arith.constant 2 : index
    %c0_36 = arith.constant 0 : index
    %50 = vector.load %arg2[%c0_34, %49, %c2_35, %c0_36] : memref<1x18x18x128xbf16, #tpu.memory_space<vmem>>, vector<1x16x16x128xbf16>
    %51 = vector.shape_cast %50 : vector<1x16x16x128xbf16> to vector<16x16x128xbf16>
    %52 = vector.shape_cast %51 : vector<16x16x128xbf16> to vector<256x128xbf16>
    %c5 = arith.constant 5 : index
    %c0_37 = arith.constant 0 : index
    %c0_38 = arith.constant 0 : index
    %53 = vector.load %arg3[%c5, %c0_37, %c0_38] : memref<9x128x128xbf16, #tpu.memory_space<vmem>>, vector<1x128x128xbf16>
    %54 = vector.shape_cast %53 : vector<1x128x128xbf16> to vector<128x128xbf16>
    %cst_39 = arith.constant dense<0.000000e+00> : vector<256x128xf32>
    %55 = tpu.matmul %52, %54, %cst_39 {dimension_numbers = #tpu.dot_dimension_numbers<[1], [0], [0], [1], [0, 0, 1, 1], [], []>} : vector<256x128xbf16>, vector<128x128xbf16>, vector<256x128xf32> -> vector<256x128xf32>
    %56 = arith.addf %47, %55 : vector<256x128xf32>
    %c2_i32 = arith.constant 2 : i32
    %57 = arith.addi %1, %c2_i32 : i32
    %c0_40 = arith.constant 0 : index
    %58 = arith.index_cast %57 : i32 to index
    %c0_41 = arith.constant 0 : index
    %c0_42 = arith.constant 0 : index
    %59 = vector.load %arg2[%c0_40, %58, %c0_41, %c0_42] : memref<1x18x18x128xbf16, #tpu.memory_space<vmem>>, vector<1x16x16x128xbf16>
    %60 = vector.shape_cast %59 : vector<1x16x16x128xbf16> to vector<16x16x128xbf16>
    %61 = vector.shape_cast %60 : vector<16x16x128xbf16> to vector<256x128xbf16>
    %c6 = arith.constant 6 : index
    %c0_43 = arith.constant 0 : index
    %c0_44 = arith.constant 0 : index
    %62 = vector.load %arg3[%c6, %c0_43, %c0_44] : memref<9x128x128xbf16, #tpu.memory_space<vmem>>, vector<1x128x128xbf16>
    %63 = vector.shape_cast %62 : vector<1x128x128xbf16> to vector<128x128xbf16>
    %cst_45 = arith.constant dense<0.000000e+00> : vector<256x128xf32>
    %64 = tpu.matmul %61, %63, %cst_45 {dimension_numbers = #tpu.dot_dimension_numbers<[1], [0], [0], [1], [0, 0, 1, 1], [], []>} : vector<256x128xbf16>, vector<128x128xbf16>, vector<256x128xf32> -> vector<256x128xf32>
    %65 = arith.addf %56, %64 : vector<256x128xf32>
    %c2_i32_46 = arith.constant 2 : i32
    %66 = arith.addi %1, %c2_i32_46 : i32
    %c0_47 = arith.constant 0 : index
    %67 = arith.index_cast %66 : i32 to index
    %c1_48 = arith.constant 1 : index
    %c0_49 = arith.constant 0 : index
    %68 = vector.load %arg2[%c0_47, %67, %c1_48, %c0_49] : memref<1x18x18x128xbf16, #tpu.memory_space<vmem>>, vector<1x16x16x128xbf16>
    %69 = vector.shape_cast %68 : vector<1x16x16x128xbf16> to vector<16x16x128xbf16>
    %70 = vector.shape_cast %69 : vector<16x16x128xbf16> to vector<256x128xbf16>
    %c7 = arith.constant 7 : index
    %c0_50 = arith.constant 0 : index
    %c0_51 = arith.constant 0 : index
    %71 = vector.load %arg3[%c7, %c0_50, %c0_51] : memref<9x128x128xbf16, #tpu.memory_space<vmem>>, vector<1x128x128xbf16>
    %72 = vector.shape_cast %71 : vector<1x128x128xbf16> to vector<128x128xbf16>
    %cst_52 = arith.constant dense<0.000000e+00> : vector<256x128xf32>
    %73 = tpu.matmul %70, %72, %cst_52 {dimension_numbers = #tpu.dot_dimension_numbers<[1], [0], [0], [1], [0, 0, 1, 1], [], []>} : vector<256x128xbf16>, vector<128x128xbf16>, vector<256x128xf32> -> vector<256x128xf32>
    %74 = arith.addf %65, %73 : vector<256x128xf32>
    %c2_i32_53 = arith.constant 2 : i32
    %75 = arith.addi %1, %c2_i32_53 : i32
    %c0_54 = arith.constant 0 : index
    %76 = arith.index_cast %75 : i32 to index
    %c2_55 = arith.constant 2 : index
    %c0_56 = arith.constant 0 : index
    %77 = vector.load %arg2[%c0_54, %76, %c2_55, %c0_56] : memref<1x18x18x128xbf16, #tpu.memory_space<vmem>>, vector<1x16x16x128xbf16>
    %78 = vector.shape_cast %77 : vector<1x16x16x128xbf16> to vector<16x16x128xbf16>
    %79 = vector.shape_cast %78 : vector<16x16x128xbf16> to vector<256x128xbf16>
    %c8 = arith.constant 8 : index
    %c0_57 = arith.constant 0 : index
    %c0_58 = arith.constant 0 : index
    %80 = vector.load %arg3[%c8, %c0_57, %c0_58] : memref<9x128x128xbf16, #tpu.memory_space<vmem>>, vector<1x128x128xbf16>
    %81 = vector.shape_cast %80 : vector<1x128x128xbf16> to vector<128x128xbf16>
    %cst_59 = arith.constant dense<0.000000e+00> : vector<256x128xf32>
    %82 = tpu.matmul %79, %81, %cst_59 {dimension_numbers = #tpu.dot_dimension_numbers<[1], [0], [0], [1], [0, 0, 1, 1], [], []>} : vector<256x128xbf16>, vector<128x128xbf16>, vector<256x128xf32> -> vector<256x128xf32>
    %83 = arith.addf %74, %82 : vector<256x128xf32>
    %c0_60 = arith.constant 0 : index
    %c0_61 = arith.constant 0 : index
    %84 = vector.load %arg4[%c0_60, %c0_61] : memref<1x128xf32, #tpu.memory_space<vmem>>, vector<1x128xf32>
    %85 = vector.broadcast %84 : vector<1x128xf32> to vector<256x128xf32>
    %86 = arith.addf %83, %85 : vector<256x128xf32>
    %87 = vector.shape_cast %86 : vector<256x128xf32> to vector<1x16x16x128xf32>
    %c0_62 = arith.constant 0 : index
    %c0_63 = arith.constant 0 : index
    %c0_64 = arith.constant 0 : index
    %c0_65 = arith.constant 0 : index
    %88 = vector.load %arg5[%c0_62, %c0_63, %c0_64, %c0_65] : memref<1x16x16x128xf32, #tpu.memory_space<vmem>>, vector<1x16x16x128xf32>
    tpu.vector_store %arg5[%c0_62, %c0_63, %c0_64, %c0_65], %87 {strides = array<i32>} : memref<1x16x16x128xf32, #tpu.memory_space<vmem>>, vector<1x16x16x128xf32>,
    %cst_66 = arith.constant dense<0.000000e+00> : vector<128xf32>
    %89 = vector.multi_reduction <add>, %86, %cst_66 [0] : vector<256x128xf32> to vector<128xf32>
    %90 = vector.shape_cast %89 : vector<128xf32> to vector<1x128xf32>
    %91 = vector.shape_cast %90 : vector<1x128xf32> to vector<1x1x1x128xf32>
    %c0_67 = arith.constant 0 : index
    %c0_68 = arith.constant 0 : index
    %c0_69 = arith.constant 0 : index
    %c0_70 = arith.constant 0 : index
    %92 = vector.load %arg6[%c0_67, %c0_68, %c0_69, %c0_70] : memref<1x1x1x128xf32, #tpu.memory_space<vmem>>, vector<1x1x1x128xf32>
    tpu.vector_store %arg6[%c0_67, %c0_68, %c0_69, %c0_70], %91 {strides = array<i32>} : memref<1x1x1x128xf32, #tpu.memory_space<vmem>>, vector<1x1x1x128xf32>,
    %93 = arith.mulf %86, %86 : vector<256x128xf32>
    %cst_71 = arith.constant dense<0.000000e+00> : vector<128xf32>
    %94 = vector.multi_reduction <add>, %93, %cst_71 [0] : vector<256x128xf32> to vector<128xf32>
    %95 = vector.shape_cast %94 : vector<128xf32> to vector<1x128xf32>
    %96 = vector.shape_cast %95 : vector<1x128xf32> to vector<1x1x1x128xf32>
    %c0_72 = arith.constant 0 : index
    %c0_73 = arith.constant 0 : index
    %c0_74 = arith.constant 0 : index
    %c0_75 = arith.constant 0 : index
    %97 = vector.load %arg7[%c0_72, %c0_73, %c0_74, %c0_75] : memref<1x1x1x128xf32, #tpu.memory_space<vmem>>, vector<1x1x1x128xf32>
    tpu.vector_store %arg7[%c0_72, %c0_73, %c0_74, %c0_75], %96 {strides = array<i32>} : memref<1x1x1x128xf32, #tpu.memory_space<vmem>>, vector<1x1x1x128xf32>,
    return
  }
  func.func @transform_0(%arg0: i32, %arg1: i32) -> (i32, i32, i32, i32) {
    %c0_i32 = arith.constant 0 : i32
    %c0_i32_0 = arith.constant 0 : i32
    %c0_i32_1 = arith.constant 0 : i32
    %c0_i32_2 = arith.constant 0 : i32
    return %arg0, %c0_i32, %c0_i32_0, %c0_i32_1 : i32, i32, i32, i32
  }
  func.func @transform_1(%arg0: i32, %arg1: i32) -> (i32, i32, i32) {
    %c0_i32 = arith.constant 0 : i32
    %c0_i32_0 = arith.constant 0 : i32
    %c0_i32_1 = arith.constant 0 : i32
    %c0_i32_2 = arith.constant 0 : i32
    return %c0_i32, %c0_i32_0, %c0_i32_1 : i32, i32, i32
  }
  func.func @transform_2(%arg0: i32, %arg1: i32) -> (i32, i32) {
    %c0_i32 = arith.constant 0 : i32
    %c0_i32_0 = arith.constant 0 : i32
    %c0_i32_1 = arith.constant 0 : i32
    return %c0_i32, %c0_i32_0 : i32, i32
  }
  func.func @transform_3(%arg0: i32, %arg1: i32) -> (i32, i32, i32, i32) {
    %c0_i32 = arith.constant 0 : i32
    %c0_i32_0 = arith.constant 0 : i32
    %c0_i32_1 = arith.constant 0 : i32
    return %arg0, %arg1, %c0_i32, %c0_i32_0 : i32, i32, i32, i32
  }
  func.func @transform_4(%arg0: i32, %arg1: i32) -> (i32, i32, i32, i32) {
    %c0_i32 = arith.constant 0 : i32
    %c0_i32_0 = arith.constant 0 : i32
    %c0_i32_1 = arith.constant 0 : i32
    return %arg0, %arg1, %c0_i32, %c0_i32_0 : i32, i32, i32, i32
  }
  func.func @transform_5(%arg0: i32, %arg1: i32) -> (i32, i32, i32, i32) {
    %c0_i32 = arith.constant 0 : i32
    %c0_i32_0 = arith.constant 0 : i32
    %c0_i32_1 = arith.constant 0 : i32
    return %arg0, %arg1, %c0_i32, %c0_i32_0 : i32, i32, i32, i32
  }
}

module attributes {stable_mosaic.version = 11 : i64} {
  func.func @_bn_relu_kernel(%arg0: i32, %arg1: i32, %arg2: memref<1x16x16x128xf32, #tpu.memory_space<vmem>>, %arg3: memref<1x128xf32, #tpu.memory_space<vmem>>, %arg4: memref<1x128xf32, #tpu.memory_space<vmem>>, %arg5: memref<1x16x16x128xbf16, #tpu.memory_space<vmem>>) attributes {dimension_semantics = [#tpu.dimension_semantics<parallel>, #tpu.dimension_semantics<parallel>], iteration_bounds = array<i64: 2, 1>, scalar_prefetch = 0 : i64, scratch_operands = 0 : i64, tpu.core_type = #tpu.core_type<tc>, window_params = [{transform_indices = @transform_0, window_bounds = array<i64: 1, 16, 16, 128>}, {pipeline_mode = #tpu.pipeline_mode<synchronous>, transform_indices = @transform_1, window_bounds = array<i64: 1, 128>}, {pipeline_mode = #tpu.pipeline_mode<synchronous>, transform_indices = @transform_2, window_bounds = array<i64: 1, 128>}, {transform_indices = @transform_3, window_bounds = array<i64: 1, 16, 16, 128>}]} {
    %c0 = arith.constant 0 : index
    %c0_0 = arith.constant 0 : index
    %c0_1 = arith.constant 0 : index
    %c0_2 = arith.constant 0 : index
    %0 = vector.load %arg2[%c0, %c0_0, %c0_1, %c0_2] : memref<1x16x16x128xf32, #tpu.memory_space<vmem>>, vector<1x16x16x128xf32>
    %c0_3 = arith.constant 0 : index
    %c0_4 = arith.constant 0 : index
    %1 = vector.load %arg3[%c0_3, %c0_4] : memref<1x128xf32, #tpu.memory_space<vmem>>, vector<1x128xf32>
    %2 = vector.shape_cast %1 : vector<1x128xf32> to vector<1x1x1x128xf32>
    %c0_5 = arith.constant 0 : index
    %c0_6 = arith.constant 0 : index
    %3 = vector.load %arg4[%c0_5, %c0_6] : memref<1x128xf32, #tpu.memory_space<vmem>>, vector<1x128xf32>
    %4 = vector.shape_cast %3 : vector<1x128xf32> to vector<1x1x1x128xf32>
    %5 = vector.broadcast %2 : vector<1x1x1x128xf32> to vector<1x16x16x128xf32>
    %6 = arith.mulf %0, %5 : vector<1x16x16x128xf32>
    %7 = vector.broadcast %4 : vector<1x1x1x128xf32> to vector<1x16x16x128xf32>
    %8 = arith.addf %6, %7 : vector<1x16x16x128xf32>
    %cst = arith.constant 0.000000e+00 : f32
    %9 = vector.broadcast %cst : f32 to vector<1x16x16x128xf32>
    %10 = arith.maximumf %8, %9 : vector<1x16x16x128xf32>
    %11 = arith.truncf %10 : vector<1x16x16x128xf32> to vector<1x16x16x128xbf16>
    %c0_7 = arith.constant 0 : index
    %c0_8 = arith.constant 0 : index
    %c0_9 = arith.constant 0 : index
    %c0_10 = arith.constant 0 : index
    %12 = vector.load %arg5[%c0_7, %c0_8, %c0_9, %c0_10] : memref<1x16x16x128xbf16, #tpu.memory_space<vmem>>, vector<1x16x16x128xbf16>
    tpu.vector_store %arg5[%c0_7, %c0_8, %c0_9, %c0_10], %11 {strides = array<i32>} : memref<1x16x16x128xbf16, #tpu.memory_space<vmem>>, vector<1x16x16x128xbf16>,
    return
  }
  func.func @transform_0(%arg0: i32, %arg1: i32) -> (i32, i32, i32, i32) {
    %c0_i32 = arith.constant 0 : i32
    %c0_i32_0 = arith.constant 0 : i32
    %c0_i32_1 = arith.constant 0 : i32
    return %arg0, %arg1, %c0_i32, %c0_i32_0 : i32, i32, i32, i32
  }
  func.func @transform_1(%arg0: i32, %arg1: i32) -> (i32, i32) {
    %c0_i32 = arith.constant 0 : i32
    %c0_i32_0 = arith.constant 0 : i32
    %c0_i32_1 = arith.constant 0 : i32
    return %c0_i32, %c0_i32_0 : i32, i32
  }
  func.func @transform_2(%arg0: i32, %arg1: i32) -> (i32, i32) {
    %c0_i32 = arith.constant 0 : i32
    %c0_i32_0 = arith.constant 0 : i32
    %c0_i32_1 = arith.constant 0 : i32
    return %c0_i32, %c0_i32_0 : i32, i32
  }
  func.func @transform_3(%arg0: i32, %arg1: i32) -> (i32, i32, i32, i32) {
    %c0_i32 = arith.constant 0 : i32
    %c0_i32_0 = arith.constant 0 : i32
    %c0_i32_1 = arith.constant 0 : i32
    return %arg0, %arg1, %c0_i32, %c0_i32_0 : i32, i32, i32, i32
  }
}

module attributes {stable_mosaic.version = 11 : i64} {
  func.func @_bn_relu_kernel(%arg0: i32, %arg1: i32, %arg2: memref<1x16x16x128xf32, #tpu.memory_space<vmem>>, %arg3: memref<1x128xf32, #tpu.memory_space<vmem>>, %arg4: memref<1x128xf32, #tpu.memory_space<vmem>>, %arg5: memref<1x16x16x128xf32, #tpu.memory_space<vmem>>) attributes {dimension_semantics = [#tpu.dimension_semantics<parallel>, #tpu.dimension_semantics<parallel>], iteration_bounds = array<i64: 2, 1>, scalar_prefetch = 0 : i64, scratch_operands = 0 : i64, tpu.core_type = #tpu.core_type<tc>, window_params = [{transform_indices = @transform_0, window_bounds = array<i64: 1, 16, 16, 128>}, {pipeline_mode = #tpu.pipeline_mode<synchronous>, transform_indices = @transform_1, window_bounds = array<i64: 1, 128>}, {pipeline_mode = #tpu.pipeline_mode<synchronous>, transform_indices = @transform_2, window_bounds = array<i64: 1, 128>}, {transform_indices = @transform_3, window_bounds = array<i64: 1, 16, 16, 128>}]} {
    %c0 = arith.constant 0 : index
    %c0_0 = arith.constant 0 : index
    %c0_1 = arith.constant 0 : index
    %c0_2 = arith.constant 0 : index
    %0 = vector.load %arg2[%c0, %c0_0, %c0_1, %c0_2] : memref<1x16x16x128xf32, #tpu.memory_space<vmem>>, vector<1x16x16x128xf32>
    %c0_3 = arith.constant 0 : index
    %c0_4 = arith.constant 0 : index
    %1 = vector.load %arg3[%c0_3, %c0_4] : memref<1x128xf32, #tpu.memory_space<vmem>>, vector<1x128xf32>
    %2 = vector.shape_cast %1 : vector<1x128xf32> to vector<1x1x1x128xf32>
    %c0_5 = arith.constant 0 : index
    %c0_6 = arith.constant 0 : index
    %3 = vector.load %arg4[%c0_5, %c0_6] : memref<1x128xf32, #tpu.memory_space<vmem>>, vector<1x128xf32>
    %4 = vector.shape_cast %3 : vector<1x128xf32> to vector<1x1x1x128xf32>
    %5 = vector.broadcast %2 : vector<1x1x1x128xf32> to vector<1x16x16x128xf32>
    %6 = arith.mulf %0, %5 : vector<1x16x16x128xf32>
    %7 = vector.broadcast %4 : vector<1x1x1x128xf32> to vector<1x16x16x128xf32>
    %8 = arith.addf %6, %7 : vector<1x16x16x128xf32>
    %cst = arith.constant 0.000000e+00 : f32
    %9 = vector.broadcast %cst : f32 to vector<1x16x16x128xf32>
    %10 = arith.maximumf %8, %9 : vector<1x16x16x128xf32>
    %c0_7 = arith.constant 0 : index
    %c0_8 = arith.constant 0 : index
    %c0_9 = arith.constant 0 : index
    %c0_10 = arith.constant 0 : index
    %11 = vector.load %arg5[%c0_7, %c0_8, %c0_9, %c0_10] : memref<1x16x16x128xf32, #tpu.memory_space<vmem>>, vector<1x16x16x128xf32>
    tpu.vector_store %arg5[%c0_7, %c0_8, %c0_9, %c0_10], %10 {strides = array<i32>} : memref<1x16x16x128xf32, #tpu.memory_space<vmem>>, vector<1x16x16x128xf32>,
    return
  }
  func.func @transform_0(%arg0: i32, %arg1: i32) -> (i32, i32, i32, i32) {
    %c0_i32 = arith.constant 0 : i32
    %c0_i32_0 = arith.constant 0 : i32
    %c0_i32_1 = arith.constant 0 : i32
    return %arg0, %arg1, %c0_i32, %c0_i32_0 : i32, i32, i32, i32
  }
  func.func @transform_1(%arg0: i32, %arg1: i32) -> (i32, i32) {
    %c0_i32 = arith.constant 0 : i32
    %c0_i32_0 = arith.constant 0 : i32
    %c0_i32_1 = arith.constant 0 : i32
    return %c0_i32, %c0_i32_0 : i32, i32
  }
  func.func @transform_2(%arg0: i32, %arg1: i32) -> (i32, i32) {
    %c0_i32 = arith.constant 0 : i32
    %c0_i32_0 = arith.constant 0 : i32
    %c0_i32_1 = arith.constant 0 : i32
    return %c0_i32, %c0_i32_0 : i32, i32
  }
  func.func @transform_3(%arg0: i32, %arg1: i32) -> (i32, i32, i32, i32) {
    %c0_i32 = arith.constant 0 : i32
    %c0_i32_0 = arith.constant 0 : i32
    %c0_i32_1 = arith.constant 0 : i32
    return %arg0, %arg1, %c0_i32, %c0_i32_0 : i32, i32, i32, i32
  }
}

</mosaic_0001>

<llo_original>
// kernel: conv_block_forward.5
$region0: #{conv_block_forward.5}
  #allocation0 [shape = 'u32[]', space=smem, size = 0x4, offset = 0x4, fixed_abs, tag = 'smem constant byte address 0x4 - core index']
  #allocation1 [shape = 'u32[144,128]{1,0:T(1,128)}', space=vmem, size = 0x12000, scoped, tag = 'internal scratch']
  %s0 = inlined_call_operand.vmem [shape: f32[2,16,16,128], index: 0, kind: input, shape index: {}]
  %s1 = inlined_call_operand.vmem [shape: f32[1,128], index: 1, kind: input, shape index: {}]
  %s2 = inlined_call_operand.vmem [shape: f32[1,128], index: 2, kind: input, shape index: {}]
  %s3 = inlined_call_operand.vmem [shape: bf16[2,16,16,128], index: 3, kind: output, shape index: {}]
  %s4 = sld [smem:[#allocation0]]
  $region45: #{conv_block_forward.5} parent=0
    _
  %s6 = ssub.s32 1, %s4
  %s7 = scalar_select 0, %s6, %s4
  loop: start=0, step=1, limit=4
  $region2: #{conv_block_forward.5} parent=0 // loop_pre_header
    _
  $region3: #{conv_block_forward.5} parent=0 // loop_header
    %s9 = sphi 0, %s13
    %p10 = scmp.ge.s32.totalorder %s9, 4
    %s16 = sphi 0, %s28
    %s17 = sphi 0, %s24
    %s18 = sphi 0, %s16
    %s19 = sphi 0, %s17
    %s20 = sphi 0, %s18
    %s21 = sphi 0, %s19
    %s33 = sphi 0, %s35
    %s36 = sphi 0, %s33
    %s37 = sphi 0, %s36
    %s53 = sphi 0, %s37
    %s57 = sphi 0, %s57
    %s59 = sphi 0, %s57
    %s60 = sphi 0, %s59
    %s74 = sphi 0, %s60
    %s78 = sphi 0, %s78
    %s80 = sphi 0, %s78
    %s81 = sphi 0, %s80
    %s95 = sphi 0, %s81
    %s103 = sphi 0, %s105
    %s106 = sphi 0, %s103
    %s107 = sphi 0, %s106
    %s123 = sphi 0, %s107
  $region4: #{conv_block_forward.5} parent=0 // loop_header_branch
    %12 = sbr.rel (%p10) target = $region8
  $region5: #{conv_block_forward.5} parent=0 // loop_body
    %s14 = ssub.s32 %s9, 1
    %s15 = ssub.s32 %s9, 2
    %s22 = sadd.s32 1, %s17
    %p23 = scmp.ge.s32.totalorder %s22, 1
    %s24 = scalar_select %p23, 0, %s22
    %s25 = sadd.s32 1, %s16
    %s26 = scalar_select %p23, %s25, %s16
    %p27 = scmp.ge.s32.totalorder %s26, 2
    %s28 = scalar_select %p27, 0, %s26
    %s29 = ssub.s32 %s16, %s28
    %s30 = ssub.s32 %s17, %s24
    %s31 = sor.u32 %s29, %s30
    %p32 = scmp.eq.s32.totalorder %s31, 0
    %s34 = sadd.s32 %s33, 1
    %s35 = scalar_select %p32, %s33, %s34
    %p38 = pneg %p32
    %p39 = scmp.eq.s32.totalorder %s9, 1
    %p40 = por %p38, %p39
    %p41 = scmp.ne.s32.totalorder %s33, %s36
    %p42 = scmp.eq.s32.totalorder %s9, 0
    %p43 = por %p41, %p42
    %p44 = scmp.ne.s32.totalorder %s33, %s36
    %p45 = scmp.eq.s32.totalorder %s14, 1
    %p46 = por %p44, %p45
    %p47 = scmp.ne.s32.totalorder %s36, %s37
    %p48 = scmp.eq.s32.totalorder %s14, 0
    %p49 = por %p47, %p48
    %p50 = scmp.ne.s32.totalorder %s36, %s37
    %p51 = scmp.eq.s32.totalorder %s15, 1
    %p52 = por %p50, %p51
    %p54 = scmp.ne.s32.totalorder %s37, %s53
    %p55 = scmp.eq.s32.totalorder %s15, 0
    %p56 = por %p54, %p55
    %s58 = sadd.s32 %s57, 1
    %p61 = scmp.eq.s32.totalorder %s9, 1
    %p62 = scmp.ne.s32.totalorder %s57, %s59
    %p63 = scmp.eq.s32.totalorder %s9, 0
    %p64 = por %p62, %p63
    %p65 = scmp.ne.s32.totalorder %s57, %s59
    %p66 = scmp.eq.s32.totalorder %s14, 1
    %p67 = por %p65, %p66
    %p68 = scmp.ne.s32.totalorder %s59, %s60
    %p69 = scmp.eq.s32.totalorder %s14, 0
    %p70 = por %p68, %p69
    %p71 = scmp.ne.s32.totalorder %s59, %s60
    %p72 = scmp.eq.s32.totalorder %s15, 1
    %p73 = por %p71, %p72
    %p75 = scmp.ne.s32.totalorder %s60, %s74
    %p76 = scmp.eq.s32.totalorder %s15, 0
    %p77 = por %p75, %p76
    %s79 = sadd.s32 %s78, 1
    %p82 = scmp.eq.s32.totalorder %s9, 1
    %p83 = scmp.ne.s32.totalorder %s78, %s80
    %p84 = scmp.eq.s32.totalorder %s9, 0
    %p85 = por %p83, %p84
    %p86 = scmp.ne.s32.totalorder %s78, %s80
    %p87 = scmp.eq.s32.totalorder %s14, 1
    %p88 = por %p86, %p87
    %p89 = scmp.ne.s32.totalorder %s80, %s81
    %p90 = scmp.eq.s32.totalorder %s14, 0
    %p91 = por %p89, %p90
    %p92 = scmp.ne.s32.totalorder %s80, %s81
    %p93 = scmp.eq.s32.totalorder %s15, 1
    %p94 = por %p92, %p93
    %p96 = scmp.ne.s32.totalorder %s81, %s95
    %p97 = scmp.eq.s32.totalorder %s15, 0
    %p98 = por %p96, %p97
    %s99 = ssub.s32 %s16, %s28
    %s100 = ssub.s32 %s17, %s24
    %s101 = sor.u32 %s99, %s100
    %p102 = scmp.eq.s32.totalorder %s101, 0
    %s104 = sadd.s32 %s103, 1
    %s105 = scalar_select %p102, %s103, %s104
    %p108 = pneg %p102
    %p109 = scmp.eq.s32.totalorder %s9, 1
    %p110 = por %p108, %p109
    %p111 = scmp.ne.s32.totalorder %s103, %s106
    %p112 = scmp.eq.s32.totalorder %s9, 0
    %p113 = por %p111, %p112
    %p114 = scmp.ne.s32.totalorder %s103, %s106
    %p115 = scmp.eq.s32.totalorder %s14, 1
    %p116 = por %p114, %p115
    %p117 = scmp.ne.s32.totalorder %s106, %s107
    %p118 = scmp.eq.s32.totalorder %s14, 0
    %p119 = por %p117, %p118
    %p120 = scmp.ne.s32.totalorder %s106, %s107
    %p121 = scmp.eq.s32.totalorder %s15, 1
    %p122 = por %p120, %p121
    %p124 = scmp.ne.s32.totalorder %s107, %s123
    %p125 = scmp.eq.s32.totalorder %s15, 0
    %p126 = por %p124, %p125
    %p127 = scmp.le.s32.totalorder 1, %s9
    %p128 = scmp.lt.s32.totalorder %s9, 3
    %p129 = pnand %p127, %p128
    %p130 = pneg %p129
    // Predicated region
    $region9: #{conv_block_forward.5} parent=5 // pred_check
      _
    $region10: #{conv_block_forward.5} parent=5 // pred_check_branch
      %132 = sbr.rel (%p129) target = $region12
    $region11: #{conv_block_forward.5} parent=5 // pred_region
      %s133 = ssub.s32 %s9, 1
      // Predicated region
      $region13: #{conv_block_forward.5} parent=11 // pred_check
        %p134 = pneg %p70
      $region14: #{conv_block_forward.5} parent=11 // pred_check_branch
        %136 = sbr.rel (%p134) target = $region16
      $region15: #{conv_block_forward.5} parent=11 // pred_region
        _
      $region16: #{conv_block_forward.5} parent=11 // pred_fallthru
        _
      // Predicated region
      $region17: #{conv_block_forward.5} parent=11 // pred_check
        %p137 = pneg %p91
      $region18: #{conv_block_forward.5} parent=11 // pred_check_branch
        %139 = sbr.rel (%p137) target = $region20
      $region19: #{conv_block_forward.5} parent=11 // pred_region
        _
      $region20: #{conv_block_forward.5} parent=11 // pred_fallthru
        _
    $region12: #{conv_block_forward.5} parent=5 // pred_fallthru
      _
    %p140 = scmp.lt.s32.totalorder %s9, 2
    // Predicated region
    $region21: #{conv_block_forward.5} parent=5 // pred_check
      %p141 = pneg %p140
    $region22: #{conv_block_forward.5} parent=5 // pred_check_branch
      %143 = sbr.rel (%p141) target = $region24
    $region23: #{conv_block_forward.5} parent=5 // pred_region
      // Predicated region
      $region25: #{conv_block_forward.5} parent=23 // pred_check
        %p144 = pneg %p43
      $region26: #{conv_block_forward.5} parent=23 // pred_check_branch
        %146 = sbr.rel (%p144) target = $region28
      $region27: #{conv_block_forward.5} parent=23 // pred_region
        %s147 = smul.u32 16, %s17
        %p148 = scmp.lt.s32.totalorder %s16, 1
        %s149 = scalar_select %p148, %s16, 1
        %p150 = scmp.lt.s32.totalorder %s147, 15
        %s151 = scalar_select %p150, %s147, 15
        %s152 = smul.addr %s151, 2
        %s153 = smul.addr %s149, 32
        %s154 = sadd.s32 %s152, %s153
        %s155 = smul.addr %s154, 8
        %s156 = scalar_lea.vmem %s0, %s155
        %s157 = smul.u32 16, %s17
      $region28: #{conv_block_forward.5} parent=23 // pred_fallthru
        _
    $region24: #{conv_block_forward.5} parent=5 // pred_fallthru
      _
    %p158 = scmp.le.s32.totalorder 1, %s9
    %p159 = scmp.lt.s32.totalorder %s9, 3
    %p160 = pnand %p158, %p159
    %p161 = pneg %p160
    // Predicated region
    $region29: #{conv_block_forward.5} parent=5 // pred_check
      _
    $region30: #{conv_block_forward.5} parent=5 // pred_check_branch
      %163 = sbr.rel (%p160) target = $region32
    $region31: #{conv_block_forward.5} parent=5 // pred_region
      %s164 = ssub.s32 %s9, 1
      %s165 = smul.u32 16, %s19
      %p166 = scmp.lt.s32.totalorder %s18, 1
      %s167 = scalar_select %p166, %s18, 1
      %p168 = scmp.lt.s32.totalorder %s165, 15
      %s169 = scalar_select %p168, %s165, 15
      %s170 = smul.addr %s169, 2
      %s171 = smul.addr %s167, 32
      %s172 = sadd.s32 %s170, %s171
      %s173 = smul.addr %s172, 8
      %s174 = scalar_lea.vmem %s0, %s173
      %p175 = pneg %p49
      %p176 = pneg %p46
      %p177 = pneg %p70
      %p178 = pneg %p67
      %p179 = pneg %p91
      %p180 = pneg %p88
      %p181 = pneg %p119
      %p182 = pneg %p116
      %s183 = smul.u32 16, %s19
      %p184 = scmp.lt.s32.totalorder %s18, 1
      %s185 = scalar_select %p184, %s18, 1
      %p186 = scmp.lt.s32.totalorder %s183, 15
      %s187 = scalar_select %p186, %s183, 15
      %s188 = smul.addr %s187, 2
      %s189 = smul.addr %s185, 32
      %s190 = sadd.s32 %s188, %s189
      %s191 = smul.addr %s190, 4
      %s192 = scalar_lea.vmem %s3, %s191
      %s193 = smul.u32 16, %s19
      %p194 = scmp.lt.s32.totalorder %s18, 1
      %s195 = scalar_select %p194, %s18, 1
      %p196 = scmp.lt.s32.totalorder %s193, 15
      %s197 = scalar_select %p196, %s193, 15
      %s198 = smul.addr %s197, 2
      %s199 = smul.addr %s195, 32
      %s200 = sadd.s32 %s198, %s199
      %s201 = smul.addr %s200, 8
      %s202 = scalar_lea.vmem %s0, %s201
      %s203 = smul.u32 16, %s19
      %s204 = smul.u32 16, %s19
      %p205 = scmp.lt.s32.totalorder %s18, 1
      %s206 = scalar_select %p205, %s18, 1
      %p207 = scmp.lt.s32.totalorder %s204, 15
      %s208 = scalar_select %p207, %s204, 15
      %s209 = smul.addr %s208, 2
      %s210 = smul.addr %s206, 32
      %s211 = sadd.s32 %s209, %s210
      %s212 = smul.addr %s211, 4
      %s213 = scalar_lea.vmem %s3, %s212
      %s214 = smul.u32 16, %s19
      %v215 = vld [vmem:[%s202] sm:$0xff]
      %v216 = vld [vmem:[%s202 + $0x8] sm:$0xff]
      %v217 = vld [vmem:[%s202 + $0x10] sm:$0xff]
      %v218 = vld [vmem:[%s202 + $0x18] sm:$0xff]
      %v219 = vld [vmem:[%s202 + $0x20] sm:$0xff]
      %v220 = vld [vmem:[%s202 + $0x28] sm:$0xff]
      %v221 = vld [vmem:[%s202 + $0x30] sm:$0xff]
      %v222 = vld [vmem:[%s202 + $0x38] sm:$0xff]
      %v223 = vld [vmem:[%s202 + $0x40] sm:$0xff]
      %v224 = vld [vmem:[%s202 + $0x48] sm:$0xff]
      %v225 = vld [vmem:[%s202 + $0x50] sm:$0xff]
      %v226 = vld [vmem:[%s202 + $0x58] sm:$0xff]
      %v227 = vld [vmem:[%s202 + $0x60] sm:$0xff]
      %v228 = vld [vmem:[%s202 + $0x68] sm:$0xff]
      %v229 = vld [vmem:[%s202 + $0x70] sm:$0xff]
      %v230 = vld [vmem:[%s202 + $0x78] sm:$0xff]
      %v231 = vld [vmem:[%s202 + $0x80] sm:$0xff]
      %v232 = vld [vmem:[%s202 + $0x88] sm:$0xff]
      %v233 = vld [vmem:[%s202 + $0x90] sm:$0xff]
      %v234 = vld [vmem:[%s202 + $0x98] sm:$0xff]
      %v235 = vld [vmem:[%s202 + $0xa0] sm:$0xff]
      %v236 = vld [vmem:[%s202 + $0xa8] sm:$0xff]
      %v237 = vld [vmem:[%s202 + $0xb0] sm:$0xff]
      %v238 = vld [vmem:[%s202 + $0xb8] sm:$0xff]
      %v239 = vld [vmem:[%s202 + $0xc0] sm:$0xff]
      %v240 = vld [vmem:[%s202 + $0xc8] sm:$0xff]
      %v241 = vld [vmem:[%s202 + $0xd0] sm:$0xff]
      %v242 = vld [vmem:[%s202 + $0xd8] sm:$0xff]
      %v243 = vld [vmem:[%s202 + $0xe0] sm:$0xff]
      %v244 = vld [vmem:[%s202 + $0xe8] sm:$0xff]
      %v245 = vld [vmem:[%s202 + $0xf0] sm:$0xff]
      %v246 = vld [vmem:[%s202 + $0xf8] sm:$0xff]
      %v247 = vld [vmem:[%s1] sm:$0x1]
      %v248 = vld [vmem:[%s2] sm:$0x1]
      %v250 = vlaneseq
      %v251 = vshrl.u32 %v250, 7
      %v252 = vsub.s32 0, %v251
      %v253 = vrot.slane %v247, %v252
      %v255 = vmul.f32 %v215, %v253
      %v256 = vmul.f32 %v216, %v253
      %v257 = vmul.f32 %v217, %v253
      %v258 = vmul.f32 %v218, %v253
      %v259 = vmul.f32 %v219, %v253
      %v260 = vmul.f32 %v220, %v253
      %v261 = vmul.f32 %v221, %v253
      %v262 = vmul.f32 %v222, %v253
      %v263 = vmul.f32 %v223, %v253
      %v264 = vmul.f32 %v224, %v253
      %v265 = vmul.f32 %v225, %v253
      %v266 = vmul.f32 %v226, %v253
      %v267 = vmul.f32 %v227, %v253
      %v268 = vmul.f32 %v228, %v253
      %v269 = vmul.f32 %v229, %v253
      %v270 = vmul.f32 %v230, %v253
      %v271 = vmul.f32 %v231, %v253
      %v272 = vmul.f32 %v232, %v253
      %v273 = vmul.f32 %v233, %v253
      %v274 = vmul.f32 %v234, %v253
      %v275 = vmul.f32 %v235, %v253
      %v276 = vmul.f32 %v236, %v253
      %v277 = vmul.f32 %v237, %v253
      %v278 = vmul.f32 %v238, %v253
      %v279 = vmul.f32 %v239, %v253
      %v280 = vmul.f32 %v240, %v253
      %v281 = vmul.f32 %v241, %v253
      %v282 = vmul.f32 %v242, %v253
      %v283 = vmul.f32 %v243, %v253
      %v284 = vmul.f32 %v244, %v253
      %v285 = vmul.f32 %v245, %v253
      %v286 = vmul.f32 %v246, %v253
      %v288 = vlaneseq
      %v289 = vshrl.u32 %v288, 7
      %v290 = vsub.s32 0, %v289
      %v291 = vrot.slane %v248, %v290
      %v293 = vadd.f32 %v255, %v291
      %v294 = vadd.f32 %v256, %v291
      %v295 = vadd.f32 %v257, %v291
      %v296 = vadd.f32 %v258, %v291
      %v297 = vadd.f32 %v259, %v291
      %v298 = vadd.f32 %v260, %v291
      %v299 = vadd.f32 %v261, %v291
      %v300 = vadd.f32 %v262, %v291
      %v301 = vadd.f32 %v263, %v291
      %v302 = vadd.f32 %v264, %v291
      %v303 = vadd.f32 %v265, %v291
      %v304 = vadd.f32 %v266, %v291
      %v305 = vadd.f32 %v267, %v291
      %v306 = vadd.f32 %v268, %v291
      %v307 = vadd.f32 %v269, %v291
      %v308 = vadd.f32 %v270, %v291
      %v309 = vadd.f32 %v271, %v291
      %v310 = vadd.f32 %v272, %v291
      %v311 = vadd.f32 %v273, %v291
      %v312 = vadd.f32 %v274, %v291
      %v313 = vadd.f32 %v275, %v291
      %v314 = vadd.f32 %v276, %v291
      %v315 = vadd.f32 %v277, %v291
      %v316 = vadd.f32 %v278, %v291
      %v317 = vadd.f32 %v279, %v291
      %v318 = vadd.f32 %v280, %v291
      %v319 = vadd.f32 %v281, %v291
      %v320 = vadd.f32 %v282, %v291
      %v321 = vadd.f32 %v283, %v291
      %v322 = vadd.f32 %v284, %v291
      %v323 = vadd.f32 %v285, %v291
      %v324 = vadd.f32 %v286, %v291
      %v325 = vmax.f32 %v293, 0.0
      %v326 = vmax.f32 %v294, 0.0
      %v327 = vmax.f32 %v295, 0.0
      %v328 = vmax.f32 %v296, 0.0
      %v329 = vmax.f32 %v297, 0.0
      %v330 = vmax.f32 %v298, 0.0
      %v331 = vmax.f32 %v299, 0.0
      %v332 = vmax.f32 %v300, 0.0
      %v333 = vmax.f32 %v301, 0.0
      %v334 = vmax.f32 %v302, 0.0
      %v335 = vmax.f32 %v303, 0.0
      %v336 = vmax.f32 %v304, 0.0
      %v337 = vmax.f32 %v305, 0.0
      %v338 = vmax.f32 %v306, 0.0
      %v339 = vmax.f32 %v307, 0.0
      %v340 = vmax.f32 %v308, 0.0
      %v341 = vmax.f32 %v309, 0.0
      %v342 = vmax.f32 %v310, 0.0
      %v343 = vmax.f32 %v311, 0.0
      %v344 = vmax.f32 %v312, 0.0
      %v345 = vmax.f32 %v313, 0.0
      %v346 = vmax.f32 %v314, 0.0
      %v347 = vmax.f32 %v315, 0.0
      %v348 = vmax.f32 %v316, 0.0
      %v349 = vmax.f32 %v317, 0.0
      %v350 = vmax.f32 %v318, 0.0
      %v351 = vmax.f32 %v319, 0.0
      %v352 = vmax.f32 %v320, 0.0
      %v353 = vmax.f32 %v321, 0.0
      %v354 = vmax.f32 %v322, 0.0
      %v355 = vmax.f32 %v323, 0.0
      %v356 = vmax.f32 %v324, 0.0
      %v357 = vpack.c.bf16 %v326, %v325
      %v358 = vpack.c.bf16 %v328, %v327
      %v359 = vpack.c.bf16 %v330, %v329
      %v360 = vpack.c.bf16 %v332, %v331
      %v361 = vpack.c.bf16 %v334, %v333
      %v362 = vpack.c.bf16 %v336, %v335
      %v363 = vpack.c.bf16 %v338, %v337
      %v364 = vpack.c.bf16 %v340, %v339
      %v365 = vpack.c.bf16 %v342, %v341
      %v366 = vpack.c.bf16 %v344, %v343
      %v367 = vpack.c.bf16 %v346, %v345
      %v368 = vpack.c.bf16 %v348, %v347
      %v369 = vpack.c.bf16 %v350, %v349
      %v370 = vpack.c.bf16 %v352, %v351
      %v371 = vpack.c.bf16 %v354, %v353
      %v372 = vpack.c.bf16 %v356, %v355
      %v389 = vunpack.c.l.b16 %v357
      %v390 = vunpack.c.h.b16 %v357
      %v391 = vunpack.c.l.b16 %v358
      %v392 = vunpack.c.h.b16 %v358
      %v393 = vunpack.c.l.b16 %v359
      %v394 = vunpack.c.h.b16 %v359
      %v395 = vunpack.c.l.b16 %v360
      %v396 = vunpack.c.h.b16 %v360
      %v397 = vunpack.c.l.b16 %v361
      %v398 = vunpack.c.h.b16 %v361
      %v399 = vunpack.c.l.b16 %v362
      %v400 = vunpack.c.h.b16 %v362
      %v401 = vunpack.c.l.b16 %v363
      %v402 = vunpack.c.h.b16 %v363
      %v403 = vunpack.c.l.b16 %v364
      %v404 = vunpack.c.h.b16 %v364
      %v405 = vunpack.c.l.b16 %v365
      %v406 = vunpack.c.h.b16 %v365
      %v407 = vunpack.c.l.b16 %v366
      %v408 = vunpack.c.h.b16 %v366
      %v409 = vunpack.c.l.b16 %v367
      %v410 = vunpack.c.h.b16 %v367
      %v411 = vunpack.c.l.b16 %v368
      %v412 = vunpack.c.h.b16 %v368
      %v413 = vunpack.c.l.b16 %v369
      %v414 = vunpack.c.h.b16 %v369
      %v415 = vunpack.c.l.b16 %v370
      %v416 = vunpack.c.h.b16 %v370
      %v417 = vunpack.c.l.b16 %v371
      %v418 = vunpack.c.h.b16 %v371
      %v419 = vunpack.c.l.b16 %v372
      %v420 = vunpack.c.h.b16 %v372
      %v421 = vpack.c.b16 %v389, %v389
      %v422 = vpack.c.b16 %v390, %v390
      %v423 = vpack.c.b16 %v391, %v391
      %v424 = vpack.c.b16 %v392, %v392
      %v425 = vpack.c.b16 %v393, %v393
      %v426 = vpack.c.b16 %v394, %v394
      %v427 = vpack.c.b16 %v395, %v395
      %v428 = vpack.c.b16 %v396, %v396
      %v429 = vpack.c.b16 %v397, %v397
      %v430 = vpack.c.b16 %v398, %v398
      %v431 = vpack.c.b16 %v399, %v399
      %v432 = vpack.c.b16 %v400, %v400
      %v433 = vpack.c.b16 %v401, %v401
      %v434 = vpack.c.b16 %v402, %v402
      %v435 = vpack.c.b16 %v403, %v403
      %v436 = vpack.c.b16 %v404, %v404
      %v437 = vpack.c.b16 %v405, %v405
      %v438 = vpack.c.b16 %v406, %v406
      %v439 = vpack.c.b16 %v407, %v407
      %v440 = vpack.c.b16 %v408, %v408
      %v441 = vpack.c.b16 %v409, %v409
      %v442 = vpack.c.b16 %v410, %v410
      %v443 = vpack.c.b16 %v411, %v411
      %v444 = vpack.c.b16 %v412, %v412
      %v445 = vpack.c.b16 %v413, %v413
      %v446 = vpack.c.b16 %v414, %v414
      %v447 = vpack.c.b16 %v415, %v415
      %v448 = vpack.c.b16 %v416, %v416
      %v449 = vpack.c.b16 %v417, %v417
      %v450 = vpack.c.b16 %v418, %v418
      %v451 = vpack.c.b16 %v419, %v419
      %v452 = vpack.c.b16 %v420, %v420
      %485 = vst [vmem:[%s213] sm:$0xf] %v421
      %486 = vst [vmem:[%s213 + $0x4] sm:$0xf] %v422
      %487 = vst [vmem:[%s213 + $0x8] sm:$0xf] %v423
      %488 = vst [vmem:[%s213 + $0xc] sm:$0xf] %v424
      %489 = vst [vmem:[%s213 + $0x10] sm:$0xf] %v425
      %490 = vst [vmem:[%s213 + $0x14] sm:$0xf] %v426
      %491 = vst [vmem:[%s213 + $0x18] sm:$0xf] %v427
      %492 = vst [vmem:[%s213 + $0x1c] sm:$0xf] %v428
      %493 = vst [vmem:[%s213 + $0x20] sm:$0xf] %v429
      %494 = vst [vmem:[%s213 + $0x24] sm:$0xf] %v430
      %495 = vst [vmem:[%s213 + $0x28] sm:$0xf] %v431
      %496 = vst [vmem:[%s213 + $0x2c] sm:$0xf] %v432
      %497 = vst [vmem:[%s213 + $0x30] sm:$0xf] %v433
      %498 = vst [vmem:[%s213 + $0x34] sm:$0xf] %v434
      %499 = vst [vmem:[%s213 + $0x38] sm:$0xf] %v435
      %500 = vst [vmem:[%s213 + $0x3c] sm:$0xf] %v436
      %501 = vst [vmem:[%s213 + $0x40] sm:$0xf] %v437
      %502 = vst [vmem:[%s213 + $0x44] sm:$0xf] %v438
      %503 = vst [vmem:[%s213 + $0x48] sm:$0xf] %v439
      %504 = vst [vmem:[%s213 + $0x4c] sm:$0xf] %v440
      %505 = vst [vmem:[%s213 + $0x50] sm:$0xf] %v441
      %506 = vst [vmem:[%s213 + $0x54] sm:$0xf] %v442
      %507 = vst [vmem:[%s213 + $0x58] sm:$0xf] %v443
      %508 = vst [vmem:[%s213 + $0x5c] sm:$0xf] %v444
      %509 = vst [vmem:[%s213 + $0x60] sm:$0xf] %v445
      %510 = vst [vmem:[%s213 + $0x64] sm:$0xf] %v446
      %511 = vst [vmem:[%s213 + $0x68] sm:$0xf] %v447
      %512 = vst [vmem:[%s213 + $0x6c] sm:$0xf] %v448
      %513 = vst [vmem:[%s213 + $0x70] sm:$0xf] %v449
      %514 = vst [vmem:[%s213 + $0x74] sm:$0xf] %v450
      %515 = vst [vmem:[%s213 + $0x78] sm:$0xf] %v451
      %516 = vst [vmem:[%s213 + $0x7c] sm:$0xf] %v452
      %s517 = smul.u32 16, %s19
      %p518 = scmp.lt.s32.totalorder %s18, 1
      %s519 = scalar_select %p518, %s18, 1
      %p520 = scmp.lt.s32.totalorder %s517, 15
      %s521 = scalar_select %p520, %s517, 15
      %s522 = smul.addr %s521, 2
      %s523 = smul.addr %s519, 32
      %s524 = sadd.s32 %s522, %s523
      %s525 = smul.addr %s524, 4
      %s526 = scalar_lea.vmem %s3, %s525
      // Predicated region
      $region33: #{conv_block_forward.5} parent=31 // pred_check
        %p527 = pneg %p116
      $region34: #{conv_block_forward.5} parent=31 // pred_check_branch
        %529 = sbr.rel (%p527) target = $region36
      $region35: #{conv_block_forward.5} parent=31 // pred_region
        %s530 = smul.u32 16, %s19
      $region36: #{conv_block_forward.5} parent=31 // pred_fallthru
        _
    $region32: #{conv_block_forward.5} parent=5 // pred_fallthru
      _
    %p531 = scmp.le.s32.totalorder 2, %s9
    // Predicated region
    $region37: #{conv_block_forward.5} parent=5 // pred_check
      %p532 = pneg %p531
    $region38: #{conv_block_forward.5} parent=5 // pred_check_branch
      %534 = sbr.rel (%p532) target = $region40
    $region39: #{conv_block_forward.5} parent=5 // pred_region
      %s535 = ssub.s32 %s9, 2
      // Predicated region
      $region41: #{conv_block_forward.5} parent=39 // pred_check
        %p536 = pneg %p122
      $region42: #{conv_block_forward.5} parent=39 // pred_check_branch
        %538 = sbr.rel (%p536) target = $region44
      $region43: #{conv_block_forward.5} parent=39 // pred_region
        %s539 = smul.u32 16, %s21
        %p540 = scmp.lt.s32.totalorder %s20, 1
        %s541 = scalar_select %p540, %s20, 1
        %p542 = scmp.lt.s32.totalorder %s539, 15
        %s543 = scalar_select %p542, %s539, 15
        %s544 = smul.addr %s543, 2
        %s545 = smul.addr %s541, 32
        %s546 = sadd.s32 %s544, %s545
        %s547 = smul.addr %s546, 4
        %s548 = scalar_lea.vmem %s3, %s547
      $region44: #{conv_block_forward.5} parent=39 // pred_fallthru
        _
    $region40: #{conv_block_forward.5} parent=5 // pred_fallthru
      _
  $region6: #{conv_block_forward.5} parent=0 // loop_footer
    %s13 = sadd.s32 1, %s9
  $region7: #{conv_block_forward.5} parent=0 // loop_footer_branch
    %8 = sbr.rel target = $region3
  $region8: #{conv_block_forward.5} parent=0 // loop_exit
    _

// kernel: conv_block_forward.7
$region0: #{conv_block_forward.7}
  #allocation0 [shape = 'u32[]', space=smem, size = 0x4, offset = 0x4, fixed_abs, tag = 'smem constant byte address 0x4 - core index']
  #allocation1 [shape = 'u32[144,128]{1,0:T(1,128)}', space=vmem, size = 0x12000, scoped, tag = 'internal scratch']
  %s0 = inlined_call_operand.vmem [shape: f32[2,16,16,128], index: 0, kind: input, shape index: {}]
  %s1 = inlined_call_operand.vmem [shape: f32[1,128], index: 1, kind: input, shape index: {}]
  %s2 = inlined_call_operand.vmem [shape: f32[1,128], index: 2, kind: input, shape index: {}]
  %s3 = inlined_call_operand.vmem [shape: f32[2,16,16,128], index: 3, kind: output, shape index: {}]
  %s4 = sld [smem:[#allocation0]]
  $region45: #{conv_block_forward.7} parent=0
    _
  %s6 = ssub.s32 1, %s4
  %s7 = scalar_select 0, %s6, %s4
  loop: start=0, step=1, limit=4
  $region2: #{conv_block_forward.7} parent=0 // loop_pre_header
    _
  $region3: #{conv_block_forward.7} parent=0 // loop_header
    %s9 = sphi 0, %s13
    %p10 = scmp.ge.s32.totalorder %s9, 4
    %s16 = sphi 0, %s28
    %s17 = sphi 0, %s24
    %s18 = sphi 0, %s16
    %s19 = sphi 0, %s17
    %s20 = sphi 0, %s18
    %s21 = sphi 0, %s19
    %s33 = sphi 0, %s35
    %s36 = sphi 0, %s33
    %s37 = sphi 0, %s36
    %s53 = sphi 0, %s37
    %s57 = sphi 0, %s57
    %s59 = sphi 0, %s57
    %s60 = sphi 0, %s59
    %s74 = sphi 0, %s60
    %s78 = sphi 0, %s78
    %s80 = sphi 0, %s78
    %s81 = sphi 0, %s80
    %s95 = sphi 0, %s81
    %s103 = sphi 0, %s105
    %s106 = sphi 0, %s103
    %s107 = sphi 0, %s106
    %s123 = sphi 0, %s107
  $region4: #{conv_block_forward.7} parent=0 // loop_header_branch
    %12 = sbr.rel (%p10) target = $region8
  $region5: #{conv_block_forward.7} parent=0 // loop_body
    %s14 = ssub.s32 %s9, 1
    %s15 = ssub.s32 %s9, 2
    %s22 = sadd.s32 1, %s17
    %p23 = scmp.ge.s32.totalorder %s22, 1
    %s24 = scalar_select %p23, 0, %s22
    %s25 = sadd.s32 1, %s16
    %s26 = scalar_select %p23, %s25, %s16
    %p27 = scmp.ge.s32.totalorder %s26, 2
    %s28 = scalar_select %p27, 0, %s26
    %s29 = ssub.s32 %s16, %s28
    %s30 = ssub.s32 %s17, %s24
    %s31 = sor.u32 %s29, %s30
    %p32 = scmp.eq.s32.totalorder %s31, 0
    %s34 = sadd.s32 %s33, 1
    %s35 = scalar_select %p32, %s33, %s34
    %p38 = pneg %p32
    %p39 = scmp.eq.s32.totalorder %s9, 1
    %p40 = por %p38, %p39
    %p41 = scmp.ne.s32.totalorder %s33, %s36
    %p42 = scmp.eq.s32.totalorder %s9, 0
    %p43 = por %p41, %p42
    %p44 = scmp.ne.s32.totalorder %s33, %s36
    %p45 = scmp.eq.s32.totalorder %s14, 1
    %p46 = por %p44, %p45
    %p47 = scmp.ne.s32.totalorder %s36, %s37
    %p48 = scmp.eq.s32.totalorder %s14, 0
    %p49 = por %p47, %p48
    %p50 = scmp.ne.s32.totalorder %s36, %s37
    %p51 = scmp.eq.s32.totalorder %s15, 1
    %p52 = por %p50, %p51
    %p54 = scmp.ne.s32.totalorder %s37, %s53
    %p55 = scmp.eq.s32.totalorder %s15, 0
    %p56 = por %p54, %p55
    %s58 = sadd.s32 %s57, 1
    %p61 = scmp.eq.s32.totalorder %s9, 1
    %p62 = scmp.ne.s32.totalorder %s57, %s59
    %p63 = scmp.eq.s32.totalorder %s9, 0
    %p64 = por %p62, %p63
    %p65 = scmp.ne.s32.totalorder %s57, %s59
    %p66 = scmp.eq.s32.totalorder %s14, 1
    %p67 = por %p65, %p66
    %p68 = scmp.ne.s32.totalorder %s59, %s60
    %p69 = scmp.eq.s32.totalorder %s14, 0
    %p70 = por %p68, %p69
    %p71 = scmp.ne.s32.totalorder %s59, %s60
    %p72 = scmp.eq.s32.totalorder %s15, 1
    %p73 = por %p71, %p72
    %p75 = scmp.ne.s32.totalorder %s60, %s74
    %p76 = scmp.eq.s32.totalorder %s15, 0
    %p77 = por %p75, %p76
    %s79 = sadd.s32 %s78, 1
    %p82 = scmp.eq.s32.totalorder %s9, 1
    %p83 = scmp.ne.s32.totalorder %s78, %s80
    %p84 = scmp.eq.s32.totalorder %s9, 0
    %p85 = por %p83, %p84
    %p86 = scmp.ne.s32.totalorder %s78, %s80
    %p87 = scmp.eq.s32.totalorder %s14, 1
    %p88 = por %p86, %p87
    %p89 = scmp.ne.s32.totalorder %s80, %s81
    %p90 = scmp.eq.s32.totalorder %s14, 0
    %p91 = por %p89, %p90
    %p92 = scmp.ne.s32.totalorder %s80, %s81
    %p93 = scmp.eq.s32.totalorder %s15, 1
    %p94 = por %p92, %p93
    %p96 = scmp.ne.s32.totalorder %s81, %s95
    %p97 = scmp.eq.s32.totalorder %s15, 0
    %p98 = por %p96, %p97
    %s99 = ssub.s32 %s16, %s28
    %s100 = ssub.s32 %s17, %s24
    %s101 = sor.u32 %s99, %s100
    %p102 = scmp.eq.s32.totalorder %s101, 0
    %s104 = sadd.s32 %s103, 1
    %s105 = scalar_select %p102, %s103, %s104
    %p108 = pneg %p102
    %p109 = scmp.eq.s32.totalorder %s9, 1
    %p110 = por %p108, %p109
    %p111 = scmp.ne.s32.totalorder %s103, %s106
    %p112 = scmp.eq.s32.totalorder %s9, 0
    %p113 = por %p111, %p112
    %p114 = scmp.ne.s32.totalorder %s103, %s106
    %p115 = scmp.eq.s32.totalorder %s14, 1
    %p116 = por %p114, %p115
    %p117 = scmp.ne.s32.totalorder %s106, %s107
    %p118 = scmp.eq.s32.totalorder %s14, 0
    %p119 = por %p117, %p118
    %p120 = scmp.ne.s32.totalorder %s106, %s107
    %p121 = scmp.eq.s32.totalorder %s15, 1
    %p122 = por %p120, %p121
    %p124 = scmp.ne.s32.totalorder %s107, %s123
    %p125 = scmp.eq.s32.totalorder %s15, 0
    %p126 = por %p124, %p125
    %p127 = scmp.le.s32.totalorder 1, %s9
    %p128 = scmp.lt.s32.totalorder %s9, 3
    %p129 = pnand %p127, %p128
    %p130 = pneg %p129
    // Predicated region
    $region9: #{conv_block_forward.7} parent=5 // pred_check
      _
    $region10: #{conv_block_forward.7} parent=5 // pred_check_branch
      %132 = sbr.rel (%p129) target = $region12
    $region11: #{conv_block_forward.7} parent=5 // pred_region
      %s133 = ssub.s32 %s9, 1
      // Predicated region
      $region13: #{conv_block_forward.7} parent=11 // pred_check
        %p134 = pneg %p70
      $region14: #{conv_block_forward.7} parent=11 // pred_check_branch
        %136 = sbr.rel (%p134) target = $region16
      $region15: #{conv_block_forward.7} parent=11 // pred_region
        _
      $region16: #{conv_block_forward.7} parent=11 // pred_fallthru
        _
      // Predicated region
      $region17: #{conv_block_forward.7} parent=11 // pred_check
        %p137 = pneg %p91
      $region18: #{conv_block_forward.7} parent=11 // pred_check_branch
        %139 = sbr.rel (%p137) target = $region20
      $region19: #{conv_block_forward.7} parent=11 // pred_region
        _
      $region20: #{conv_block_forward.7} parent=11 // pred_fallthru
        _
    $region12: #{conv_block_forward.7} parent=5 // pred_fallthru
      _
    %p140 = scmp.lt.s32.totalorder %s9, 2
    // Predicated region
    $region21: #{conv_block_forward.7} parent=5 // pred_check
      %p141 = pneg %p140
    $region22: #{conv_block_forward.7} parent=5 // pred_check_branch
      %143 = sbr.rel (%p141) target = $region24
    $region23: #{conv_block_forward.7} parent=5 // pred_region
      // Predicated region
      $region25: #{conv_block_forward.7} parent=23 // pred_check
        %p144 = pneg %p43
      $region26: #{conv_block_forward.7} parent=23 // pred_check_branch
        %146 = sbr.rel (%p144) target = $region28
      $region27: #{conv_block_forward.7} parent=23 // pred_region
        %s147 = smul.u32 16, %s17
        %p148 = scmp.lt.s32.totalorder %s16, 1
        %s149 = scalar_select %p148, %s16, 1
        %p150 = scmp.lt.s32.totalorder %s147, 15
        %s151 = scalar_select %p150, %s147, 15
        %s152 = smul.addr %s151, 2
        %s153 = smul.addr %s149, 32
        %s154 = sadd.s32 %s152, %s153
        %s155 = smul.addr %s154, 8
        %s156 = scalar_lea.vmem %s0, %s155
        %s157 = smul.u32 16, %s17
      $region28: #{conv_block_forward.7} parent=23 // pred_fallthru
        _
    $region24: #{conv_block_forward.7} parent=5 // pred_fallthru
      _
    %p158 = scmp.le.s32.totalorder 1, %s9
    %p159 = scmp.lt.s32.totalorder %s9, 3
    %p160 = pnand %p158, %p159
    %p161 = pneg %p160
    // Predicated region
    $region29: #{conv_block_forward.7} parent=5 // pred_check
      _
    $region30: #{conv_block_forward.7} parent=5 // pred_check_branch
      %163 = sbr.rel (%p160) target = $region32
    $region31: #{conv_block_forward.7} parent=5 // pred_region
      %s164 = ssub.s32 %s9, 1
      %s165 = smul.u32 16, %s19
      %p166 = scmp.lt.s32.totalorder %s18, 1
      %s167 = scalar_select %p166, %s18, 1
      %p168 = scmp.lt.s32.totalorder %s165, 15
      %s169 = scalar_select %p168, %s165, 15
      %s170 = smul.addr %s169, 2
      %s171 = smul.addr %s167, 32
      %s172 = sadd.s32 %s170, %s171
      %s173 = smul.addr %s172, 8
      %s174 = scalar_lea.vmem %s0, %s173
      %p175 = pneg %p49
      %p176 = pneg %p46
      %p177 = pneg %p70
      %p178 = pneg %p67
      %p179 = pneg %p91
      %p180 = pneg %p88
      %p181 = pneg %p119
      %p182 = pneg %p116
      %s183 = smul.u32 16, %s19
      %p184 = scmp.lt.s32.totalorder %s18, 1
      %s185 = scalar_select %p184, %s18, 1
      %p186 = scmp.lt.s32.totalorder %s183, 15
      %s187 = scalar_select %p186, %s183, 15
      %s188 = smul.addr %s187, 2
      %s189 = smul.addr %s185, 32
      %s190 = sadd.s32 %s188, %s189
      %s191 = smul.addr %s190, 8
      %s192 = scalar_lea.vmem %s3, %s191
      %s193 = smul.u32 16, %s19
      %p194 = scmp.lt.s32.totalorder %s18, 1
      %s195 = scalar_select %p194, %s18, 1
      %p196 = scmp.lt.s32.totalorder %s193, 15
      %s197 = scalar_select %p196, %s193, 15
      %s198 = smul.addr %s197, 2
      %s199 = smul.addr %s195, 32
      %s200 = sadd.s32 %s198, %s199
      %s201 = smul.addr %s200, 8
      %s202 = scalar_lea.vmem %s0, %s201
      %s203 = smul.u32 16, %s19
      %s204 = smul.u32 16, %s19
      %p205 = scmp.lt.s32.totalorder %s18, 1
      %s206 = scalar_select %p205, %s18, 1
      %p207 = scmp.lt.s32.totalorder %s204, 15
      %s208 = scalar_select %p207, %s204, 15
      %s209 = smul.addr %s208, 2
      %s210 = smul.addr %s206, 32
      %s211 = sadd.s32 %s209, %s210
      %s212 = smul.addr %s211, 8
      %s213 = scalar_lea.vmem %s3, %s212
      %s214 = smul.u32 16, %s19
      %v215 = vld [vmem:[%s202] sm:$0xff]
      %v216 = vld [vmem:[%s202 + $0x8] sm:$0xff]
      %v217 = vld [vmem:[%s202 + $0x10] sm:$0xff]
      %v218 = vld [vmem:[%s202 + $0x18] sm:$0xff]
      %v219 = vld [vmem:[%s202 + $0x20] sm:$0xff]
      %v220 = vld [vmem:[%s202 + $0x28] sm:$0xff]
      %v221 = vld [vmem:[%s202 + $0x30] sm:$0xff]
      %v222 = vld [vmem:[%s202 + $0x38] sm:$0xff]
      %v223 = vld [vmem:[%s202 + $0x40] sm:$0xff]
      %v224 = vld [vmem:[%s202 + $0x48] sm:$0xff]
      %v225 = vld [vmem:[%s202 + $0x50] sm:$0xff]
      %v226 = vld [vmem:[%s202 + $0x58] sm:$0xff]
      %v227 = vld [vmem:[%s202 + $0x60] sm:$0xff]
      %v228 = vld [vmem:[%s202 + $0x68] sm:$0xff]
      %v229 = vld [vmem:[%s202 + $0x70] sm:$0xff]
      %v230 = vld [vmem:[%s202 + $0x78] sm:$0xff]
      %v231 = vld [vmem:[%s202 + $0x80] sm:$0xff]
      %v232 = vld [vmem:[%s202 + $0x88] sm:$0xff]
      %v233 = vld [vmem:[%s202 + $0x90] sm:$0xff]
      %v234 = vld [vmem:[%s202 + $0x98] sm:$0xff]
      %v235 = vld [vmem:[%s202 + $0xa0] sm:$0xff]
      %v236 = vld [vmem:[%s202 + $0xa8] sm:$0xff]
      %v237 = vld [vmem:[%s202 + $0xb0] sm:$0xff]
      %v238 = vld [vmem:[%s202 + $0xb8] sm:$0xff]
      %v239 = vld [vmem:[%s202 + $0xc0] sm:$0xff]
      %v240 = vld [vmem:[%s202 + $0xc8] sm:$0xff]
      %v241 = vld [vmem:[%s202 + $0xd0] sm:$0xff]
      %v242 = vld [vmem:[%s202 + $0xd8] sm:$0xff]
      %v243 = vld [vmem:[%s202 + $0xe0] sm:$0xff]
      %v244 = vld [vmem:[%s202 + $0xe8] sm:$0xff]
      %v245 = vld [vmem:[%s202 + $0xf0] sm:$0xff]
      %v246 = vld [vmem:[%s202 + $0xf8] sm:$0xff]
      %v247 = vld [vmem:[%s1] sm:$0x1]
      %v248 = vld [vmem:[%s2] sm:$0x1]
      %v250 = vlaneseq
      %v251 = vshrl.u32 %v250, 7
      %v252 = vsub.s32 0, %v251
      %v253 = vrot.slane %v247, %v252
      %v255 = vmul.f32 %v215, %v253
      %v256 = vmul.f32 %v216, %v253
      %v257 = vmul.f32 %v217, %v253
      %v258 = vmul.f32 %v218, %v253
      %v259 = vmul.f32 %v219, %v253
      %v260 = vmul.f32 %v220, %v253
      %v261 = vmul.f32 %v221, %v253
      %v262 = vmul.f32 %v222, %v253
      %v263 = vmul.f32 %v223, %v253
      %v264 = vmul.f32 %v224, %v253
      %v265 = vmul.f32 %v225, %v253
      %v266 = vmul.f32 %v226, %v253
      %v267 = vmul.f32 %v227, %v253
      %v268 = vmul.f32 %v228, %v253
      %v269 = vmul.f32 %v229, %v253
      %v270 = vmul.f32 %v230, %v253
      %v271 = vmul.f32 %v231, %v253
      %v272 = vmul.f32 %v232, %v253
      %v273 = vmul.f32 %v233, %v253
      %v274 = vmul.f32 %v234, %v253
      %v275 = vmul.f32 %v235, %v253
      %v276 = vmul.f32 %v236, %v253
      %v277 = vmul.f32 %v237, %v253
      %v278 = vmul.f32 %v238, %v253
      %v279 = vmul.f32 %v239, %v253
      %v280 = vmul.f32 %v240, %v253
      %v281 = vmul.f32 %v241, %v253
      %v282 = vmul.f32 %v242, %v253
      %v283 = vmul.f32 %v243, %v253
      %v284 = vmul.f32 %v244, %v253
      %v285 = vmul.f32 %v245, %v253
      %v286 = vmul.f32 %v246, %v253
      %v288 = vlaneseq
      %v289 = vshrl.u32 %v288, 7
      %v290 = vsub.s32 0, %v289
      %v291 = vrot.slane %v248, %v290
      %v293 = vadd.f32 %v255, %v291
      %v294 = vadd.f32 %v256, %v291
      %v295 = vadd.f32 %v257, %v291
      %v296 = vadd.f32 %v258, %v291
      %v297 = vadd.f32 %v259, %v291
      %v298 = vadd.f32 %v260, %v291
      %v299 = vadd.f32 %v261, %v291
      %v300 = vadd.f32 %v262, %v291
      %v301 = vadd.f32 %v263, %v291
      %v302 = vadd.f32 %v264, %v291
      %v303 = vadd.f32 %v265, %v291
      %v304 = vadd.f32 %v266, %v291
      %v305 = vadd.f32 %v267, %v291
      %v306 = vadd.f32 %v268, %v291
      %v307 = vadd.f32 %v269, %v291
      %v308 = vadd.f32 %v270, %v291
      %v309 = vadd.f32 %v271, %v291
      %v310 = vadd.f32 %v272, %v291
      %v311 = vadd.f32 %v273, %v291
      %v312 = vadd.f32 %v274, %v291
      %v313 = vadd.f32 %v275, %v291
      %v314 = vadd.f32 %v276, %v291
      %v315 = vadd.f32 %v277, %v291
      %v316 = vadd.f32 %v278, %v291
      %v317 = vadd.f32 %v279, %v291
      %v318 = vadd.f32 %v280, %v291
      %v319 = vadd.f32 %v281, %v291
      %v320 = vadd.f32 %v282, %v291
      %v321 = vadd.f32 %v283, %v291
      %v322 = vadd.f32 %v284, %v291
      %v323 = vadd.f32 %v285, %v291
      %v324 = vadd.f32 %v286, %v291
      %v325 = vmax.f32 %v293, 0.0
      %v326 = vmax.f32 %v294, 0.0
      %v327 = vmax.f32 %v295, 0.0
      %v328 = vmax.f32 %v296, 0.0
      %v329 = vmax.f32 %v297, 0.0
      %v330 = vmax.f32 %v298, 0.0
      %v331 = vmax.f32 %v299, 0.0
      %v332 = vmax.f32 %v300, 0.0
      %v333 = vmax.f32 %v301, 0.0
      %v334 = vmax.f32 %v302, 0.0
      %v335 = vmax.f32 %v303, 0.0
      %v336 = vmax.f32 %v304, 0.0
      %v337 = vmax.f32 %v305, 0.0
      %v338 = vmax.f32 %v306, 0.0
      %v339 = vmax.f32 %v307, 0.0
      %v340 = vmax.f32 %v308, 0.0
      %v341 = vmax.f32 %v309, 0.0
      %v342 = vmax.f32 %v310, 0.0
      %v343 = vmax.f32 %v311, 0.0
      %v344 = vmax.f32 %v312, 0.0
      %v345 = vmax.f32 %v313, 0.0
      %v346 = vmax.f32 %v314, 0.0
      %v347 = vmax.f32 %v315, 0.0
      %v348 = vmax.f32 %v316, 0.0
      %v349 = vmax.f32 %v317, 0.0
      %v350 = vmax.f32 %v318, 0.0
      %v351 = vmax.f32 %v319, 0.0
      %v352 = vmax.f32 %v320, 0.0
      %v353 = vmax.f32 %v321, 0.0
      %v354 = vmax.f32 %v322, 0.0
      %v355 = vmax.f32 %v323, 0.0
      %v356 = vmax.f32 %v324, 0.0
      %357 = vst [vmem:[%s213] sm:$0xff] %v325
      %358 = vst [vmem:[%s213 + $0x8] sm:$0xff] %v326
      %359 = vst [vmem:[%s213 + $0x10] sm:$0xff] %v327
      %360 = vst [vmem:[%s213 + $0x18] sm:$0xff] %v328
      %361 = vst [vmem:[%s213 + $0x20] sm:$0xff] %v329
      %362 = vst [vmem:[%s213 + $0x28] sm:$0xff] %v330
      %363 = vst [vmem:[%s213 + $0x30] sm:$0xff] %v331
      %364 = vst [vmem:[%s213 + $0x38] sm:$0xff] %v332
      %365 = vst [vmem:[%s213 + $0x40] sm:$0xff] %v333
      %366 = vst [vmem:[%s213 + $0x48] sm:$0xff] %v334
      %367 = vst [vmem:[%s213 + $0x50] sm:$0xff] %v335
      %368 = vst [vmem:[%s213 + $0x58] sm:$0xff] %v336
      %369 = vst [vmem:[%s213 + $0x60] sm:$0xff] %v337
      %370 = vst [vmem:[%s213 + $0x68] sm:$0xff] %v338
      %371 = vst [vmem:[%s213 + $0x70] sm:$0xff] %v339
      %372 = vst [vmem:[%s213 + $0x78] sm:$0xff] %v340
      %373 = vst [vmem:[%s213 + $0x80] sm:$0xff] %v341
      %374 = vst [vmem:[%s213 + $0x88] sm:$0xff] %v342
      %375 = vst [vmem:[%s213 + $0x90] sm:$0xff] %v343
      %376 = vst [vmem:[%s213 + $0x98] sm:$0xff] %v344
      %377 = vst [vmem:[%s213 + $0xa0] sm:$0xff] %v345
      %378 = vst [vmem:[%s213 + $0xa8] sm:$0xff] %v346
      %379 = vst [vmem:[%s213 + $0xb0] sm:$0xff] %v347
      %380 = vst [vmem:[%s213 + $0xb8] sm:$0xff] %v348
      %381 = vst [vmem:[%s213 + $0xc0] sm:$0xff] %v349
      %382 = vst [vmem:[%s213 + $0xc8] sm:$0xff] %v350
      %383 = vst [vmem:[%s213 + $0xd0] sm:$0xff] %v351
      %384 = vst [vmem:[%s213 + $0xd8] sm:$0xff] %v352
      %385 = vst [vmem:[%s213 + $0xe0] sm:$0xff] %v353
      %386 = vst [vmem:[%s213 + $0xe8] sm:$0xff] %v354
      %387 = vst [vmem:[%s213 + $0xf0] sm:$0xff] %v355
      %388 = vst [vmem:[%s213 + $0xf8] sm:$0xff] %v356
      %s389 = smul.u32 16, %s19
      %p390 = scmp.lt.s32.totalorder %s18, 1
      %s391 = scalar_select %p390, %s18, 1
      %p392 = scmp.lt.s32.totalorder %s389, 15
      %s393 = scalar_select %p392, %s389, 15
      %s394 = smul.addr %s393, 2
      %s395 = smul.addr %s391, 32
      %s396 = sadd.s32 %s394, %s395
      %s397 = smul.addr %s396, 8
      %s398 = scalar_lea.vmem %s3, %s397
      // Predicated region
      $region33: #{conv_block_forward.7} parent=31 // pred_check
        %p399 = pneg %p116
      $region34: #{conv_block_forward.7} parent=31 // pred_check_branch
        %401 = sbr.rel (%p399) target = $region36
      $region35: #{conv_block_forward.7} parent=31 // pred_region
        %s402 = smul.u32 16, %s19
      $region36: #{conv_block_forward.7} parent=31 // pred_fallthru
        _
    $region32: #{conv_block_forward.7} parent=5 // pred_fallthru
      _
    %p403 = scmp.le.s32.totalorder 2, %s9
    // Predicated region
    $region37: #{conv_block_forward.7} parent=5 // pred_check
      %p404 = pneg %p403
    $region38: #{conv_block_forward.7} parent=5 // pred_check_branch
      %406 = sbr.rel (%p404) target = $region40
    $region39: #{conv_block_forward.7} parent=5 // pred_region
      %s407 = ssub.s32 %s9, 2
      // Predicated region
      $region41: #{conv_block_forward.7} parent=39 // pred_check
        %p408 = pneg %p122
      $region42: #{conv_block_forward.7} parent=39 // pred_check_branch
        %410 = sbr.rel (%p408) target = $region44
      $region43: #{conv_block_forward.7} parent=39 // pred_region
        %s411 = smul.u32 16, %s21
        %p412 = scmp.lt.s32.totalorder %s20, 1
        %s413 = scalar_select %p412, %s20, 1
        %p414 = scmp.lt.s32.totalorder %s411, 15
        %s415 = scalar_select %p414, %s411, 15
        %s416 = smul.addr %s415, 2
        %s417 = smul.addr %s413, 32
        %s418 = sadd.s32 %s416, %s417
        %s419 = smul.addr %s418, 8
        %s420 = scalar_lea.vmem %s3, %s419
      $region44: #{conv_block_forward.7} parent=39 // pred_fallthru
        _
    $region40: #{conv_block_forward.7} parent=5 // pred_fallthru
      _
  $region6: #{conv_block_forward.7} parent=0 // loop_footer
    %s13 = sadd.s32 1, %s9
  $region7: #{conv_block_forward.7} parent=0 // loop_footer_branch
    %8 = sbr.rel target = $region3
  $region8: #{conv_block_forward.7} parent=0 // loop_exit
    _

// kernel: conv_block_forward.4
$region0: #{conv_block_forward.4}
  #allocation0 [shape = 'u32[]', space=smem, size = 0x4, offset = 0x4, fixed_abs, tag = 'smem constant byte address 0x4 - core index']
  #allocation1 [shape = 'u32[144,128]{1,0:T(1,128)}', space=vmem, size = 0x12000, scoped, tag = 'internal scratch']
  %s0 = inlined_call_operand.vmem [shape: bf16[2,18,18,128], index: 0, kind: input, shape index: {}]
  %s1 = inlined_call_operand.vmem [shape: bf16[9,128,128], index: 1, kind: input, shape index: {}]
  %s2 = inlined_call_operand.vmem [shape: f32[1,128], index: 2, kind: input, shape index: {}]
  %s3 = inlined_call_operand.vmem [shape: f32[2,16,16,128], index: 3, kind: output, shape index: {0}]
  %s4 = inlined_call_operand.vmem [shape: f32[2,1,1,128], index: 4, kind: output, shape index: {1}]
  %s5 = inlined_call_operand.vmem [shape: f32[2,1,1,128], index: 5, kind: output, shape index: {2}]
  %6 = xla_tuple %s3, %s4, %s5
  %s7 = sld [smem:[#allocation0]]
  $region61: #{conv_block_forward.4} parent=0
    _
  %s9 = ssub.s32 1, %s7
  %s10 = scalar_select 0, %s9, %s7
  loop: start=0, step=1, limit=4
  $region2: #{conv_block_forward.4} parent=0 // loop_pre_header
    _
  $region3: #{conv_block_forward.4} parent=0 // loop_header
    %s12 = sphi 0, %s16
    %p13 = scmp.ge.s32.totalorder %s12, 4
    %s19 = sphi 0, %s31
    %s20 = sphi 0, %s27
    %s21 = sphi 0, %s19
    %s22 = sphi 0, %s20
    %s23 = sphi 0, %s21
    %s24 = sphi 0, %s22
    %s34 = sphi 0, %s36
    %s37 = sphi 0, %s34
    %s38 = sphi 0, %s37
    %s54 = sphi 0, %s38
    %s58 = sphi 0, %s58
    %s60 = sphi 0, %s58
    %s61 = sphi 0, %s60
    %s75 = sphi 0, %s61
    %s79 = sphi 0, %s79
    %s81 = sphi 0, %s79
    %s82 = sphi 0, %s81
    %s96 = sphi 0, %s82
    %s104 = sphi 0, %s106
    %s107 = sphi 0, %s104
    %s108 = sphi 0, %s107
    %s124 = sphi 0, %s108
    %s132 = sphi 0, %s134
    %s135 = sphi 0, %s132
    %s136 = sphi 0, %s135
    %s152 = sphi 0, %s136
    %s160 = sphi 0, %s162
    %s163 = sphi 0, %s160
    %s164 = sphi 0, %s163
    %s180 = sphi 0, %s164
  $region4: #{conv_block_forward.4} parent=0 // loop_header_branch
    %15 = sbr.rel (%p13) target = $region8
  $region5: #{conv_block_forward.4} parent=0 // loop_body
    %s17 = ssub.s32 %s12, 1
    %s18 = ssub.s32 %s12, 2
    %s25 = sadd.s32 1, %s20
    %p26 = scmp.ge.s32.totalorder %s25, 1
    %s27 = scalar_select %p26, 0, %s25
    %s28 = sadd.s32 1, %s19
    %s29 = scalar_select %p26, %s28, %s19
    %p30 = scmp.ge.s32.totalorder %s29, 2
    %s31 = scalar_select %p30, 0, %s29
    %s32 = ssub.s32 %s19, %s31
    %p33 = scmp.eq.s32.totalorder %s32, 0
    %s35 = sadd.s32 %s34, 1
    %s36 = scalar_select %p33, %s34, %s35
    %p39 = pneg %p33
    %p40 = scmp.eq.s32.totalorder %s12, 1
    %p41 = por %p39, %p40
    %p42 = scmp.ne.s32.totalorder %s34, %s37
    %p43 = scmp.eq.s32.totalorder %s12, 0
    %p44 = por %p42, %p43
    %p45 = scmp.ne.s32.totalorder %s34, %s37
    %p46 = scmp.eq.s32.totalorder %s17, 1
    %p47 = por %p45, %p46
    %p48 = scmp.ne.s32.totalorder %s37, %s38
    %p49 = scmp.eq.s32.totalorder %s17, 0
    %p50 = por %p48, %p49
    %p51 = scmp.ne.s32.totalorder %s37, %s38
    %p52 = scmp.eq.s32.totalorder %s18, 1
    %p53 = por %p51, %p52
    %p55 = scmp.ne.s32.totalorder %s38, %s54
    %p56 = scmp.eq.s32.totalorder %s18, 0
    %p57 = por %p55, %p56
    %s59 = sadd.s32 %s58, 1
    %p62 = scmp.eq.s32.totalorder %s12, 1
    %p63 = scmp.ne.s32.totalorder %s58, %s60
    %p64 = scmp.eq.s32.totalorder %s12, 0
    %p65 = por %p63, %p64
    %p66 = scmp.ne.s32.totalorder %s58, %s60
    %p67 = scmp.eq.s32.totalorder %s17, 1
    %p68 = por %p66, %p67
    %p69 = scmp.ne.s32.totalorder %s60, %s61
    %p70 = scmp.eq.s32.totalorder %s17, 0
    %p71 = por %p69, %p70
    %p72 = scmp.ne.s32.totalorder %s60, %s61
    %p73 = scmp.eq.s32.totalorder %s18, 1
    %p74 = por %p72, %p73
    %p76 = scmp.ne.s32.totalorder %s61, %s75
    %p77 = scmp.eq.s32.totalorder %s18, 0
    %p78 = por %p76, %p77
    %s80 = sadd.s32 %s79, 1
    %p83 = scmp.eq.s32.totalorder %s12, 1
    %p84 = scmp.ne.s32.totalorder %s79, %s81
    %p85 = scmp.eq.s32.totalorder %s12, 0
    %p86 = por %p84, %p85
    %p87 = scmp.ne.s32.totalorder %s79, %s81
    %p88 = scmp.eq.s32.totalorder %s17, 1
    %p89 = por %p87, %p88
    %p90 = scmp.ne.s32.totalorder %s81, %s82
    %p91 = scmp.eq.s32.totalorder %s17, 0
    %p92 = por %p90, %p91
    %p93 = scmp.ne.s32.totalorder %s81, %s82
    %p94 = scmp.eq.s32.totalorder %s18, 1
    %p95 = por %p93, %p94
    %p97 = scmp.ne.s32.totalorder %s82, %s96
    %p98 = scmp.eq.s32.totalorder %s18, 0
    %p99 = por %p97, %p98
    %s100 = ssub.s32 %s19, %s31
    %s101 = ssub.s32 %s20, %s27
    %s102 = sor.u32 %s100, %s101
    %p103 = scmp.eq.s32.totalorder %s102, 0
    %s105 = sadd.s32 %s104, 1
    %s106 = scalar_select %p103, %s104, %s105
    %p109 = pneg %p103
    %p110 = scmp.eq.s32.totalorder %s12, 1
    %p111 = por %p109, %p110
    %p112 = scmp.ne.s32.totalorder %s104, %s107
    %p113 = scmp.eq.s32.totalorder %s12, 0
    %p114 = por %p112, %p113
    %p115 = scmp.ne.s32.totalorder %s104, %s107
    %p116 = scmp.eq.s32.totalorder %s17, 1
    %p117 = por %p115, %p116
    %p118 = scmp.ne.s32.totalorder %s107, %s108
    %p119 = scmp.eq.s32.totalorder %s17, 0
    %p120 = por %p118, %p119
    %p121 = scmp.ne.s32.totalorder %s107, %s108
    %p122 = scmp.eq.s32.totalorder %s18, 1
    %p123 = por %p121, %p122
    %p125 = scmp.ne.s32.totalorder %s108, %s124
    %p126 = scmp.eq.s32.totalorder %s18, 0
    %p127 = por %p125, %p126
    %s128 = ssub.s32 %s19, %s31
    %s129 = ssub.s32 %s20, %s27
    %s130 = sor.u32 %s128, %s129
    %p131 = scmp.eq.s32.totalorder %s130, 0
    %s133 = sadd.s32 %s132, 1
    %s134 = scalar_select %p131, %s132, %s133
    %p137 = pneg %p131
    %p138 = scmp.eq.s32.totalorder %s12, 1
    %p139 = por %p137, %p138
    %p140 = scmp.ne.s32.totalorder %s132, %s135
    %p141 = scmp.eq.s32.totalorder %s12, 0
    %p142 = por %p140, %p141
    %p143 = scmp.ne.s32.totalorder %s132, %s135
    %p144 = scmp.eq.s32.totalorder %s17, 1
    %p145 = por %p143, %p144
    %p146 = scmp.ne.s32.totalorder %s135, %s136
    %p147 = scmp.eq.s32.totalorder %s17, 0
    %p148 = por %p146, %p147
    %p149 = scmp.ne.s32.totalorder %s135, %s136
    %p150 = scmp.eq.s32.totalorder %s18, 1
    %p151 = por %p149, %p150
    %p153 = scmp.ne.s32.totalorder %s136, %s152
    %p154 = scmp.eq.s32.totalorder %s18, 0
    %p155 = por %p153, %p154
    %s156 = ssub.s32 %s19, %s31
    %s157 = ssub.s32 %s20, %s27
    %s158 = sor.u32 %s156, %s157
    %p159 = scmp.eq.s32.totalorder %s158, 0
    %s161 = sadd.s32 %s160, 1
    %s162 = scalar_select %p159, %s160, %s161
    %p165 = pneg %p159
    %p166 = scmp.eq.s32.totalorder %s12, 1
    %p167 = por %p165, %p166
    %p168 = scmp.ne.s32.totalorder %s160, %s163
    %p169 = scmp.eq.s32.totalorder %s12, 0
    %p170 = por %p168, %p169
    %p171 = scmp.ne.s32.totalorder %s160, %s163
    %p172 = scmp.eq.s32.totalorder %s17, 1
    %p173 = por %p171, %p172
    %p174 = scmp.ne.s32.totalorder %s163, %s164
    %p175 = scmp.eq.s32.totalorder %s17, 0
    %p176 = por %p174, %p175
    %p177 = scmp.ne.s32.totalorder %s163, %s164
    %p178 = scmp.eq.s32.totalorder %s18, 1
    %p179 = por %p177, %p178
    %p181 = scmp.ne.s32.totalorder %s164, %s180
    %p182 = scmp.eq.s32.totalorder %s18, 0
    %p183 = por %p181, %p182
    %p184 = scmp.le.s32.totalorder 1, %s12
    %p185 = scmp.lt.s32.totalorder %s12, 3
    %p186 = pnand %p184, %p185
    %p187 = pneg %p186
    // Predicated region
    $region9: #{conv_block_forward.4} parent=5 // pred_check
      _
    $region10: #{conv_block_forward.4} parent=5 // pred_check_branch
      %189 = sbr.rel (%p186) target = $region12
    $region11: #{conv_block_forward.4} parent=5 // pred_region
      %s190 = ssub.s32 %s12, 1
      // Predicated region
      $region13: #{conv_block_forward.4} parent=11 // pred_check
        %p191 = pneg %p71
      $region14: #{conv_block_forward.4} parent=11 // pred_check_branch
        %193 = sbr.rel (%p191) target = $region16
      $region15: #{conv_block_forward.4} parent=11 // pred_region
        _
      $region16: #{conv_block_forward.4} parent=11 // pred_fallthru
        _
      // Predicated region
      $region17: #{conv_block_forward.4} parent=11 // pred_check
        %p194 = pneg %p92
      $region18: #{conv_block_forward.4} parent=11 // pred_check_branch
        %196 = sbr.rel (%p194) target = $region20
      $region19: #{conv_block_forward.4} parent=11 // pred_region
        _
      $region20: #{conv_block_forward.4} parent=11 // pred_fallthru
        _
    $region12: #{conv_block_forward.4} parent=5 // pred_fallthru
      _
    %p197 = scmp.lt.s32.totalorder %s12, 2
    // Predicated region
    $region21: #{conv_block_forward.4} parent=5 // pred_check
      %p198 = pneg %p197
    $region22: #{conv_block_forward.4} parent=5 // pred_check_branch
      %200 = sbr.rel (%p198) target = $region24
    $region23: #{conv_block_forward.4} parent=5 // pred_region
      // Predicated region
      $region25: #{conv_block_forward.4} parent=23 // pred_check
        %p201 = pneg %p44
      $region26: #{conv_block_forward.4} parent=23 // pred_check_branch
        %203 = sbr.rel (%p201) target = $region28
      $region27: #{conv_block_forward.4} parent=23 // pred_region
        %p204 = scmp.lt.s32.totalorder %s19, 1
        %s205 = scalar_select %p204, %s19, 1
        %s206 = smul.addr %s205, 54
        %s207 = smul.addr %s206, 4
        %s208 = scalar_lea.vmem %s0, %s207
      $region28: #{conv_block_forward.4} parent=23 // pred_fallthru
        _
    $region24: #{conv_block_forward.4} parent=5 // pred_fallthru
      _
    %p209 = scmp.le.s32.totalorder 1, %s12
    %p210 = scmp.lt.s32.totalorder %s12, 3
    %p211 = pnand %p209, %p210
    %p212 = pneg %p211
    // Predicated region
    $region29: #{conv_block_forward.4} parent=5 // pred_check
      _
    $region30: #{conv_block_forward.4} parent=5 // pred_check_branch
      %214 = sbr.rel (%p211) target = $region32
    $region31: #{conv_block_forward.4} parent=5 // pred_region
      %s215 = ssub.s32 %s12, 1
      %p216 = scmp.lt.s32.totalorder %s21, 1
      %s217 = scalar_select %p216, %s21, 1
      %s218 = smul.addr %s217, 54
      %s219 = smul.addr %s218, 4
      %s220 = scalar_lea.vmem %s0, %s219
      %p221 = pneg %p50
      %p222 = pneg %p47
      %p223 = pneg %p71
      %p224 = pneg %p68
      %p225 = pneg %p92
      %p226 = pneg %p89
      %p227 = pneg %p120
      %p228 = pneg %p117
      %s229 = smul.u32 16, %s22
      %p230 = scmp.lt.s32.totalorder %s21, 1
      %s231 = scalar_select %p230, %s21, 1
      %p232 = scmp.lt.s32.totalorder %s229, 15
      %s233 = scalar_select %p232, %s229, 15
      %s234 = smul.addr %s233, 2
      %s235 = smul.addr %s231, 32
      %s236 = sadd.s32 %s234, %s235
      %s237 = smul.addr %s236, 8
      %s238 = scalar_lea.vmem %s3, %s237
      %p239 = pneg %p148
      %p240 = pneg %p145
      %p241 = scmp.lt.s32.totalorder %s21, 1
      %s242 = scalar_select %p241, %s21, 1
      %p243 = scmp.lt.s32.totalorder %s22, 0
      %s244 = scalar_select %p243, %s22, 0
      %s245 = sadd.s32 %s244, %s242
      %s246 = scalar_lea.vmem %s4, %s245
      %p247 = pneg %p176
      %p248 = pneg %p173
      %p249 = scmp.lt.s32.totalorder %s21, 1
      %s250 = scalar_select %p249, %s21, 1
      %p251 = scmp.lt.s32.totalorder %s22, 0
      %s252 = scalar_select %p251, %s22, 0
      %s253 = sadd.s32 %s252, %s250
      %s254 = scalar_lea.vmem %s5, %s253
      %p255 = scmp.lt.s32.totalorder %s21, 1
      %s256 = scalar_select %p255, %s21, 1
      %s257 = smul.addr %s256, 54
      %s258 = smul.addr %s257, 4
      %s259 = scalar_lea.vmem %s0, %s258
      %s260 = smul.u32 16, %s22
      %p261 = scmp.lt.s32.totalorder %s21, 1
      %s262 = scalar_select %p261, %s21, 1
      %p263 = scmp.lt.s32.totalorder %s260, 15
      %s264 = scalar_select %p263, %s260, 15
      %s265 = smul.addr %s264, 2
      %s266 = smul.addr %s262, 32
      %s267 = sadd.s32 %s265, %s266
      %s268 = smul.addr %s267, 8
      %s269 = scalar_lea.vmem %s3, %s268
      %s270 = smul.u32 16, %s22
      %p271 = scmp.lt.s32.totalorder %s21, 1
      %s272 = scalar_select %p271, %s21, 1
      %p273 = scmp.lt.s32.totalorder %s22, 0
      %s274 = scalar_select %p273, %s22, 0
      %s275 = sadd.s32 %s274, %s272
      %s276 = scalar_lea.vmem %s4, %s275
      %p277 = scmp.lt.s32.totalorder %s21, 1
      %s278 = scalar_select %p277, %s21, 1
      %p279 = scmp.lt.s32.totalorder %s22, 0
      %s280 = scalar_select %p279, %s22, 0
      %s281 = sadd.s32 %s280, %s278
      %s282 = scalar_lea.vmem %s5, %s281
      %s284 = smul.u32 %s22, 16
      %s285 = smul.u32 %s284, 3
      %s286 = smul.addr %s285, 4
      %s287 = scalar_lea.vmem %s259, %s286
      %v288 = vld [vmem:[%s287] sm:$0xf]
      %v289 = vld [vmem:[%s287 + $0x4] sm:$0xf]
      %v290 = vld [vmem:[%s287 + $0xc] sm:$0xf]
      %v291 = vld [vmem:[%s287 + $0x10] sm:$0xf]
      %v292 = vld [vmem:[%s287 + $0x18] sm:$0xf]
      %v293 = vld [vmem:[%s287 + $0x1c] sm:$0xf]
      %v294 = vld [vmem:[%s287 + $0x24] sm:$0xf]
      %v295 = vld [vmem:[%s287 + $0x28] sm:$0xf]
      %v296 = vld [vmem:[%s287 + $0x30] sm:$0xf]
      %v297 = vld [vmem:[%s287 + $0x34] sm:$0xf]
      %v298 = vld [vmem:[%s287 + $0x3c] sm:$0xf]
      %v299 = vld [vmem:[%s287 + $0x40] sm:$0xf]
      %v300 = vld [vmem:[%s287 + $0x48] sm:$0xf]
      %v301 = vld [vmem:[%s287 + $0x4c] sm:$0xf]
      %v302 = vld [vmem:[%s287 + $0x54] sm:$0xf]
      %v303 = vld [vmem:[%s287 + $0x58] sm:$0xf]
      %v304 = vld [vmem:[%s287 + $0x60] sm:$0xf]
      %v305 = vld [vmem:[%s287 + $0x64] sm:$0xf]
      %v306 = vld [vmem:[%s287 + $0x6c] sm:$0xf]
      %v307 = vld [vmem:[%s287 + $0x70] sm:$0xf]
      %v308 = vld [vmem:[%s287 + $0x78] sm:$0xf]
      %v309 = vld [vmem:[%s287 + $0x7c] sm:$0xf]
      %v310 = vld [vmem:[%s287 + $0x84] sm:$0xf]
      %v311 = vld [vmem:[%s287 + $0x88] sm:$0xf]
      %v312 = vld [vmem:[%s287 + $0x90] sm:$0xf]
      %v313 = vld [vmem:[%s287 + $0x94] sm:$0xf]
      %v314 = vld [vmem:[%s287 + $0x9c] sm:$0xf]
      %v315 = vld [vmem:[%s287 + $0xa0] sm:$0xf]
      %v316 = vld [vmem:[%s287 + $0xa8] sm:$0xf]
      %v317 = vld [vmem:[%s287 + $0xac] sm:$0xf]
      %v318 = vld [vmem:[%s287 + $0xb4] sm:$0xf]
      %v319 = vld [vmem:[%s287 + $0xb8] sm:$0xf]
      %v320 = vld [vmem:[%s1] sm:$0xf]
      %v321 = vld [vmem:[%s1 + $0x4] sm:$0xf]
      %v322 = vld [vmem:[%s1 + $0x8] sm:$0xf]
      %v323 = vld [vmem:[%s1 + $0xc] sm:$0xf]
      %v324 = vld [vmem:[%s1 + $0x10] sm:$0xf]
      %v325 = vld [vmem:[%s1 + $0x14] sm:$0xf]
      %v326 = vld [vmem:[%s1 + $0x18] sm:$0xf]
      %v327 = vld [vmem:[%s1 + $0x1c] sm:$0xf]
      %v328 = vld [vmem:[%s1 + $0x20] sm:$0xf]
      %v329 = vld [vmem:[%s1 + $0x24] sm:$0xf]
      %v330 = vld [vmem:[%s1 + $0x28] sm:$0xf]
      %v331 = vld [vmem:[%s1 + $0x2c] sm:$0xf]
      %v332 = vld [vmem:[%s1 + $0x30] sm:$0xf]
      %v333 = vld [vmem:[%s1 + $0x34] sm:$0xf]
      %v334 = vld [vmem:[%s1 + $0x38] sm:$0xf]
      %v335 = vld [vmem:[%s1 + $0x3c] sm:$0xf]
      %v336 = vld [vmem:[%s287 + $0x8] sm:$0x1]
      %v337 = vld [vmem:[%s287 + $0x14] sm:$0x1]
      %v338 = vld [vmem:[%s287 + $0x20] sm:$0x1]
      %v339 = vld [vmem:[%s287 + $0x2c] sm:$0x1]
      %v340 = vld [vmem:[%s287 + $0x38] sm:$0x1]
      %v341 = vld [vmem:[%s287 + $0x44] sm:$0x1]
      %v342 = vld [vmem:[%s287 + $0x50] sm:$0x1]
      %v343 = vld [vmem:[%s287 + $0x5c] sm:$0x1]
      %v344 = vld [vmem:[%s287 + $0x68] sm:$0x1]
      %v345 = vld [vmem:[%s287 + $0x74] sm:$0x1]
      %v346 = vld [vmem:[%s287 + $0x80] sm:$0x1]
      %v347 = vld [vmem:[%s287 + $0x8c] sm:$0x1]
      %v348 = vld [vmem:[%s287 + $0x98] sm:$0x1]
      %v349 = vld [vmem:[%s287 + $0xa4] sm:$0x1]
      %v350 = vld [vmem:[%s287 + $0xb0] sm:$0x1]
      %v351 = vld [vmem:[%s287 + $0xbc] sm:$0x1]
      %vm352 = vsmask.f32 3328
      %vm353 = vsmask.f32 7440
      %vm354 = vmor %vm352, %vm353
      %v356 = vshrl.u32 %v288, 16
      %v358 = vrot.slane %v356, 4
      %v359 = vshll.u32 %v288, 16
      %v361 = vrot.slane %v359, 5
      %v362 = vor.u32 %v358, %v361
      %v363 = vrot.slane %v362, 4
      %v365 = vshll.u32 %v289, 16
      %v367 = vrot.slane %v365, 5
      %v368 = vsel %vm354, %v363, %v367
      %v369 = vshrl.u32 %v289, 16
      %v371 = vrot.slane %v369, 4
      %v372 = vor.u32 %v371, %v367
      %v373 = vrot.slane %v372, 4
      %v375 = vshll.u32 %v336, 16
      %v377 = vrot.slane %v375, 5
      %v378 = vsel %vm354, %v373, %v377
      %v380 = vshrl.u32 %v290, 16
      %v382 = vrot.slane %v380, 4
      %v383 = vshll.u32 %v290, 16
      %v385 = vrot.slane %v383, 5
      %v386 = vor.u32 %v382, %v385
      %v387 = vrot.slane %v386, 4
      %v389 = vshll.u32 %v291, 16
      %v391 = vrot.slane %v389, 5
      %v392 = vsel %vm354, %v387, %v391
      %v393 = vshrl.u32 %v291, 16
      %v395 = vrot.slane %v393, 4
      %v396 = vor.u32 %v395, %v391
      %v397 = vrot.slane %v396, 4
      %v399 = vshll.u32 %v337, 16
      %v401 = vrot.slane %v399, 5
      %v402 = vsel %vm354, %v397, %v401
      %v404 = vshrl.u32 %v292, 16
      %v406 = vrot.slane %v404, 4
      %v407 = vshll.u32 %v292, 16
      %v409 = vrot.slane %v407, 5
      %v410 = vor.u32 %v406, %v409
      %v411 = vrot.slane %v410, 4
      %v413 = vshll.u32 %v293, 16
      %v415 = vrot.slane %v413, 5
      %v416 = vsel %vm354, %v411, %v415
      %v417 = vshrl.u32 %v293, 16
      %v419 = vrot.slane %v417, 4
      %v420 = vor.u32 %v419, %v415
      %v421 = vrot.slane %v420, 4
      %v423 = vshll.u32 %v338, 16
      %v425 = vrot.slane %v423, 5
      %v426 = vsel %vm354, %v421, %v425
      %v428 = vshrl.u32 %v294, 16
      %v430 = vrot.slane %v428, 4
      %v431 = vshll.u32 %v294, 16
      %v433 = vrot.slane %v431, 5
      %v434 = vor.u32 %v430, %v433
      %v435 = vrot.slane %v434, 4
      %v437 = vshll.u32 %v295, 16
      %v439 = vrot.slane %v437, 5
      %v440 = vsel %vm354, %v435, %v439
      %v441 = vshrl.u32 %v295, 16
      %v443 = vrot.slane %v441, 4
      %v444 = vor.u32 %v443, %v439
      %v445 = vrot.slane %v444, 4
      %v447 = vshll.u32 %v339, 16
      %v449 = vrot.slane %v447, 5
      %v450 = vsel %vm354, %v445, %v449
      %v452 = vshrl.u32 %v296, 16
      %v454 = vrot.slane %v452, 4
      %v455 = vshll.u32 %v296, 16
      %v457 = vrot.slane %v455, 5
      %v458 = vor.u32 %v454, %v457
      %v459 = vrot.slane %v458, 4
      %v461 = vshll.u32 %v297, 16
      %v463 = vrot.slane %v461, 5
      %v464 = vsel %vm354, %v459, %v463
      %v465 = vshrl.u32 %v297, 16
      %v467 = vrot.slane %v465, 4
      %v468 = vor.u32 %v467, %v463
      %v469 = vrot.slane %v468, 4
      %v471 = vshll.u32 %v340, 16
      %v473 = vrot.slane %v471, 5
      %v474 = vsel %vm354, %v469, %v473
      %v476 = vshrl.u32 %v298, 16
      %v478 = vrot.slane %v476, 4
      %v479 = vshll.u32 %v298, 16
      %v481 = vrot.slane %v479, 5
      %v482 = vor.u32 %v478, %v481
      %v483 = vrot.slane %v482, 4
      %v485 = vshll.u32 %v299, 16
      %v487 = vrot.slane %v485, 5
      %v488 = vsel %vm354, %v483, %v487
      %v489 = vshrl.u32 %v299, 16
      %v491 = vrot.slane %v489, 4
      %v492 = vor.u32 %v491, %v487
      %v493 = vrot.slane %v492, 4
      %v495 = vshll.u32 %v341, 16
      %v497 = vrot.slane %v495, 5
      %v498 = vsel %vm354, %v493, %v497
      %v500 = vshrl.u32 %v300, 16
      %v502 = vrot.slane %v500, 4
      %v503 = vshll.u32 %v300, 16
      %v505 = vrot.slane %v503, 5
      %v506 = vor.u32 %v502, %v505
      %v507 = vrot.slane %v506, 4
      %v509 = vshll.u32 %v301, 16
      %v511 = vrot.slane %v509, 5
      %v512 = vsel %vm354, %v507, %v511
      %v513 = vshrl.u32 %v301, 16
      %v515 = vrot.slane %v513, 4
      %v516 = vor.u32 %v515, %v511
      %v517 = vrot.slane %v516, 4
      %v519 = vshll.u32 %v342, 16
      %v521 = vrot.slane %v519, 5
      %v522 = vsel %vm354, %v517, %v521
      %v524 = vshrl.u32 %v302, 16
      %v526 = vrot.slane %v524, 4
      %v527 = vshll.u32 %v302, 16
      %v529 = vrot.slane %v527, 5
      %v530 = vor.u32 %v526, %v529
      %v531 = vrot.slane %v530, 4
      %v533 = vshll.u32 %v303, 16
      %v535 = vrot.slane %v533, 5
      %v536 = vsel %vm354, %v531, %v535
      %v537 = vshrl.u32 %v303, 16
      %v539 = vrot.slane %v537, 4
      %v540 = vor.u32 %v539, %v535
      %v541 = vrot.slane %v540, 4
      %v543 = vshll.u32 %v343, 16
      %v545 = vrot.slane %v543, 5
      %v546 = vsel %vm354, %v541, %v545
      %v548 = vshrl.u32 %v304, 16
      %v550 = vrot.slane %v548, 4
      %v551 = vshll.u32 %v304, 16
      %v553 = vrot.slane %v551, 5
      %v554 = vor.u32 %v550, %v553
      %v555 = vrot.slane %v554, 4
      %v557 = vshll.u32 %v305, 16
      %v559 = vrot.slane %v557, 5
      %v560 = vsel %vm354, %v555, %v559
      %v561 = vshrl.u32 %v305, 16
      %v563 = vrot.slane %v561, 4
      %v564 = vor.u32 %v563, %v559
      %v565 = vrot.slane %v564, 4
      %v567 = vshll.u32 %v344, 16
      %v569 = vrot.slane %v567, 5
      %v570 = vsel %vm354, %v565, %v569
      %v572 = vshrl.u32 %v306, 16
      %v574 = vrot.slane %v572, 4
      %v575 = vshll.u32 %v306, 16
      %v577 = vrot.slane %v575, 5
      %v578 = vor.u32 %v574, %v577
      %v579 = vrot.slane %v578, 4
      %v581 = vshll.u32 %v307, 16
      %v583 = vrot.slane %v581, 5
      %v584 = vsel %vm354, %v579, %v583
      %v585 = vshrl.u32 %v307, 16
      %v587 = vrot.slane %v585, 4
      %v588 = vor.u32 %v587, %v583
      %v589 = vrot.slane %v588, 4
      %v591 = vshll.u32 %v345, 16
      %v593 = vrot.slane %v591, 5
      %v594 = vsel %vm354, %v589, %v593
      %v596 = vshrl.u32 %v308, 16
      %v598 = vrot.slane %v596, 4
      %v599 = vshll.u32 %v308, 16
      %v601 = vrot.slane %v599, 5
      %v602 = vor.u32 %v598, %v601
      %v603 = vrot.slane %v602, 4
      %v605 = vshll.u32 %v309, 16
      %v607 = vrot.slane %v605, 5
      %v608 = vsel %vm354, %v603, %v607
      %v609 = vshrl.u32 %v309, 16
      %v611 = vrot.slane %v609, 4
      %v612 = vor.u32 %v611, %v607
      %v613 = vrot.slane %v612, 4
      %v615 = vshll.u32 %v346, 16
      %v617 = vrot.slane %v615, 5
      %v618 = vsel %vm354, %v613, %v617
      %v620 = vshrl.u32 %v310, 16
      %v622 = vrot.slane %v620, 4
      %v623 = vshll.u32 %v310, 16
      %v625 = vrot.slane %v623, 5
      %v626 = vor.u32 %v622, %v625
      %v627 = vrot.slane %v626, 4
      %v629 = vshll.u32 %v311, 16
      %v631 = vrot.slane %v629, 5
      %v632 = vsel %vm354, %v627, %v631
      %v633 = vshrl.u32 %v311, 16
      %v635 = vrot.slane %v633, 4
      %v636 = vor.u32 %v635, %v631
      %v637 = vrot.slane %v636, 4
      %v639 = vshll.u32 %v347, 16
      %v641 = vrot.slane %v639, 5
      %v642 = vsel %vm354, %v637, %v641
      %v644 = vshrl.u32 %v312, 16
      %v646 = vrot.slane %v644, 4
      %v647 = vshll.u32 %v312, 16
      %v649 = vrot.slane %v647, 5
      %v650 = vor.u32 %v646, %v649
      %v651 = vrot.slane %v650, 4
      %v653 = vshll.u32 %v313, 16
      %v655 = vrot.slane %v653, 5
      %v656 = vsel %vm354, %v651, %v655
      %v657 = vshrl.u32 %v313, 16
      %v659 = vrot.slane %v657, 4
      %v660 = vor.u32 %v659, %v655
      %v661 = vrot.slane %v660, 4
      %v663 = vshll.u32 %v348, 16
      %v665 = vrot.slane %v663, 5
      %v666 = vsel %vm354, %v661, %v665
      %v668 = vshrl.u32 %v314, 16
      %v670 = vrot.slane %v668, 4
      %v671 = vshll.u32 %v314, 16
      %v673 = vrot.slane %v671, 5
      %v674 = vor.u32 %v670, %v673
      %v675 = vrot.slane %v674, 4
      %v677 = vshll.u32 %v315, 16
      %v679 = vrot.slane %v677, 5
      %v680 = vsel %vm354, %v675, %v679
      %v681 = vshrl.u32 %v315, 16
      %v683 = vrot.slane %v681, 4
      %v684 = vor.u32 %v683, %v679
      %v685 = vrot.slane %v684, 4
      %v687 = vshll.u32 %v349, 16
      %v689 = vrot.slane %v687, 5
      %v690 = vsel %vm354, %v685, %v689
      %v692 = vshrl.u32 %v316, 16
      %v694 = vrot.slane %v692, 4
      %v695 = vshll.u32 %v316, 16
      %v697 = vrot.slane %v695, 5
      %v698 = vor.u32 %v694, %v697
      %v699 = vrot.slane %v698, 4
      %v701 = vshll.u32 %v317, 16
      %v703 = vrot.slane %v701, 5
      %v704 = vsel %vm354, %v699, %v703
      %v705 = vshrl.u32 %v317, 16
      %v707 = vrot.slane %v705, 4
      %v708 = vor.u32 %v707, %v703
      %v709 = vrot.slane %v708, 4
      %v711 = vshll.u32 %v350, 16
      %v713 = vrot.slane %v711, 5
      %v714 = vsel %vm354, %v709, %v713
      %v716 = vshrl.u32 %v318, 16
      %v718 = vrot.slane %v716, 4
      %v719 = vshll.u32 %v318, 16
      %v721 = vrot.slane %v719, 5
      %v722 = vor.u32 %v718, %v721
      %v723 = vrot.slane %v722, 4
      %v725 = vshll.u32 %v319, 16
      %v727 = vrot.slane %v725, 5
      %v728 = vsel %vm354, %v723, %v727
      %v729 = vshrl.u32 %v319, 16
      %v731 = vrot.slane %v729, 4
      %v732 = vor.u32 %v731, %v727
      %v733 = vrot.slane %v732, 4
      %v735 = vshll.u32 %v351, 16
      %v737 = vrot.slane %v735, 5
      %v738 = vsel %vm354, %v733, %v737
      %s739 = scalar_lea.vmem %s1, 64
      %v740 = vld [vmem:[%s739] sm:$0xf]
      %v741 = vld [vmem:[%s739 + $0x4] sm:$0xf]
      %v742 = vld [vmem:[%s739 + $0x8] sm:$0xf]
      %v743 = vld [vmem:[%s739 + $0xc] sm:$0xf]
      %v744 = vld [vmem:[%s739 + $0x10] sm:$0xf]
      %v745 = vld [vmem:[%s739 + $0x14] sm:$0xf]
      %v746 = vld [vmem:[%s739 + $0x18] sm:$0xf]
      %v747 = vld [vmem:[%s739 + $0x1c] sm:$0xf]
      %v748 = vld [vmem:[%s739 + $0x20] sm:$0xf]
      %v749 = vld [vmem:[%s739 + $0x24] sm:$0xf]
      %v750 = vld [vmem:[%s739 + $0x28] sm:$0xf]
      %v751 = vld [vmem:[%s739 + $0x2c] sm:$0xf]
      %v752 = vld [vmem:[%s739 + $0x30] sm:$0xf]
      %v753 = vld [vmem:[%s739 + $0x34] sm:$0xf]
      %v754 = vld [vmem:[%s739 + $0x38] sm:$0xf]
      %v755 = vld [vmem:[%s739 + $0x3c] sm:$0xf]
      %v756 = vunpack.c.l.b16 %v368
      %v757 = vunpack.c.l.b16 %v378
      %v758 = vunpack.c.l.b16 %v392
      %v759 = vunpack.c.l.b16 %v402
      %v760 = vunpack.c.l.b16 %v416
      %v761 = vunpack.c.l.b16 %v426
      %v762 = vunpack.c.l.b16 %v440
      %v763 = vunpack.c.l.b16 %v450
      %v764 = vunpack.c.l.b16 %v464
      %v765 = vunpack.c.l.b16 %v474
      %v766 = vunpack.c.l.b16 %v488
      %v767 = vunpack.c.l.b16 %v498
      %v768 = vunpack.c.l.b16 %v512
      %v769 = vunpack.c.l.b16 %v522
      %v770 = vunpack.c.l.b16 %v536
      %v771 = vunpack.c.l.b16 %v546
      %v772 = vunpack.c.l.b16 %v560
      %v773 = vunpack.c.l.b16 %v570
      %v774 = vunpack.c.l.b16 %v584
      %v775 = vunpack.c.l.b16 %v594
      %v776 = vunpack.c.l.b16 %v608
      %v777 = vunpack.c.l.b16 %v618
      %v778 = vunpack.c.l.b16 %v632
      %v779 = vunpack.c.l.b16 %v642
      %v780 = vunpack.c.l.b16 %v656
      %v781 = vunpack.c.l.b16 %v666
      %v782 = vunpack.c.l.b16 %v680
      %v783 = vunpack.c.l.b16 %v690
      %v784 = vunpack.c.l.b16 %v704
      %v785 = vunpack.c.l.b16 %v714
      %v786 = vunpack.c.l.b16 %v728
      %v787 = vunpack.c.l.b16 %v738
      %v788 = vpack.c.b16 %v757, %v756
      %v789 = vpack.c.b16 %v759, %v758
      %v790 = vpack.c.b16 %v761, %v760
      %v791 = vpack.c.b16 %v763, %v762
      %v792 = vpack.c.b16 %v765, %v764
      %v793 = vpack.c.b16 %v767, %v766
      %v794 = vpack.c.b16 %v769, %v768
      %v795 = vpack.c.b16 %v771, %v770
      %v796 = vpack.c.b16 %v773, %v772
      %v797 = vpack.c.b16 %v775, %v774
      %v798 = vpack.c.b16 %v777, %v776
      %v799 = vpack.c.b16 %v779, %v778
      %v800 = vpack.c.b16 %v781, %v780
      %v801 = vpack.c.b16 %v783, %v782
      %v802 = vpack.c.b16 %v785, %v784
      %v803 = vpack.c.b16 %v787, %v786
      %v836 = vunpack.c.l.b16 %v740
      %v837 = vunpack.c.l.b16 %v741
      %v838 = vunpack.c.l.b16 %v742
      %v839 = vunpack.c.l.b16 %v743
      %v840 = vunpack.c.l.b16 %v744
      %v841 = vunpack.c.l.b16 %v745
      %v842 = vunpack.c.l.b16 %v746
      %v843 = vunpack.c.l.b16 %v747
      %v844 = vunpack.c.l.b16 %v748
      %v845 = vunpack.c.l.b16 %v749
      %v846 = vunpack.c.l.b16 %v750
      %v847 = vunpack.c.l.b16 %v751
      %v848 = vunpack.c.l.b16 %v752
      %v849 = vunpack.c.l.b16 %v753
      %v850 = vunpack.c.l.b16 %v754
      %v851 = vunpack.c.l.b16 %v755
      %v852 = vpack.c.b16 %v837, %v836
      %v853 = vpack.c.b16 %v839, %v838
      %v854 = vpack.c.b16 %v841, %v840
      %v855 = vpack.c.b16 %v843, %v842
      %v856 = vpack.c.b16 %v845, %v844
      %v857 = vpack.c.b16 %v847, %v846
      %v858 = vpack.c.b16 %v849, %v848
      %v859 = vpack.c.b16 %v851, %v850
      %868 = vmatprep.subr.bf16.mxu0 0
      %869 = vmatpush1.bf16.msra.mxu0 %v852
      %870 = vmatprep.subr.bf16.mxu0 0
      %871 = vmatpush1.bf16.msra.mxu0 %v853
      %872 = vmatprep.subr.bf16.mxu0 0
      %873 = vmatpush1.bf16.msra.mxu0 %v854
      %874 = vmatprep.subr.bf16.mxu0 0
      %875 = vmatpush1.bf16.msra.mxu0 %v855
      %876 = vmatprep.subr.bf16.mxu0 0
      %877 = vmatpush1.bf16.msra.mxu0 %v856
      %878 = vmatprep.subr.bf16.mxu0 0
      %879 = vmatpush1.bf16.msra.mxu0 %v857
      %880 = vmatprep.subr.bf16.mxu0 0
      %881 = vmatpush1.bf16.msra.mxu0 %v858
      %882 = vmatprep.subr.bf16.mxu0 0
      %883 = vmatpush1.bf16.msra.mxu0 %v859
      %884 = vmatprep.subr.bf16.mxu0 0
      %885 = vmatpush1.bf16.msra.mxu0 0
      %886 = vmatprep.subr.bf16.mxu0 0
      %887 = vmatpush1.bf16.msra.mxu0 0
      %888 = vmatprep.subr.bf16.mxu0 0
      %889 = vmatpush1.bf16.msra.mxu0 0
      %890 = vmatprep.subr.bf16.mxu0 0
      %891 = vmatpush1.bf16.msra.mxu0 0
      %892 = vmatprep.subr.bf16.mxu0 0
      %893 = vmatpush1.bf16.msra.mxu0 0
      %894 = vmatprep.subr.bf16.mxu0 0
      %895 = vmatpush1.bf16.msra.mxu0 0
      %896 = vmatprep.subr.bf16.mxu0 0
      %897 = vmatpush1.bf16.msra.mxu0 0
      %898 = vmatprep.subr.bf16.mxu0 0
      %899 = vmatpush1.bf16.msra.mxu0 0
      %900 = vmatprep.mubr.bf16.mxu0 0
      %901 = vmatmul.mubr.bf16.gmra.mrb[0].mxu0 %v788
      %v902 = vpop.f32.mrb[0].mxu0
      %v903 = vadd.f32 0.0, %v902
      %v904 = vpop.f32.mrb[0].mxu0
      %v905 = vpop.f32.mrb[0].mxu0
      %v906 = vadd.f32 0.0, %v905
      %v907 = vpop.f32.mrb[0].mxu0
      %908 = vmatprep.mubr.bf16.mxu0 0
      %909 = vmatmul.mubr.bf16.gmra.mrb[0].mxu0 %v789
      %v910 = vpop.f32.mrb[0].mxu0
      %v911 = vadd.f32 0.0, %v910
      %v912 = vpop.f32.mrb[0].mxu0
      %v913 = vpop.f32.mrb[0].mxu0
      %v914 = vadd.f32 0.0, %v913
      %v915 = vpop.f32.mrb[0].mxu0
      %916 = vmatprep.mubr.bf16.mxu0 0
      %917 = vmatmul.mubr.bf16.gmra.mrb[0].mxu0 %v790
      %v918 = vpop.f32.mrb[0].mxu0
      %v919 = vadd.f32 0.0, %v918
      %v920 = vpop.f32.mrb[0].mxu0
      %v921 = vpop.f32.mrb[0].mxu0
      %v922 = vadd.f32 0.0, %v921
      %v923 = vpop.f32.mrb[0].mxu0
      %924 = vmatprep.mubr.bf16.mxu0 0
      %925 = vmatmul.mubr.bf16.gmra.mrb[0].mxu0 %v791
      %v926 = vpop.f32.mrb[0].mxu0
      %v927 = vadd.f32 0.0, %v926
      %v928 = vpop.f32.mrb[0].mxu0
      %v929 = vpop.f32.mrb[0].mxu0
      %v930 = vadd.f32 0.0, %v929
      %v931 = vpop.f32.mrb[0].mxu0
      %932 = vmatprep.mubr.bf16.mxu0 0
      %933 = vmatmul.mubr.bf16.gmra.mrb[0].mxu0 %v792
      %v934 = vpop.f32.mrb[0].mxu0
      %v935 = vadd.f32 0.0, %v934
      %v936 = vpop.f32.mrb[0].mxu0
      %v937 = vpop.f32.mrb[0].mxu0
      %v938 = vadd.f32 0.0, %v937
      %v939 = vpop.f32.mrb[0].mxu0
      %940 = vmatprep.mubr.bf16.mxu0 0
      %941 = vmatmul.mubr.bf16.gmra.mrb[0].mxu0 %v793
      %v942 = vpop.f32.mrb[0].mxu0
      %v943 = vadd.f32 0.0, %v942
      %v944 = vpop.f32.mrb[0].mxu0
      %v945 = vpop.f32.mrb[0].mxu0
      %v946 = vadd.f32 0.0, %v945
      %v947 = vpop.f32.mrb[0].mxu0
      %948 = vmatprep.mubr.bf16.mxu0 0
      %949 = vmatmul.mubr.bf16.gmra.mrb[0].mxu0 %v794
      %v950 = vpop.f32.mrb[0].mxu0
      %v951 = vadd.f32 0.0, %v950
      %v952 = vpop.f32.mrb[0].mxu0
      %v953 = vpop.f32.mrb[0].mxu0
      %v954 = vadd.f32 0.0, %v953
      %v955 = vpop.f32.mrb[0].mxu0
      %956 = vmatprep.mubr.bf16.mxu0 0
      %957 = vmatmul.mubr.bf16.gmra.mrb[0].mxu0 %v795
      %v958 = vpop.f32.mrb[0].mxu0
      %v959 = vadd.f32 0.0, %v958
      %v960 = vpop.f32.mrb[0].mxu0
      %v961 = vpop.f32.mrb[0].mxu0
      %v962 = vadd.f32 0.0, %v961
      %v963 = vpop.f32.mrb[0].mxu0
      %964 = vmatprep.mubr.bf16.mxu0 0
      %965 = vmatmul.mubr.bf16.gmra.mrb[0].mxu0 %v796
      %v966 = vpop.f32.mrb[0].mxu0
      %v967 = vadd.f32 0.0, %v966
      %v968 = vpop.f32.mrb[0].mxu0
      %v969 = vpop.f32.mrb[0].mxu0
      %v970 = vadd.f32 0.0, %v969
      %v971 = vpop.f32.mrb[0].mxu0
      %972 = vmatprep.mubr.bf16.mxu0 0
      %973 = vmatmul.mubr.bf16.gmra.mrb[0].mxu0 %v797
      %v974 = vpop.f32.mrb[0].mxu0
      %v975 = vadd.f32 0.0, %v974
      %v976 = vpop.f32.mrb[0].mxu0
      %v977 = vpop.f32.mrb[0].mxu0
      %v978 = vadd.f32 0.0, %v977
      %v979 = vpop.f32.mrb[0].mxu0
      %980 = vmatprep.mubr.bf16.mxu0 0
      %981 = vmatmul.mubr.bf16.gmra.mrb[0].mxu0 %v798
      %v982 = vpop.f32.mrb[0].mxu0
      %v983 = vadd.f32 0.0, %v982
      %v984 = vpop.f32.mrb[0].mxu0
      %v985 = vpop.f32.mrb[0].mxu0
      %v986 = vadd.f32 0.0, %v985
      %v987 = vpop.f32.mrb[0].mxu0
      %988 = vmatprep.mubr.bf16.mxu0 0
      %989 = vmatmul.mubr.bf16.gmra.mrb[0].mxu0 %v799
      %v990 = vpop.f32.mrb[0].mxu0
      %v991 = vadd.f32 0.0, %v990
      %v992 = vpop.f32.mrb[0].mxu0
      %v993 = vpop.f32.mrb[0].mxu0
      %v994 = vadd.f32 0.0, %v993
      %v995 = vpop.f32.mrb[0].mxu0
      %996 = vmatprep.mubr.bf16.mxu0 0
      %997 = vmatmul.mubr.bf16.gmra.mrb[0].mxu0 %v800
      %v998 = vpop.f32.mrb[0].mxu0
      %v999 = vadd.f32 0.0, %v998
      %v1000 = vpop.f32.mrb[0].mxu0
      %v1001 = vpop.f32.mrb[0].mxu0
      %v1002 = vadd.f32 0.0, %v1001
      %v1003 = vpop.f32.mrb[0].mxu0
      %1004 = vmatprep.mubr.bf16.mxu0 0
      %1005 = vmatmul.mubr.bf16.gmra.mrb[0].mxu0 %v801
      %v1006 = vpop.f32.mrb[0].mxu0
      %v1007 = vadd.f32 0.0, %v1006
      %v1008 = vpop.f32.mrb[0].mxu0
      %v1009 = vpop.f32.mrb[0].mxu0
      %v1010 = vadd.f32 0.0, %v1009
      %v1011 = vpop.f32.mrb[0].mxu0
      %1012 = vmatprep.mubr.bf16.mxu0 0
      %1013 = vmatmul.mubr.bf16.gmra.mrb[0].mxu0 %v802
      %v1014 = vpop.f32.mrb[0].mxu0
      %v1015 = vadd.f32 0.0, %v1014
      %v1016 = vpop.f32.mrb[0].mxu0
      %v1017 = vpop.f32.mrb[0].mxu0
      %v1018 = vadd.f32 0.0, %v1017
      %v1019 = vpop.f32.mrb[0].mxu0
      %1020 = vmatprep.mubr.bf16.mxu0 0
      %1021 = vmatmul.mubr.bf16.gmra.mrb[0].mxu0 %v803
      %v1022 = vpop.f32.mrb[0].mxu0
      %v1023 = vadd.f32 0.0, %v1022
      %v1024 = vpop.f32.mrb[0].mxu0
      %v1025 = vpop.f32.mrb[0].mxu0
      %v1026 = vadd.f32 0.0, %v1025
      %v1027 = vpop.f32.mrb[0].mxu0
      %1028 = vdwg.mxu0
      %v1061 = vunpack.c.l.b16 %v288
      %v1062 = vunpack.c.l.b16 %v289
      %v1063 = vunpack.c.l.b16 %v290
      %v1064 = vunpack.c.l.b16 %v291
      %v1065 = vunpack.c.l.b16 %v292
      %v1066 = vunpack.c.l.b16 %v293
      %v1067 = vunpack.c.l.b16 %v294
      %v1068 = vunpack.c.l.b16 %v295
      %v1069 = vunpack.c.l.b16 %v296
      %v1070 = vunpack.c.l.b16 %v297
      %v1071 = vunpack.c.l.b16 %v298
      %v1072 = vunpack.c.l.b16 %v299
      %v1073 = vunpack.c.l.b16 %v300
      %v1074 = vunpack.c.l.b16 %v301
      %v1075 = vunpack.c.l.b16 %v302
      %v1076 = vunpack.c.l.b16 %v303
      %v1077 = vunpack.c.l.b16 %v304
      %v1078 = vunpack.c.l.b16 %v305
      %v1079 = vunpack.c.l.b16 %v306
      %v1080 = vunpack.c.l.b16 %v307
      %v1081 = vunpack.c.l.b16 %v308
      %v1082 = vunpack.c.l.b16 %v309
      %v1083 = vunpack.c.l.b16 %v310
      %v1084 = vunpack.c.l.b16 %v311
      %v1085 = vunpack.c.l.b16 %v312
      %v1086 = vunpack.c.l.b16 %v313
      %v1087 = vunpack.c.l.b16 %v314
      %v1088 = vunpack.c.l.b16 %v315
      %v1089 = vunpack.c.l.b16 %v316
      %v1090 = vunpack.c.l.b16 %v317
      %v1091 = vunpack.c.l.b16 %v318
      %v1092 = vunpack.c.l.b16 %v319
      %v1093 = vpack.c.b16 %v1062, %v1061
      %v1094 = vpack.c.b16 %v1064, %v1063
      %v1095 = vpack.c.b16 %v1066, %v1065
      %v1096 = vpack.c.b16 %v1068, %v1067
      %v1097 = vpack.c.b16 %v1070, %v1069
      %v1098 = vpack.c.b16 %v1072, %v1071
      %v1099 = vpack.c.b16 %v1074, %v1073
      %v1100 = vpack.c.b16 %v1076, %v1075
      %v1101 = vpack.c.b16 %v1078, %v1077
      %v1102 = vpack.c.b16 %v1080, %v1079
      %v1103 = vpack.c.b16 %v1082, %v1081
      %v1104 = vpack.c.b16 %v1084, %v1083
      %v1105 = vpack.c.b16 %v1086, %v1085
      %v1106 = vpack.c.b16 %v1088, %v1087
      %v1107 = vpack.c.b16 %v1090, %v1089
      %v1108 = vpack.c.b16 %v1092, %v1091
      %v1141 = vunpack.c.l.b16 %v320
      %v1142 = vunpack.c.l.b16 %v321
      %v1143 = vunpack.c.l.b16 %v322
      %v1144 = vunpack.c.l.b16 %v323
      %v1145 = vunpack.c.l.b16 %v324
      %v1146 = vunpack.c.l.b16 %v325
      %v1147 = vunpack.c.l.b16 %v326
      %v1148 = vunpack.c.l.b16 %v327
      %v1149 = vunpack.c.l.b16 %v328
      %v1150 = vunpack.c.l.b16 %v329
      %v1151 = vunpack.c.l.b16 %v330
      %v1152 = vunpack.c.l.b16 %v331
      %v1153 = vunpack.c.l.b16 %v332
      %v1154 = vunpack.c.l.b16 %v333
      %v1155 = vunpack.c.l.b16 %v334
      %v1156 = vunpack.c.l.b16 %v335
      %v1157 = vpack.c.b16 %v1142, %v1141
      %v1158 = vpack.c.b16 %v1144, %v1143
      %v1159 = vpack.c.b16 %v1146, %v1145
      %v1160 = vpack.c.b16 %v1148, %v1147
      %v1161 = vpack.c.b16 %v1150, %v1149
      %v1162 = vpack.c.b16 %v1152, %v1151
      %v1163 = vpack.c.b16 %v1154, %v1153
      %v1164 = vpack.c.b16 %v1156, %v1155
      %1173 = vmatprep.subr.bf16.mxu0 0
      %1174 = vmatpush1.bf16.msra.mxu0 %v1157
      %1175 = vmatprep.subr.bf16.mxu0 0
      %1176 = vmatpush1.bf16.msra.mxu0 %v1158
      %1177 = vmatprep.subr.bf16.mxu0 0
      %1178 = vmatpush1.bf16.msra.mxu0 %v1159
      %1179 = vmatprep.subr.bf16.mxu0 0
      %1180 = vmatpush1.bf16.msra.mxu0 %v1160
      %1181 = vmatprep.subr.bf16.mxu0 0
      %1182 = vmatpush1.bf16.msra.mxu0 %v1161
      %1183 = vmatprep.subr.bf16.mxu0 0
      %1184 = vmatpush1.bf16.msra.mxu0 %v1162
      %1185 = vmatprep.subr.bf16.mxu0 0
      %1186 = vmatpush1.bf16.msra.mxu0 %v1163
      %1187 = vmatprep.subr.bf16.mxu0 0
      %1188 = vmatpush1.bf16.msra.mxu0 %v1164
      %1189 = vmatprep.subr.bf16.mxu0 0
      %1190 = vmatpush1.bf16.msra.mxu0 0
      %1191 = vmatprep.subr.bf16.mxu0 0
      %1192 = vmatpush1.bf16.msra.mxu0 0
      %1193 = vmatprep.subr.bf16.mxu0 0
      %1194 = vmatpush1.bf16.msra.mxu0 0
      %1195 = vmatprep.subr.bf16.mxu0 0
      %1196 = vmatpush1.bf16.msra.mxu0 0
      %1197 = vmatprep.subr.bf16.mxu0 0
      %1198 = vmatpush1.bf16.msra.mxu0 0
      %1199 = vmatprep.subr.bf16.mxu0 0
      %1200 = vmatpush1.bf16.msra.mxu0 0
      %1201 = vmatprep.subr.bf16.mxu0 0
      %1202 = vmatpush1.bf16.msra.mxu0 0
      %1203 = vmatprep.subr.bf16.mxu0 0
      %1204 = vmatpush1.bf16.msra.mxu0 0
      %1205 = vmatprep.mubr.bf16.mxu0 0
      %1206 = vmatmul.mubr.bf16.gmra.mrb[0].mxu0 %v1093
      %v1207 = vpop.f32.mrb[0].mxu0
      %v1208 = vadd.f32 %v903, %v1207
      %v1209 = vpop.f32.mrb[0].mxu0
      %v1210 = vpop.f32.mrb[0].mxu0
      %v1211 = vadd.f32 %v906, %v1210
      %v1212 = vpop.f32.mrb[0].mxu0
      %1213 = vmatprep.mubr.bf16.mxu0 0
      %1214 = vmatmul.mubr.bf16.gmra.mrb[0].mxu0 %v1094
      %v1215 = vpop.f32.mrb[0].mxu0
      %v1216 = vadd.f32 %v911, %v1215
      %v1217 = vpop.f32.mrb[0].mxu0
      %v1218 = vpop.f32.mrb[0].mxu0
      %v1219 = vadd.f32 %v914, %v1218
      %v1220 = vpop.f32.mrb[0].mxu0
      %1221 = vmatprep.mubr.bf16.mxu0 0
      %1222 = vmatmul.mubr.bf16.gmra.mrb[0].mxu0 %v1095
      %v1223 = vpop.f32.mrb[0].mxu0
      %v1224 = vadd.f32 %v919, %v1223
      %v1225 = vpop.f32.mrb[0].mxu0
      %v1226 = vpop.f32.mrb[0].mxu0
      %v1227 = vadd.f32 %v922, %v1226
      %v1228 = vpop.f32.mrb[0].mxu0
      %1229 = vmatprep.mubr.bf16.mxu0 0
      %1230 = vmatmul.mubr.bf16.gmra.mrb[0].mxu0 %v1096
      %v1231 = vpop.f32.mrb[0].mxu0
      %v1232 = vadd.f32 %v927, %v1231
      %v1233 = vpop.f32.mrb[0].mxu0
      %v1234 = vpop.f32.mrb[0].mxu0
      %v1235 = vadd.f32 %v930, %v1234
      %v1236 = vpop.f32.mrb[0].mxu0
      %1237 = vmatprep.mubr.bf16.mxu0 0
      %1238 = vmatmul.mubr.bf16.gmra.mrb[0].mxu0 %v1097
      %v1239 = vpop.f32.mrb[0].mxu0
      %v1240 = vadd.f32 %v935, %v1239
      %v1241 = vpop.f32.mrb[0].mxu0
      %v1242 = vpop.f32.mrb[0].mxu0
      %v1243 = vadd.f32 %v938, %v1242
      %v1244 = vpop.f32.mrb[0].mxu0
      %1245 = vmatprep.mubr.bf16.mxu0 0
      %1246 = vmatmul.mubr.bf16.gmra.mrb[0].mxu0 %v1098
      %v1247 = vpop.f32.mrb[0].mxu0
      %v1248 = vadd.f32 %v943, %v1247
      %v1249 = vpop.f32.mrb[0].mxu0
      %v1250 = vpop.f32.mrb[0].mxu0
      %v1251 = vadd.f32 %v946, %v1250
      %v1252 = vpop.f32.mrb[0].mxu0
      %1253 = vmatprep.mubr.bf16.mxu0 0
      %1254 = vmatmul.mubr.bf16.gmra.mrb[0].mxu0 %v1099
      %v1255 = vpop.f32.mrb[0].mxu0
      %v1256 = vadd.f32 %v951, %v1255
      %v1257 = vpop.f32.mrb[0].mxu0
      %v1258 = vpop.f32.mrb[0].mxu0
      %v1259 = vadd.f32 %v954, %v1258
      %v1260 = vpop.f32.mrb[0].mxu0
      %1261 = vmatprep.mubr.bf16.mxu0 0
      %1262 = vmatmul.mubr.bf16.gmra.mrb[0].mxu0 %v1100
      %v1263 = vpop.f32.mrb[0].mxu0
      %v1264 = vadd.f32 %v959, %v1263
      %v1265 = vpop.f32.mrb[0].mxu0
      %v1266 = vpop.f32.mrb[0].mxu0
      %v1267 = vadd.f32 %v962, %v1266
      %v1268 = vpop.f32.mrb[0].mxu0
      %1269 = vmatprep.mubr.bf16.mxu0 0
      %1270 = vmatmul.mubr.bf16.gmra.mrb[0].mxu0 %v1101
      %v1271 = vpop.f32.mrb[0].mxu0
      %v1272 = vadd.f32 %v967, %v1271
      %v1273 = vpop.f32.mrb[0].mxu0
      %v1274 = vpop.f32.mrb[0].mxu0
      %v1275 = vadd.f32 %v970, %v1274
      %v1276 = vpop.f32.mrb[0].mxu0
      %1277 = vmatprep.mubr.bf16.mxu0 0
      %1278 = vmatmul.mubr.bf16.gmra.mrb[0].mxu0 %v1102
      %v1279 = vpop.f32.mrb[0].mxu0
      %v1280 = vadd.f32 %v975, %v1279
      %v1281 = vpop.f32.mrb[0].mxu0
      %v1282 = vpop.f32.mrb[0].mxu0
      %v1283 = vadd.f32 %v978, %v1282
      %v1284 = vpop.f32.mrb[0].mxu0
      %1285 = vmatprep.mubr.bf16.mxu0 0
      %1286 = vmatmul.mubr.bf16.gmra.mrb[0].mxu0 %v1103
      %v1287 = vpop.f32.mrb[0].mxu0
      %v1288 = vadd.f32 %v983, %v1287
      %v1289 = vpop.f32.mrb[0].mxu0
      %v1290 = vpop.f32.mrb[0].mxu0
      %v1291 = vadd.f32 %v986, %v1290
      %v1292 = vpop.f32.mrb[0].mxu0
      %1293 = vmatprep.mubr.bf16.mxu0 0
      %1294 = vmatmul.mubr.bf16.gmra.mrb[0].mxu0 %v1104
      %v1295 = vpop.f32.mrb[0].mxu0
      %v1296 = vadd.f32 %v991, %v1295
      %v1297 = vpop.f32.mrb[0].mxu0
      %v1298 = vpop.f32.mrb[0].mxu0
      %v1299 = vadd.f32 %v994, %v1298
      %v1300 = vpop.f32.mrb[0].mxu0
      %1301 = vmatprep.mubr.bf16.mxu0 0
      %1302 = vmatmul.mubr.bf16.gmra.mrb[0].mxu0 %v1105
      %v1303 = vpop.f32.mrb[0].mxu0
      %v1304 = vadd.f32 %v999, %v1303
      %v1305 = vpop.f32.mrb[0].mxu0
      %v1306 = vpop.f32.mrb[0].mxu0
      %v1307 = vadd.f32 %v1002, %v1306
      %v1308 = vpop.f32.mrb[0].mxu0
      %1309 = vmatprep.mubr.bf16.mxu0 0
      %1310 = vmatmul.mubr.bf16.gmra.mrb[0].mxu0 %v1106
      %v1311 = vpop.f32.mrb[0].mxu0
      %v1312 = vadd.f32 %v1007, %v1311
      %v1313 = vpop.f32.mrb[0].mxu0
      %v1314 = vpop.f32.mrb[0].mxu0
      %v1315 = vadd.f32 %v1010, %v1314
      %v1316 = vpop.f32.mrb[0].mxu0
      %1317 = vmatprep.mubr.bf16.mxu0 0
      %1318 = vmatmul.mubr.bf16.gmra.mrb[0].mxu0 %v1107
      %v1319 = vpop.f32.mrb[0].mxu0
      %v1320 = vadd.f32 %v1015, %v1319
      %v1321 = vpop.f32.mrb[0].mxu0
      %v1322 = vpop.f32.mrb[0].mxu0
      %v1323 = vadd.f32 %v1018, %v1322
      %v1324 = vpop.f32.mrb[0].mxu0
      %1325 = vmatprep.mubr.bf16.mxu0 0
      %1326 = vmatmul.mubr.bf16.gmra.mrb[0].mxu0 %v1108
      %v1327 = vpop.f32.mrb[0].mxu0
      %v1328 = vadd.f32 %v1023, %v1327
      %v1329 = vpop.f32.mrb[0].mxu0
      %v1330 = vpop.f32.mrb[0].mxu0
      %v1331 = vadd.f32 %v1026, %v1330
      %v1332 = vpop.f32.mrb[0].mxu0
      %1333 = vdwg.mxu0
      %v1334 = vld [vmem:[%s287] sm:$0xe]
      %v1335 = vld [vmem:[%s287 + $0xc] sm:$0xe]
      %v1336 = vld [vmem:[%s287 + $0x18] sm:$0xe]
      %v1337 = vld [vmem:[%s287 + $0x24] sm:$0xe]
      %v1338 = vld [vmem:[%s287 + $0x30] sm:$0xe]
      %v1339 = vld [vmem:[%s287 + $0x3c] sm:$0xe]
      %v1340 = vld [vmem:[%s287 + $0x48] sm:$0xe]
      %v1341 = vld [vmem:[%s287 + $0x54] sm:$0xe]
      %v1342 = vld [vmem:[%s287 + $0x60] sm:$0xe]
      %v1343 = vld [vmem:[%s287 + $0x6c] sm:$0xe]
      %v1344 = vld [vmem:[%s287 + $0x78] sm:$0xe]
      %v1345 = vld [vmem:[%s287 + $0x84] sm:$0xe]
      %v1346 = vld [vmem:[%s287 + $0x90] sm:$0xe]
      %v1347 = vld [vmem:[%s287 + $0x9c] sm:$0xe]
      %v1348 = vld [vmem:[%s287 + $0xa8] sm:$0xe]
      %v1349 = vld [vmem:[%s287 + $0xb4] sm:$0xe]
      %vm1382 = vcmask 1042432
      %vm1383 = vcmask 1046532
      %vm1384 = vmor %vm1382, %vm1383
      %v1385 = vrot.slane %v1334, 5
      %v1386 = vrot.slane %v1385, 4
      %v1387 = vrot.slane %v289, 5
      %v1388 = vsel %vm1384, %v1386, %v1387
      %v1389 = vrot.slane %v1387, 4
      %v1390 = vrot.slane %v336, 5
      %v1391 = vsel %vm1384, %v1389, %v1390
      %v1392 = vrot.slane %v1335, 5
      %v1393 = vrot.slane %v1392, 4
      %v1394 = vrot.slane %v291, 5
      %v1395 = vsel %vm1384, %v1393, %v1394
      %v1396 = vrot.slane %v1394, 4
      %v1397 = vrot.slane %v337, 5
      %v1398 = vsel %vm1384, %v1396, %v1397
      %v1399 = vrot.slane %v1336, 5
      %v1400 = vrot.slane %v1399, 4
      %v1401 = vrot.slane %v293, 5
      %v1402 = vsel %vm1384, %v1400, %v1401
      %v1403 = vrot.slane %v1401, 4
      %v1404 = vrot.slane %v338, 5
      %v1405 = vsel %vm1384, %v1403, %v1404
      %v1406 = vrot.slane %v1337, 5
      %v1407 = vrot.slane %v1406, 4
      %v1408 = vrot.slane %v295, 5
      %v1409 = vsel %vm1384, %v1407, %v1408
      %v1410 = vrot.slane %v1408, 4
      %v1411 = vrot.slane %v339, 5
      %v1412 = vsel %vm1384, %v1410, %v1411
      %v1413 = vrot.slane %v1338, 5
      %v1414 = vrot.slane %v1413, 4
      %v1415 = vrot.slane %v297, 5
      %v1416 = vsel %vm1384, %v1414, %v1415
      %v1417 = vrot.slane %v1415, 4
      %v1418 = vrot.slane %v340, 5
      %v1419 = vsel %vm1384, %v1417, %v1418
      %v1420 = vrot.slane %v1339, 5
      %v1421 = vrot.slane %v1420, 4
      %v1422 = vrot.slane %v299, 5
      %v1423 = vsel %vm1384, %v1421, %v1422
      %v1424 = vrot.slane %v1422, 4
      %v1425 = vrot.slane %v341, 5
      %v1426 = vsel %vm1384, %v1424, %v1425
      %v1427 = vrot.slane %v1340, 5
      %v1428 = vrot.slane %v1427, 4
      %v1429 = vrot.slane %v301, 5
      %v1430 = vsel %vm1384, %v1428, %v1429
      %v1431 = vrot.slane %v1429, 4
      %v1432 = vrot.slane %v342, 5
      %v1433 = vsel %vm1384, %v1431, %v1432
      %v1434 = vrot.slane %v1341, 5
      %v1435 = vrot.slane %v1434, 4
      %v1436 = vrot.slane %v303, 5
      %v1437 = vsel %vm1384, %v1435, %v1436
      %v1438 = vrot.slane %v1436, 4
      %v1439 = vrot.slane %v343, 5
      %v1440 = vsel %vm1384, %v1438, %v1439
      %v1441 = vrot.slane %v1342, 5
      %v1442 = vrot.slane %v1441, 4
      %v1443 = vrot.slane %v305, 5
      %v1444 = vsel %vm1384, %v1442, %v1443
      %v1445 = vrot.slane %v1443, 4
      %v1446 = vrot.slane %v344, 5
      %v1447 = vsel %vm1384, %v1445, %v1446
      %v1448 = vrot.slane %v1343, 5
      %v1449 = vrot.slane %v1448, 4
      %v1450 = vrot.slane %v307, 5
      %v1451 = vsel %vm1384, %v1449, %v1450
      %v1452 = vrot.slane %v1450, 4
      %v1453 = vrot.slane %v345, 5
      %v1454 = vsel %vm1384, %v1452, %v1453
      %v1455 = vrot.slane %v1344, 5
      %v1456 = vrot.slane %v1455, 4
      %v1457 = vrot.slane %v309, 5
      %v1458 = vsel %vm1384, %v1456, %v1457
      %v1459 = vrot.slane %v1457, 4
      %v1460 = vrot.slane %v346, 5
      %v1461 = vsel %vm1384, %v1459, %v1460
      %v1462 = vrot.slane %v1345, 5
      %v1463 = vrot.slane %v1462, 4
      %v1464 = vrot.slane %v311, 5
      %v1465 = vsel %vm1384, %v1463, %v1464
      %v1466 = vrot.slane %v1464, 4
      %v1467 = vrot.slane %v347, 5
      %v1468 = vsel %vm1384, %v1466, %v1467
      %v1469 = vrot.slane %v1346, 5
      %v1470 = vrot.slane %v1469, 4
      %v1471 = vrot.slane %v313, 5
      %v1472 = vsel %vm1384, %v1470, %v1471
      %v1473 = vrot.slane %v1471, 4
      %v1474 = vrot.slane %v348, 5
      %v1475 = vsel %vm1384, %v1473, %v1474
      %v1476 = vrot.slane %v1347, 5
      %v1477 = vrot.slane %v1476, 4
      %v1478 = vrot.slane %v315, 5
      %v1479 = vsel %vm1384, %v1477, %v1478
      %v1480 = vrot.slane %v1478, 4
      %v1481 = vrot.slane %v349, 5
      %v1482 = vsel %vm1384, %v1480, %v1481
      %v1483 = vrot.slane %v1348, 5
      %v1484 = vrot.slane %v1483, 4
      %v1485 = vrot.slane %v317, 5
      %v1486 = vsel %vm1384, %v1484, %v1485
      %v1487 = vrot.slane %v1485, 4
      %v1488 = vrot.slane %v350, 5
      %v1489 = vsel %vm1384, %v1487, %v1488
      %v1490 = vrot.slane %v1349, 5
      %v1491 = vrot.slane %v1490, 4
      %v1492 = vrot.slane %v319, 5
      %v1493 = vsel %vm1384, %v1491, %v1492
      %v1494 = vrot.slane %v1492, 4
      %v1495 = vrot.slane %v351, 5
      %v1496 = vsel %vm1384, %v1494, %v1495
      %s1497 = scalar_lea.vmem %s1, 128
      %v1498 = vld [vmem:[%s1497] sm:$0xf]
      %v1499 = vld [vmem:[%s1497 + $0x4] sm:$0xf]
      %v1500 = vld [vmem:[%s1497 + $0x8] sm:$0xf]
      %v1501 = vld [vmem:[%s1497 + $0xc] sm:$0xf]
      %v1502 = vld [vmem:[%s1497 + $0x10] sm:$0xf]
      %v1503 = vld [vmem:[%s1497 + $0x14] sm:$0xf]
      %v1504 = vld [vmem:[%s1497 + $0x18] sm:$0xf]
      %v1505 = vld [vmem:[%s1497 + $0x1c] sm:$0xf]
      %v1506 = vld [vmem:[%s1497 + $0x20] sm:$0xf]
      %v1507 = vld [vmem:[%s1497 + $0x24] sm:$0xf]
      %v1508 = vld [vmem:[%s1497 + $0x28] sm:$0xf]
      %v1509 = vld [vmem:[%s1497 + $0x2c] sm:$0xf]
      %v1510 = vld [vmem:[%s1497 + $0x30] sm:$0xf]
      %v1511 = vld [vmem:[%s1497 + $0x34] sm:$0xf]
      %v1512 = vld [vmem:[%s1497 + $0x38] sm:$0xf]
      %v1513 = vld [vmem:[%s1497 + $0x3c] sm:$0xf]
      %v1514 = vunpack.c.l.b16 %v1388
      %v1515 = vunpack.c.l.b16 %v1391
      %v1516 = vunpack.c.l.b16 %v1395
      %v1517 = vunpack.c.l.b16 %v1398
      %v1518 = vunpack.c.l.b16 %v1402
      %v1519 = vunpack.c.l.b16 %v1405
      %v1520 = vunpack.c.l.b16 %v1409
      %v1521 = vunpack.c.l.b16 %v1412
      %v1522 = vunpack.c.l.b16 %v1416
      %v1523 = vunpack.c.l.b16 %v1419
      %v1524 = vunpack.c.l.b16 %v1423
      %v1525 = vunpack.c.l.b16 %v1426
      %v1526 = vunpack.c.l.b16 %v1430
      %v1527 = vunpack.c.l.b16 %v1433
      %v1528 = vunpack.c.l.b16 %v1437
      %v1529 = vunpack.c.l.b16 %v1440
      %v1530 = vunpack.c.l.b16 %v1444
      %v1531 = vunpack.c.l.b16 %v1447
      %v1532 = vunpack.c.l.b16 %v1451
      %v1533 = vunpack.c.l.b16 %v1454
      %v1534 = vunpack.c.l.b16 %v1458
      %v1535 = vunpack.c.l.b16 %v1461
      %v1536 = vunpack.c.l.b16 %v1465
      %v1537 = vunpack.c.l.b16 %v1468
      %v1538 = vunpack.c.l.b16 %v1472
      %v1539 = vunpack.c.l.b16 %v1475
      %v1540 = vunpack.c.l.b16 %v1479
      %v1541 = vunpack.c.l.b16 %v1482
      %v1542 = vunpack.c.l.b16 %v1486
      %v1543 = vunpack.c.l.b16 %v1489
      %v1544 = vunpack.c.l.b16 %v1493
      %v1545 = vunpack.c.l.b16 %v1496
      %v1546 = vpack.c.b16 %v1515, %v1514
      %v1547 = vpack.c.b16 %v1517, %v1516
      %v1548 = vpack.c.b16 %v1519, %v1518
      %v1549 = vpack.c.b16 %v1521, %v1520
      %v1550 = vpack.c.b16 %v1523, %v1522
      %v1551 = vpack.c.b16 %v1525, %v1524
      %v1552 = vpack.c.b16 %v1527, %v1526
      %v1553 = vpack.c.b16 %v1529, %v1528
      %v1554 = vpack.c.b16 %v1531, %v1530
      %v1555 = vpack.c.b16 %v1533, %v1532
      %v1556 = vpack.c.b16 %v1535, %v1534
      %v1557 = vpack.c.b16 %v1537, %v1536
      %v1558 = vpack.c.b16 %v1539, %v1538
      %v1559 = vpack.c.b16 %v1541, %v1540
      %v1560 = vpack.c.b16 %v1543, %v1542
      %v1561 = vpack.c.b16 %v1545, %v1544
      %v1594 = vunpack.c.l.b16 %v1498
      %v1595 = vunpack.c.l.b16 %v1499
      %v1596 = vunpack.c.l.b16 %v1500
      %v1597 = vunpack.c.l.b16 %v1501
      %v1598 = vunpack.c.l.b16 %v1502
      %v1599 = vunpack.c.l.b16 %v1503
      %v1600 = vunpack.c.l.b16 %v1504
      %v1601 = vunpack.c.l.b16 %v1505
      %v1602 = vunpack.c.l.b16 %v1506
      %v1603 = vunpack.c.l.b16 %v1507
      %v1604 = vunpack.c.l.b16 %v1508
      %v1605 = vunpack.c.l.b16 %v1509
      %v1606 = vunpack.c.l.b16 %v1510
      %v1607 = vunpack.c.l.b16 %v1511
      %v1608 = vunpack.c.l.b16 %v1512
      %v1609 = vunpack.c.l.b16 %v1513
      %v1610 = vpack.c.b16 %v1595, %v1594
      %v1611 = vpack.c.b16 %v1597, %v1596
      %v1612 = vpack.c.b16 %v1599, %v1598
      %v1613 = vpack.c.b16 %v1601, %v1600
      %v1614 = vpack.c.b16 %v1603, %v1602
      %v1615 = vpack.c.b16 %v1605, %v1604
      %v1616 = vpack.c.b16 %v1607, %v1606
      %v1617 = vpack.c.b16 %v1609, %v1608
      %1626 = vmatprep.subr.bf16.mxu0 0
      %1627 = vmatpush1.bf16.msra.mxu0 %v1610
      %1628 = vmatprep.subr.bf16.mxu0 0
      %1629 = vmatpush1.bf16.msra.mxu0 %v1611
      %1630 = vmatprep.subr.bf16.mxu0 0
      %1631 = vmatpush1.bf16.msra.mxu0 %v1612
      %1632 = vmatprep.subr.bf16.mxu0 0
      %1633 = vmatpush1.bf16.msra.mxu0 %v1613
      %1634 = vmatprep.subr.bf16.mxu0 0
      %1635 = vmatpush1.bf16.msra.mxu0 %v1614
      %1636 = vmatprep.subr.bf16.mxu0 0
      %1637 = vmatpush1.bf16.msra.mxu0 %v1615
      %1638 = vmatprep.subr.bf16.mxu0 0
      %1639 = vmatpush1.bf16.msra.mxu0 %v1616
      %1640 = vmatprep.subr.bf16.mxu0 0
      %1641 = vmatpush1.bf16.msra.mxu0 %v1617
      %1642 = vmatprep.subr.bf16.mxu0 0
      %1643 = vmatpush1.bf16.msra.mxu0 0
      %1644 = vmatprep.subr.bf16.mxu0 0
      %1645 = vmatpush1.bf16.msra.mxu0 0
      %1646 = vmatprep.subr.bf16.mxu0 0
      %1647 = vmatpush1.bf16.msra.mxu0 0
      %1648 = vmatprep.subr.bf16.mxu0 0
      %1649 = vmatpush1.bf16.msra.mxu0 0
      %1650 = vmatprep.subr.bf16.mxu0 0
      %1651 = vmatpush1.bf16.msra.mxu0 0
      %1652 = vmatprep.subr.bf16.mxu0 0
      %1653 = vmatpush1.bf16.msra.mxu0 0
      %1654 = vmatprep.subr.bf16.mxu0 0
      %1655 = vmatpush1.bf16.msra.mxu0 0
      %1656 = vmatprep.subr.bf16.mxu0 0
      %1657 = vmatpush1.bf16.msra.mxu0 0
      %1658 = vmatprep.mubr.bf16.mxu0 0
      %1659 = vmatmul.mubr.bf16.gmra.mrb[0].mxu0 %v1546
      %v1660 = vpop.f32.mrb[0].mxu0
      %v1661 = vadd.f32 0.0, %v1660
      %v1662 = vpop.f32.mrb[0].mxu0
      %v1663 = vpop.f32.mrb[0].mxu0
      %v1664 = vadd.f32 0.0, %v1663
      %v1665 = vpop.f32.mrb[0].mxu0
      %1666 = vmatprep.mubr.bf16.mxu0 0
      %1667 = vmatmul.mubr.bf16.gmra.mrb[0].mxu0 %v1547
      %v1668 = vpop.f32.mrb[0].mxu0
      %v1669 = vadd.f32 0.0, %v1668
      %v1670 = vpop.f32.mrb[0].mxu0
      %v1671 = vpop.f32.mrb[0].mxu0
      %v1672 = vadd.f32 0.0, %v1671
      %v1673 = vpop.f32.mrb[0].mxu0
      %1674 = vmatprep.mubr.bf16.mxu0 0
      %1675 = vmatmul.mubr.bf16.gmra.mrb[0].mxu0 %v1548
      %v1676 = vpop.f32.mrb[0].mxu0
      %v1677 = vadd.f32 0.0, %v1676
      %v1678 = vpop.f32.mrb[0].mxu0
      %v1679 = vpop.f32.mrb[0].mxu0
      %v1680 = vadd.f32 0.0, %v1679
      %v1681 = vpop.f32.mrb[0].mxu0
      %1682 = vmatprep.mubr.bf16.mxu0 0
      %1683 = vmatmul.mubr.bf16.gmra.mrb[0].mxu0 %v1549
      %v1684 = vpop.f32.mrb[0].mxu0
      %v1685 = vadd.f32 0.0, %v1684
      %v1686 = vpop.f32.mrb[0].mxu0
      %v1687 = vpop.f32.mrb[0].mxu0
      %v1688 = vadd.f32 0.0, %v1687
      %v1689 = vpop.f32.mrb[0].mxu0
      %1690 = vmatprep.mubr.bf16.mxu0 0
      %1691 = vmatmul.mubr.bf16.gmra.mrb[0].mxu0 %v1550
      %v1692 = vpop.f32.mrb[0].mxu0
      %v1693 = vadd.f32 0.0, %v1692
      %v1694 = vpop.f32.mrb[0].mxu0
      %v1695 = vpop.f32.mrb[0].mxu0
      %v1696 = vadd.f32 0.0, %v1695
      %v1697 = vpop.f32.mrb[0].mxu0
      %1698 = vmatprep.mubr.bf16.mxu0 0
      %1699 = vmatmul.mubr.bf16.gmra.mrb[0].mxu0 %v1551
      %v1700 = vpop.f32.mrb[0].mxu0
      %v1701 = vadd.f32 0.0, %v1700
      %v1702 = vpop.f32.mrb[0].mxu0
      %v1703 = vpop.f32.mrb[0].mxu0
      %v1704 = vadd.f32 0.0, %v1703
      %v1705 = vpop.f32.mrb[0].mxu0
      %1706 = vmatprep.mubr.bf16.mxu0 0
      %1707 = vmatmul.mubr.bf16.gmra.mrb[0].mxu0 %v1552
      %v1708 = vpop.f32.mrb[0].mxu0
      %v1709 = vadd.f32 0.0, %v1708
      %v1710 = vpop.f32.mrb[0].mxu0
      %v1711 = vpop.f32.mrb[0].mxu0
      %v1712 = vadd.f32 0.0, %v1711
      %v1713 = vpop.f32.mrb[0].mxu0
      %1714 = vmatprep.mubr.bf16.mxu0 0
      %1715 = vmatmul.mubr.bf16.gmra.mrb[0].mxu0 %v1553
      %v1716 = vpop.f32.mrb[0].mxu0
      %v1717 = vadd.f32 0.0, %v1716
      %v1718 = vpop.f32.mrb[0].mxu0
      %v1719 = vpop.f32.mrb[0].mxu0
      %v1720 = vadd.f32 0.0, %v1719
      %v1721 = vpop.f32.mrb[0].mxu0
      %1722 = vmatprep.mubr.bf16.mxu0 0
      %1723 = vmatmul.mubr.bf16.gmra.mrb[0].mxu0 %v1554
      %v1724 = vpop.f32.mrb[0].mxu0
      %v1725 = vadd.f32 0.0, %v1724
      %v1726 = vpop.f32.mrb[0].mxu0
      %v1727 = vpop.f32.mrb[0].mxu0
      %v1728 = vadd.f32 0.0, %v1727
      %v1729 = vpop.f32.mrb[0].mxu0
      %1730 = vmatprep.mubr.bf16.mxu0 0
      %1731 = vmatmul.mubr.bf16.gmra.mrb[0].mxu0 %v1555
      %v1732 = vpop.f32.mrb[0].mxu0
      %v1733 = vadd.f32 0.0, %v1732
      %v1734 = vpop.f32.mrb[0].mxu0
      %v1735 = vpop.f32.mrb[0].mxu0
      %v1736 = vadd.f32 0.0, %v1735
      %v1737 = vpop.f32.mrb[0].mxu0
      %1738 = vmatprep.mubr.bf16.mxu0 0
      %1739 = vmatmul.mubr.bf16.gmra.mrb[0].mxu0 %v1556
      %v1740 = vpop.f32.mrb[0].mxu0
      %v1741 = vadd.f32 0.0, %v1740
      %v1742 = vpop.f32.mrb[0].mxu0
      %v1743 = vpop.f32.mrb[0].mxu0
      %v1744 = vadd.f32 0.0, %v1743
      %v1745 = vpop.f32.mrb[0].mxu0
      %1746 = vmatprep.mubr.bf16.mxu0 0
      %1747 = vmatmul.mubr.bf16.gmra.mrb[0].mxu0 %v1557
      %v1748 = vpop.f32.mrb[0].mxu0
      %v1749 = vadd.f32 0.0, %v1748
      %v1750 = vpop.f32.mrb[0].mxu0
      %v1751 = vpop.f32.mrb[0].mxu0
      %v1752 = vadd.f32 0.0, %v1751
      %v1753 = vpop.f32.mrb[0].mxu0
      %1754 = vmatprep.mubr.bf16.mxu0 0
      %1755 = vmatmul.mubr.bf16.gmra.mrb[0].mxu0 %v1558
      %v1756 = vpop.f32.mrb[0].mxu0
      %v1757 = vadd.f32 0.0, %v1756
      %v1758 = vpop.f32.mrb[0].mxu0
      %v1759 = vpop.f32.mrb[0].mxu0
      %v1760 = vadd.f32 0.0, %v1759
      %v1761 = vpop.f32.mrb[0].mxu0
      %1762 = vmatprep.mubr.bf16.mxu0 0
      %1763 = vmatmul.mubr.bf16.gmra.mrb[0].mxu0 %v1559
      %v1764 = vpop.f32.mrb[0].mxu0
      %v1765 = vadd.f32 0.0, %v1764
      %v1766 = vpop.f32.mrb[0].mxu0
      %v1767 = vpop.f32.mrb[0].mxu0
      %v1768 = vadd.f32 0.0, %v1767
      %v1769 = vpop.f32.mrb[0].mxu0
      %1770 = vmatprep.mubr.bf16.mxu0 0
      %1771 = vmatmul.mubr.bf16.gmra.mrb[0].mxu0 %v1560
      %v1772 = vpop.f32.mrb[0].mxu0
      %v1773 = vadd.f32 0.0, %v1772
      %v1774 = vpop.f32.mrb[0].mxu0
      %v1775 = vpop.f32.mrb[0].mxu0
      %v1776 = vadd.f32 0.0, %v1775
      %v1777 = vpop.f32.mrb[0].mxu0
      %1778 = vmatprep.mubr.bf16.mxu0 0
      %1779 = vmatmul.mubr.bf16.gmra.mrb[0].mxu0 %v1561
      %v1780 = vpop.f32.mrb[0].mxu0
      %v1781 = vadd.f32 0.0, %v1780
      %v1782 = vpop.f32.mrb[0].mxu0
      %v1783 = vpop.f32.mrb[0].mxu0
      %v1784 = vadd.f32 0.0, %v1783
      %v1785 = vpop.f32.mrb[0].mxu0
      %1786 = vdwg.mxu0
      %v1787 = vadd.f32 %v1208, %v1661
      %v1788 = vadd.f32 %v1211, %v1664
      %v1789 = vadd.f32 %v1216, %v1669
      %v1790 = vadd.f32 %v1219, %v1672
      %v1791 = vadd.f32 %v1224, %v1677
      %v1792 = vadd.f32 %v1227, %v1680
      %v1793 = vadd.f32 %v1232, %v1685
      %v1794 = vadd.f32 %v1235, %v1688
      %v1795 = vadd.f32 %v1240, %v1693
      %v1796 = vadd.f32 %v1243, %v1696
      %v1797 = vadd.f32 %v1248, %v1701
      %v1798 = vadd.f32 %v1251, %v1704
      %v1799 = vadd.f32 %v1256, %v1709
      %v1800 = vadd.f32 %v1259, %v1712
      %v1801 = vadd.f32 %v1264, %v1717
      %v1802 = vadd.f32 %v1267, %v1720
      %v1803 = vadd.f32 %v1272, %v1725
      %v1804 = vadd.f32 %v1275, %v1728
      %v1805 = vadd.f32 %v1280, %v1733
      %v1806 = vadd.f32 %v1283, %v1736
      %v1807 = vadd.f32 %v1288, %v1741
      %v1808 = vadd.f32 %v1291, %v1744
      %v1809 = vadd.f32 %v1296, %v1749
      %v1810 = vadd.f32 %v1299, %v1752
      %v1811 = vadd.f32 %v1304, %v1757
      %v1812 = vadd.f32 %v1307, %v1760
      %v1813 = vadd.f32 %v1312, %v1765
      %v1814 = vadd.f32 %v1315, %v1768
      %v1815 = vadd.f32 %v1320, %v1773
      %v1816 = vadd.f32 %v1323, %v1776
      %v1817 = vadd.f32 %v1328, %v1781
      %v1818 = vadd.f32 %v1331, %v1784
      %s1819 = sadd.s32 %s284, 1
      %s1820 = smul.u32 %s1819, 3
      %s1821 = smul.addr %s1820, 4
      %s1822 = scalar_lea.vmem %s259, %s1821
      %v1823 = vld [vmem:[%s1822] sm:$0xf]
      %v1824 = vld [vmem:[%s1822 + $0x4] sm:$0xf]
      %v1825 = vld [vmem:[%s1822 + $0xc] sm:$0xf]
      %v1826 = vld [vmem:[%s1822 + $0x10] sm:$0xf]
      %v1827 = vld [vmem:[%s1822 + $0x18] sm:$0xf]
      %v1828 = vld [vmem:[%s1822 + $0x1c] sm:$0xf]
      %v1829 = vld [vmem:[%s1822 + $0x24] sm:$0xf]
      %v1830 = vld [vmem:[%s1822 + $0x28] sm:$0xf]
      %v1831 = vld [vmem:[%s1822 + $0x30] sm:$0xf]
      %v1832 = vld [vmem:[%s1822 + $0x34] sm:$0xf]
      %v1833 = vld [vmem:[%s1822 + $0x3c] sm:$0xf]
      %v1834 = vld [vmem:[%s1822 + $0x40] sm:$0xf]
      %v1835 = vld [vmem:[%s1822 + $0x48] sm:$0xf]
      %v1836 = vld [vmem:[%s1822 + $0x4c] sm:$0xf]
      %v1837 = vld [vmem:[%s1822 + $0x54] sm:$0xf]
      %v1838 = vld [vmem:[%s1822 + $0x58] sm:$0xf]
      %v1839 = vld [vmem:[%s1822 + $0x60] sm:$0xf]
      %v1840 = vld [vmem:[%s1822 + $0x64] sm:$0xf]
      %v1841 = vld [vmem:[%s1822 + $0x6c] sm:$0xf]
      %v1842 = vld [vmem:[%s1822 + $0x70] sm:$0xf]
      %v1843 = vld [vmem:[%s1822 + $0x78] sm:$0xf]
      %v1844 = vld [vmem:[%s1822 + $0x7c] sm:$0xf]
      %v1845 = vld [vmem:[%s1822 + $0x84] sm:$0xf]
      %v1846 = vld [vmem:[%s1822 + $0x88] sm:$0xf]
      %v1847 = vld [vmem:[%s1822 + $0x90] sm:$0xf]
      %v1848 = vld [vmem:[%s1822 + $0x94] sm:$0xf]
      %v1849 = vld [vmem:[%s1822 + $0x9c] sm:$0xf]
      %v1850 = vld [vmem:[%s1822 + $0xa0] sm:$0xf]
      %v1851 = vld [vmem:[%s1822 + $0xa8] sm:$0xf]
      %v1852 = vld [vmem:[%s1822 + $0xac] sm:$0xf]
      %v1853 = vld [vmem:[%s1822 + $0xb4] sm:$0xf]
      %v1854 = vld [vmem:[%s1822 + $0xb8] sm:$0xf]
      %s1855 = scalar_lea.vmem %s1, 192
      %v1856 = vld [vmem:[%s1855] sm:$0xf]
      %v1857 = vld [vmem:[%s1855 + $0x4] sm:$0xf]
      %v1858 = vld [vmem:[%s1855 + $0x8] sm:$0xf]
      %v1859 = vld [vmem:[%s1855 + $0xc] sm:$0xf]
      %v1860 = vld [vmem:[%s1855 + $0x10] sm:$0xf]
      %v1861 = vld [vmem:[%s1855 + $0x14] sm:$0xf]
      %v1862 = vld [vmem:[%s1855 + $0x18] sm:$0xf]
      %v1863 = vld [vmem:[%s1855 + $0x1c] sm:$0xf]
      %v1864 = vld [vmem:[%s1855 + $0x20] sm:$0xf]
      %v1865 = vld [vmem:[%s1855 + $0x24] sm:$0xf]
      %v1866 = vld [vmem:[%s1855 + $0x28] sm:$0xf]
      %v1867 = vld [vmem:[%s1855 + $0x2c] sm:$0xf]
      %v1868 = vld [vmem:[%s1855 + $0x30] sm:$0xf]
      %v1869 = vld [vmem:[%s1855 + $0x34] sm:$0xf]
      %v1870 = vld [vmem:[%s1855 + $0x38] sm:$0xf]
      %v1871 = vld [vmem:[%s1855 + $0x3c] sm:$0xf]
      %v1904 = vunpack.c.l.b16 %v1823
      %v1905 = vunpack.c.l.b16 %v1824
      %v1906 = vunpack.c.l.b16 %v1825
      %v1907 = vunpack.c.l.b16 %v1826
      %v1908 = vunpack.c.l.b16 %v1827
      %v1909 = vunpack.c.l.b16 %v1828
      %v1910 = vunpack.c.l.b16 %v1829
      %v1911 = vunpack.c.l.b16 %v1830
      %v1912 = vunpack.c.l.b16 %v1831
      %v1913 = vunpack.c.l.b16 %v1832
      %v1914 = vunpack.c.l.b16 %v1833
      %v1915 = vunpack.c.l.b16 %v1834
      %v1916 = vunpack.c.l.b16 %v1835
      %v1917 = vunpack.c.l.b16 %v1836
      %v1918 = vunpack.c.l.b16 %v1837
      %v1919 = vunpack.c.l.b16 %v1838
      %v1920 = vunpack.c.l.b16 %v1839
      %v1921 = vunpack.c.l.b16 %v1840
      %v1922 = vunpack.c.l.b16 %v1841
      %v1923 = vunpack.c.l.b16 %v1842
      %v1924 = vunpack.c.l.b16 %v1843
      %v1925 = vunpack.c.l.b16 %v1844
      %v1926 = vunpack.c.l.b16 %v1845
      %v1927 = vunpack.c.l.b16 %v1846
      %v1928 = vunpack.c.l.b16 %v1847
      %v1929 = vunpack.c.l.b16 %v1848
      %v1930 = vunpack.c.l.b16 %v1849
      %v1931 = vunpack.c.l.b16 %v1850
      %v1932 = vunpack.c.l.b16 %v1851
      %v1933 = vunpack.c.l.b16 %v1852
      %v1934 = vunpack.c.l.b16 %v1853
      %v1935 = vunpack.c.l.b16 %v1854
      %v1936 = vpack.c.b16 %v1905, %v1904
      %v1937 = vpack.c.b16 %v1907, %v1906
      %v1938 = vpack.c.b16 %v1909, %v1908
      %v1939 = vpack.c.b16 %v1911, %v1910
      %v1940 = vpack.c.b16 %v1913, %v1912
      %v1941 = vpack.c.b16 %v1915, %v1914
      %v1942 = vpack.c.b16 %v1917, %v1916
      %v1943 = vpack.c.b16 %v1919, %v1918
      %v1944 = vpack.c.b16 %v1921, %v1920
      %v1945 = vpack.c.b16 %v1923, %v1922
      %v1946 = vpack.c.b16 %v1925, %v1924
      %v1947 = vpack.c.b16 %v1927, %v1926
      %v1948 = vpack.c.b16 %v1929, %v1928
      %v1949 = vpack.c.b16 %v1931, %v1930
      %v1950 = vpack.c.b16 %v1933, %v1932
      %v1951 = vpack.c.b16 %v1935, %v1934
      %v1984 = vunpack.c.l.b16 %v1856
      %v1985 = vunpack.c.l.b16 %v1857
      %v1986 = vunpack.c.l.b16 %v1858
      %v1987 = vunpack.c.l.b16 %v1859
      %v1988 = vunpack.c.l.b16 %v1860
      %v1989 = vunpack.c.l.b16 %v1861
      %v1990 = vunpack.c.l.b16 %v1862
      %v1991 = vunpack.c.l.b16 %v1863
      %v1992 = vunpack.c.l.b16 %v1864
      %v1993 = vunpack.c.l.b16 %v1865
      %v1994 = vunpack.c.l.b16 %v1866
      %v1995 = vunpack.c.l.b16 %v1867
      %v1996 = vunpack.c.l.b16 %v1868
      %v1997 = vunpack.c.l.b16 %v1869
      %v1998 = vunpack.c.l.b16 %v1870
      %v1999 = vunpack.c.l.b16 %v1871
      %v2000 = vpack.c.b16 %v1985, %v1984
      %v2001 = vpack.c.b16 %v1987, %v1986
      %v2002 = vpack.c.b16 %v1989, %v1988
      %v2003 = vpack.c.b16 %v1991, %v1990
      %v2004 = vpack.c.b16 %v1993, %v1992
      %v2005 = vpack.c.b16 %v1995, %v1994
      %v2006 = vpack.c.b16 %v1997, %v1996
      %v2007 = vpack.c.b16 %v1999, %v1998
      %2016 = vmatprep.subr.bf16.mxu0 0
      %2017 = vmatpush1.bf16.msra.mxu0 %v2000
      %2018 = vmatprep.subr.bf16.mxu0 0
      %2019 = vmatpush1.bf16.msra.mxu0 %v2001
      %2020 = vmatprep.subr.bf16.mxu0 0
      %2021 = vmatpush1.bf16.msra.mxu0 %v2002
      %2022 = vmatprep.subr.bf16.mxu0 0
      %2023 = vmatpush1.bf16.msra.mxu0 %v2003
      %2024 = vmatprep.subr.bf16.mxu0 0
      %2025 = vmatpush1.bf16.msra.mxu0 %v2004
      %2026 = vmatprep.subr.bf16.mxu0 0
      %2027 = vmatpush1.bf16.msra.mxu0 %v2005
      %2028 = vmatprep.subr.bf16.mxu0 0
      %2029 = vmatpush1.bf16.msra.mxu0 %v2006
      %2030 = vmatprep.subr.bf16.mxu0 0
      %2031 = vmatpush1.bf16.msra.mxu0 %v2007
      %2032 = vmatprep.subr.bf16.mxu0 0
      %2033 = vmatpush1.bf16.msra.mxu0 0
      %2034 = vmatprep.subr.bf16.mxu0 0
      %2035 = vmatpush1.bf16.msra.mxu0 0
      %2036 = vmatprep.subr.bf16.mxu0 0
      %2037 = vmatpush1.bf16.msra.mxu0 0
      %2038 = vmatprep.subr.bf16.mxu0 0
      %2039 = vmatpush1.bf16.msra.mxu0 0
      %2040 = vmatprep.subr.bf16.mxu0 0
      %2041 = vmatpush1.bf16.msra.mxu0 0
      %2042 = vmatprep.subr.bf16.mxu0 0
      %2043 = vmatpush1.bf16.msra.mxu0 0
      %2044 = vmatprep.subr.bf16.mxu0 0
      %2045 = vmatpush1.bf16.msra.mxu0 0
      %2046 = vmatprep.subr.bf16.mxu0 0
      %2047 = vmatpush1.bf16.msra.mxu0 0
      %2048 = vmatprep.mubr.bf16.mxu0 0
      %2049 = vmatmul.mubr.bf16.gmra.mrb[0].mxu0 %v1936
      %v2050 = vpop.f32.mrb[0].mxu0
      %v2051 = vadd.f32 0.0, %v2050
      %v2052 = vpop.f32.mrb[0].mxu0
      %v2053 = vpop.f32.mrb[0].mxu0
      %v2054 = vadd.f32 0.0, %v2053
      %v2055 = vpop.f32.mrb[0].mxu0
      %2056 = vmatprep.mubr.bf16.mxu0 0
      %2057 = vmatmul.mubr.bf16.gmra.mrb[0].mxu0 %v1937
      %v2058 = vpop.f32.mrb[0].mxu0
      %v2059 = vadd.f32 0.0, %v2058
      %v2060 = vpop.f32.mrb[0].mxu0
      %v2061 = vpop.f32.mrb[0].mxu0
      %v2062 = vadd.f32 0.0, %v2061
      %v2063 = vpop.f32.mrb[0].mxu0
      %2064 = vmatprep.mubr.bf16.mxu0 0
      %2065 = vmatmul.mubr.bf16.gmra.mrb[0].mxu0 %v1938
      %v2066 = vpop.f32.mrb[0].mxu0
      %v2067 = vadd.f32 0.0, %v2066
      %v2068 = vpop.f32.mrb[0].mxu0
      %v2069 = vpop.f32.mrb[0].mxu0
      %v2070 = vadd.f32 0.0, %v2069
      %v2071 = vpop.f32.mrb[0].mxu0
      %2072 = vmatprep.mubr.bf16.mxu0 0
      %2073 = vmatmul.mubr.bf16.gmra.mrb[0].mxu0 %v1939
      %v2074 = vpop.f32.mrb[0].mxu0
      %v2075 = vadd.f32 0.0, %v2074
      %v2076 = vpop.f32.mrb[0].mxu0
      %v2077 = vpop.f32.mrb[0].mxu0
      %v2078 = vadd.f32 0.0, %v2077
      %v2079 = vpop.f32.mrb[0].mxu0
      %2080 = vmatprep.mubr.bf16.mxu0 0
      %2081 = vmatmul.mubr.bf16.gmra.mrb[0].mxu0 %v1940
      %v2082 = vpop.f32.mrb[0].mxu0
      %v2083 = vadd.f32 0.0, %v2082
      %v2084 = vpop.f32.mrb[0].mxu0
      %v2085 = vpop.f32.mrb[0].mxu0
      %v2086 = vadd.f32 0.0, %v2085
      %v2087 = vpop.f32.mrb[0].mxu0
      %2088 = vmatprep.mubr.bf16.mxu0 0
      %2089 = vmatmul.mubr.bf16.gmra.mrb[0].mxu0 %v1941
      %v2090 = vpop.f32.mrb[0].mxu0
      %v2091 = vadd.f32 0.0, %v2090
      %v2092 = vpop.f32.mrb[0].mxu0
      %v2093 = vpop.f32.mrb[0].mxu0
      %v2094 = vadd.f32 0.0, %v2093
      %v2095 = vpop.f32.mrb[0].mxu0
      %2096 = vmatprep.mubr.bf16.mxu0 0
      %2097 = vmatmul.mubr.bf16.gmra.mrb[0].mxu0 %v1942
      %v2098 = vpop.f32.mrb[0].mxu0
      %v2099 = vadd.f32 0.0, %v2098
      %v2100 = vpop.f32.mrb[0].mxu0
      %v2101 = vpop.f32.mrb[0].mxu0
      %v2102 = vadd.f32 0.0, %v2101
      %v2103 = vpop.f32.mrb[0].mxu0
      %2104 = vmatprep.mubr.bf16.mxu0 0
      %2105 = vmatmul.mubr.bf16.gmra.mrb[0].mxu0 %v1943
      %v2106 = vpop.f32.mrb[0].mxu0
      %v2107 = vadd.f32 0.0, %v2106
      %v2108 = vpop.f32.mrb[0].mxu0
      %v2109 = vpop.f32.mrb[0].mxu0
      %v2110 = vadd.f32 0.0, %v2109
      %v2111 = vpop.f32.mrb[0].mxu0
      %2112 = vmatprep.mubr.bf16.mxu0 0
      %2113 = vmatmul.mubr.bf16.gmra.mrb[0].mxu0 %v1944
      %v2114 = vpop.f32.mrb[0].mxu0
      %v2115 = vadd.f32 0.0, %v2114
      %v2116 = vpop.f32.mrb[0].mxu0
      %v2117 = vpop.f32.mrb[0].mxu0
      %v2118 = vadd.f32 0.0, %v2117
      %v2119 = vpop.f32.mrb[0].mxu0
      %2120 = vmatprep.mubr.bf16.mxu0 0
      %2121 = vmatmul.mubr.bf16.gmra.mrb[0].mxu0 %v1945
      %v2122 = vpop.f32.mrb[0].mxu0
      %v2123 = vadd.f32 0.0, %v2122
      %v2124 = vpop.f32.mrb[0].mxu0
      %v2125 = vpop.f32.mrb[0].mxu0
      %v2126 = vadd.f32 0.0, %v2125
      %v2127 = vpop.f32.mrb[0].mxu0
      %2128 = vmatprep.mubr.bf16.mxu0 0
      %2129 = vmatmul.mubr.bf16.gmra.mrb[0].mxu0 %v1946
      %v2130 = vpop.f32.mrb[0].mxu0
      %v2131 = vadd.f32 0.0, %v2130
      %v2132 = vpop.f32.mrb[0].mxu0
      %v2133 = vpop.f32.mrb[0].mxu0
      %v2134 = vadd.f32 0.0, %v2133
      %v2135 = vpop.f32.mrb[0].mxu0
      %2136 = vmatprep.mubr.bf16.mxu0 0
      %2137 = vmatmul.mubr.bf16.gmra.mrb[0].mxu0 %v1947
      %v2138 = vpop.f32.mrb[0].mxu0
      %v2139 = vadd.f32 0.0, %v2138
      %v2140 = vpop.f32.mrb[0].mxu0
      %v2141 = vpop.f32.mrb[0].mxu0
      %v2142 = vadd.f32 0.0, %v2141
      %v2143 = vpop.f32.mrb[0].mxu0
      %2144 = vmatprep.mubr.bf16.mxu0 0
      %2145 = vmatmul.mubr.bf16.gmra.mrb[0].mxu0 %v1948
      %v2146 = vpop.f32.mrb[0].mxu0
      %v2147 = vadd.f32 0.0, %v2146
      %v2148 = vpop.f32.mrb[0].mxu0
      %v2149 = vpop.f32.mrb[0].mxu0
      %v2150 = vadd.f32 0.0, %v2149
      %v2151 = vpop.f32.mrb[0].mxu0
      %2152 = vmatprep.mubr.bf16.mxu0 0
      %2153 = vmatmul.mubr.bf16.gmra.mrb[0].mxu0 %v1949
      %v2154 = vpop.f32.mrb[0].mxu0
      %v2155 = vadd.f32 0.0, %v2154
      %v2156 = vpop.f32.mrb[0].mxu0
      %v2157 = vpop.f32.mrb[0].mxu0
      %v2158 = vadd.f32 0.0, %v2157
      %v2159 = vpop.f32.mrb[0].mxu0
      %2160 = vmatprep.mubr.bf16.mxu0 0
      %2161 = vmatmul.mubr.bf16.gmra.mrb[0].mxu0 %v1950
      %v2162 = vpop.f32.mrb[0].mxu0
      %v2163 = vadd.f32 0.0, %v2162
      %v2164 = vpop.f32.mrb[0].mxu0
      %v2165 = vpop.f32.mrb[0].mxu0
      %v2166 = vadd.f32 0.0, %v2165
      %v2167 = vpop.f32.mrb[0].mxu0
      %2168 = vmatprep.mubr.bf16.mxu0 0
      %2169 = vmatmul.mubr.bf16.gmra.mrb[0].mxu0 %v1951
      %v2170 = vpop.f32.mrb[0].mxu0
      %v2171 = vadd.f32 0.0, %v2170
      %v2172 = vpop.f32.mrb[0].mxu0
      %v2173 = vpop.f32.mrb[0].mxu0
      %v2174 = vadd.f32 0.0, %v2173
      %v2175 = vpop.f32.mrb[0].mxu0
      %2176 = vdwg.mxu0
      %v2177 = vadd.f32 %v1787, %v2051
      %v2178 = vadd.f32 %v1788, %v2054
      %v2179 = vadd.f32 %v1789, %v2059
      %v2180 = vadd.f32 %v1790, %v2062
      %v2181 = vadd.f32 %v1791, %v2067
      %v2182 = vadd.f32 %v1792, %v2070
      %v2183 = vadd.f32 %v1793, %v2075
      %v2184 = vadd.f32 %v1794, %v2078
      %v2185 = vadd.f32 %v1795, %v2083
      %v2186 = vadd.f32 %v1796, %v2086
      %v2187 = vadd.f32 %v1797, %v2091
      %v2188 = vadd.f32 %v1798, %v2094
      %v2189 = vadd.f32 %v1799, %v2099
      %v2190 = vadd.f32 %v1800, %v2102
      %v2191 = vadd.f32 %v1801, %v2107
      %v2192 = vadd.f32 %v1802, %v2110
      %v2193 = vadd.f32 %v1803, %v2115
      %v2194 = vadd.f32 %v1804, %v2118
      %v2195 = vadd.f32 %v1805, %v2123
      %v2196 = vadd.f32 %v1806, %v2126
      %v2197 = vadd.f32 %v1807, %v2131
      %v2198 = vadd.f32 %v1808, %v2134
      %v2199 = vadd.f32 %v1809, %v2139
      %v2200 = vadd.f32 %v1810, %v2142
      %v2201 = vadd.f32 %v1811, %v2147
      %v2202 = vadd.f32 %v1812, %v2150
      %v2203 = vadd.f32 %v1813, %v2155
      %v2204 = vadd.f32 %v1814, %v2158
      %v2205 = vadd.f32 %v1815, %v2163
      %v2206 = vadd.f32 %v1816, %v2166
      %v2207 = vadd.f32 %v1817, %v2171
      %v2208 = vadd.f32 %v1818, %v2174
      %v2209 = vld [vmem:[%s1822] sm:$0xf]
      %v2210 = vld [vmem:[%s1822 + $0x4] sm:$0xf]
      %v2211 = vld [vmem:[%s1822 + $0x8] sm:$0x1]
      %v2212 = vld [vmem:[%s1822 + $0xc] sm:$0xf]
      %v2213 = vld [vmem:[%s1822 + $0x10] sm:$0xf]
      %v2214 = vld [vmem:[%s1822 + $0x14] sm:$0x1]
      %v2215 = vld [vmem:[%s1822 + $0x18] sm:$0xf]
      %v2216 = vld [vmem:[%s1822 + $0x1c] sm:$0xf]
      %v2217 = vld [vmem:[%s1822 + $0x20] sm:$0x1]
      %v2218 = vld [vmem:[%s1822 + $0x24] sm:$0xf]
      %v2219 = vld [vmem:[%s1822 + $0x28] sm:$0xf]
      %v2220 = vld [vmem:[%s1822 + $0x2c] sm:$0x1]
      %v2221 = vld [vmem:[%s1822 + $0x30] sm:$0xf]
      %v2222 = vld [vmem:[%s1822 + $0x34] sm:$0xf]
      %v2223 = vld [vmem:[%s1822 + $0x38] sm:$0x1]
      %v2224 = vld [vmem:[%s1822 + $0x3c] sm:$0xf]
      %v2225 = vld [vmem:[%s1822 + $0x40] sm:$0xf]
      %v2226 = vld [vmem:[%s1822 + $0x44] sm:$0x1]
      %v2227 = vld [vmem:[%s1822 + $0x48] sm:$0xf]
      %v2228 = vld [vmem:[%s1822 + $0x4c] sm:$0xf]
      %v2229 = vld [vmem:[%s1822 + $0x50] sm:$0x1]
      %v2230 = vld [vmem:[%s1822 + $0x54] sm:$0xf]
      %v2231 = vld [vmem:[%s1822 + $0x58] sm:$0xf]
      %v2232 = vld [vmem:[%s1822 + $0x5c] sm:$0x1]
      %v2233 = vld [vmem:[%s1822 + $0x60] sm:$0xf]
      %v2234 = vld [vmem:[%s1822 + $0x64] sm:$0xf]
      %v2235 = vld [vmem:[%s1822 + $0x68] sm:$0x1]
      %v2236 = vld [vmem:[%s1822 + $0x6c] sm:$0xf]
      %v2237 = vld [vmem:[%s1822 + $0x70] sm:$0xf]
      %v2238 = vld [vmem:[%s1822 + $0x74] sm:$0x1]
      %v2239 = vld [vmem:[%s1822 + $0x78] sm:$0xf]
      %v2240 = vld [vmem:[%s1822 + $0x7c] sm:$0xf]
      %v2241 = vld [vmem:[%s1822 + $0x80] sm:$0x1]
      %v2242 = vld [vmem:[%s1822 + $0x84] sm:$0xf]
      %v2243 = vld [vmem:[%s1822 + $0x88] sm:$0xf]
      %v2244 = vld [vmem:[%s1822 + $0x8c] sm:$0x1]
      %v2245 = vld [vmem:[%s1822 + $0x90] sm:$0xf]
      %v2246 = vld [vmem:[%s1822 + $0x94] sm:$0xf]
      %v2247 = vld [vmem:[%s1822 + $0x98] sm:$0x1]
      %v2248 = vld [vmem:[%s1822 + $0x9c] sm:$0xf]
      %v2249 = vld [vmem:[%s1822 + $0xa0] sm:$0xf]
      %v2250 = vld [vmem:[%s1822 + $0xa4] sm:$0x1]
      %v2251 = vld [vmem:[%s1822 + $0xa8] sm:$0xf]
      %v2252 = vld [vmem:[%s1822 + $0xac] sm:$0xf]
      %v2253 = vld [vmem:[%s1822 + $0xb0] sm:$0x1]
      %v2254 = vld [vmem:[%s1822 + $0xb4] sm:$0xf]
      %v2255 = vld [vmem:[%s1822 + $0xb8] sm:$0xf]
      %v2256 = vld [vmem:[%s1822 + $0xbc] sm:$0x1]
      %v2258 = vshrl.u32 %v2209, 16
      %v2260 = vrot.slane %v2258, 4
      %v2261 = vshll.u32 %v2209, 16
      %v2263 = vrot.slane %v2261, 5
      %v2264 = vor.u32 %v2260, %v2263
      %v2265 = vrot.slane %v2264, 4
      %v2267 = vshll.u32 %v2210, 16
      %v2269 = vrot.slane %v2267, 5
      %v2270 = vsel %vm354, %v2265, %v2269
      %v2271 = vshrl.u32 %v2210, 16
      %v2273 = vrot.slane %v2271, 4
      %v2274 = vor.u32 %v2273, %v2269
      %v2275 = vrot.slane %v2274, 4
      %v2277 = vshll.u32 %v2211, 16
      %v2279 = vrot.slane %v2277, 5
      %v2280 = vsel %vm354, %v2275, %v2279
      %v2282 = vshrl.u32 %v2212, 16
      %v2284 = vrot.slane %v2282, 4
      %v2285 = vshll.u32 %v2212, 16
      %v2287 = vrot.slane %v2285, 5
      %v2288 = vor.u32 %v2284, %v2287
      %v2289 = vrot.slane %v2288, 4
      %v2291 = vshll.u32 %v2213, 16
      %v2293 = vrot.slane %v2291, 5
      %v2294 = vsel %vm354, %v2289, %v2293
      %v2295 = vshrl.u32 %v2213, 16
      %v2297 = vrot.slane %v2295, 4
      %v2298 = vor.u32 %v2297, %v2293
      %v2299 = vrot.slane %v2298, 4
      %v2301 = vshll.u32 %v2214, 16
      %v2303 = vrot.slane %v2301, 5
      %v2304 = vsel %vm354, %v2299, %v2303
      %v2306 = vshrl.u32 %v2215, 16
      %v2308 = vrot.slane %v2306, 4
      %v2309 = vshll.u32 %v2215, 16
      %v2311 = vrot.slane %v2309, 5
      %v2312 = vor.u32 %v2308, %v2311
      %v2313 = vrot.slane %v2312, 4
      %v2315 = vshll.u32 %v2216, 16
      %v2317 = vrot.slane %v2315, 5
      %v2318 = vsel %vm354, %v2313, %v2317
      %v2319 = vshrl.u32 %v2216, 16
      %v2321 = vrot.slane %v2319, 4
      %v2322 = vor.u32 %v2321, %v2317
      %v2323 = vrot.slane %v2322, 4
      %v2325 = vshll.u32 %v2217, 16
      %v2327 = vrot.slane %v2325, 5
      %v2328 = vsel %vm354, %v2323, %v2327
      %v2330 = vshrl.u32 %v2218, 16
      %v2332 = vrot.slane %v2330, 4
      %v2333 = vshll.u32 %v2218, 16
      %v2335 = vrot.slane %v2333, 5
      %v2336 = vor.u32 %v2332, %v2335
      %v2337 = vrot.slane %v2336, 4
      %v2339 = vshll.u32 %v2219, 16
      %v2341 = vrot.slane %v2339, 5
      %v2342 = vsel %vm354, %v2337, %v2341
      %v2343 = vshrl.u32 %v2219, 16
      %v2345 = vrot.slane %v2343, 4
      %v2346 = vor.u32 %v2345, %v2341
      %v2347 = vrot.slane %v2346, 4
      %v2349 = vshll.u32 %v2220, 16
      %v2351 = vrot.slane %v2349, 5
      %v2352 = vsel %vm354, %v2347, %v2351
      %v2354 = vshrl.u32 %v2221, 16
      %v2356 = vrot.slane %v2354, 4
      %v2357 = vshll.u32 %v2221, 16
      %v2359 = vrot.slane %v2357, 5
      %v2360 = vor.u32 %v2356, %v2359
      %v2361 = vrot.slane %v2360, 4
      %v2363 = vshll.u32 %v2222, 16
      %v2365 = vrot.slane %v2363, 5
      %v2366 = vsel %vm354, %v2361, %v2365
      %v2367 = vshrl.u32 %v2222, 16
      %v2369 = vrot.slane %v2367, 4
      %v2370 = vor.u32 %v2369, %v2365
      %v2371 = vrot.slane %v2370, 4
      %v2373 = vshll.u32 %v2223, 16
      %v2375 = vrot.slane %v2373, 5
      %v2376 = vsel %vm354, %v2371, %v2375
      %v2378 = vshrl.u32 %v2224, 16
      %v2380 = vrot.slane %v2378, 4
      %v2381 = vshll.u32 %v2224, 16
      %v2383 = vrot.slane %v2381, 5
      %v2384 = vor.u32 %v2380, %v2383
      %v2385 = vrot.slane %v2384, 4
      %v2387 = vshll.u32 %v2225, 16
      %v2389 = vrot.slane %v2387, 5
      %v2390 = vsel %vm354, %v2385, %v2389
      %v2391 = vshrl.u32 %v2225, 16
      %v2393 = vrot.slane %v2391, 4
      %v2394 = vor.u32 %v2393, %v2389
      %v2395 = vrot.slane %v2394, 4
      %v2397 = vshll.u32 %v2226, 16
      %v2399 = vrot.slane %v2397, 5
      %v2400 = vsel %vm354, %v2395, %v2399
      %v2402 = vshrl.u32 %v2227, 16
      %v2404 = vrot.slane %v2402, 4
      %v2405 = vshll.u32 %v2227, 16
      %v2407 = vrot.slane %v2405, 5
      %v2408 = vor.u32 %v2404, %v2407
      %v2409 = vrot.slane %v2408, 4
      %v2411 = vshll.u32 %v2228, 16
      %v2413 = vrot.slane %v2411, 5
      %v2414 = vsel %vm354, %v2409, %v2413
      %v2415 = vshrl.u32 %v2228, 16
      %v2417 = vrot.slane %v2415, 4
      %v2418 = vor.u32 %v2417, %v2413
      %v2419 = vrot.slane %v2418, 4
      %v2421 = vshll.u32 %v2229, 16
      %v2423 = vrot.slane %v2421, 5
      %v2424 = vsel %vm354, %v2419, %v2423
      %v2426 = vshrl.u32 %v2230, 16
      %v2428 = vrot.slane %v2426, 4
      %v2429 = vshll.u32 %v2230, 16
      %v2431 = vrot.slane %v2429, 5
      %v2432 = vor.u32 %v2428, %v2431
      %v2433 = vrot.slane %v2432, 4
      %v2435 = vshll.u32 %v2231, 16
      %v2437 = vrot.slane %v2435, 5
      %v2438 = vsel %vm354, %v2433, %v2437
      %v2439 = vshrl.u32 %v2231, 16
      %v2441 = vrot.slane %v2439, 4
      %v2442 = vor.u32 %v2441, %v2437
      %v2443 = vrot.slane %v2442, 4
      %v2445 = vshll.u32 %v2232, 16
      %v2447 = vrot.slane %v2445, 5
      %v2448 = vsel %vm354, %v2443, %v2447
      %v2450 = vshrl.u32 %v2233, 16
      %v2452 = vrot.slane %v2450, 4
      %v2453 = vshll.u32 %v2233, 16
      %v2455 = vrot.slane %v2453, 5
      %v2456 = vor.u32 %v2452, %v2455
      %v2457 = vrot.slane %v2456, 4
      %v2459 = vshll.u32 %v2234, 16
      %v2461 = vrot.slane %v2459, 5
      %v2462 = vsel %vm354, %v2457, %v2461
      %v2463 = vshrl.u32 %v2234, 16
      %v2465 = vrot.slane %v2463, 4
      %v2466 = vor.u32 %v2465, %v2461
      %v2467 = vrot.slane %v2466, 4
      %v2469 = vshll.u32 %v2235, 16
      %v2471 = vrot.slane %v2469, 5
      %v2472 = vsel %vm354, %v2467, %v2471
      %v2474 = vshrl.u32 %v2236, 16
      %v2476 = vrot.slane %v2474, 4
      %v2477 = vshll.u32 %v2236, 16
      %v2479 = vrot.slane %v2477, 5
      %v2480 = vor.u32 %v2476, %v2479
      %v2481 = vrot.slane %v2480, 4
      %v2483 = vshll.u32 %v2237, 16
      %v2485 = vrot.slane %v2483, 5
      %v2486 = vsel %vm354, %v2481, %v2485
      %v2487 = vshrl.u32 %v2237, 16
      %v2489 = vrot.slane %v2487, 4
      %v2490 = vor.u32 %v2489, %v2485
      %v2491 = vrot.slane %v2490, 4
      %v2493 = vshll.u32 %v2238, 16
      %v2495 = vrot.slane %v2493, 5
      %v2496 = vsel %vm354, %v2491, %v2495
      %v2498 = vshrl.u32 %v2239, 16
      %v2500 = vrot.slane %v2498, 4
      %v2501 = vshll.u32 %v2239, 16
      %v2503 = vrot.slane %v2501, 5
      %v2504 = vor.u32 %v2500, %v2503
      %v2505 = vrot.slane %v2504, 4
      %v2507 = vshll.u32 %v2240, 16
      %v2509 = vrot.slane %v2507, 5
      %v2510 = vsel %vm354, %v2505, %v2509
      %v2511 = vshrl.u32 %v2240, 16
      %v2513 = vrot.slane %v2511, 4
      %v2514 = vor.u32 %v2513, %v2509
      %v2515 = vrot.slane %v2514, 4
      %v2517 = vshll.u32 %v2241, 16
      %v2519 = vrot.slane %v2517, 5
      %v2520 = vsel %vm354, %v2515, %v2519
      %v2522 = vshrl.u32 %v2242, 16
      %v2524 = vrot.slane %v2522, 4
      %v2525 = vshll.u32 %v2242, 16
      %v2527 = vrot.slane %v2525, 5
      %v2528 = vor.u32 %v2524, %v2527
      %v2529 = vrot.slane %v2528, 4
      %v2531 = vshll.u32 %v2243, 16
      %v2533 = vrot.slane %v2531, 5
      %v2534 = vsel %vm354, %v2529, %v2533
      %v2535 = vshrl.u32 %v2243, 16
      %v2537 = vrot.slane %v2535, 4
      %v2538 = vor.u32 %v2537, %v2533
      %v2539 = vrot.slane %v2538, 4
      %v2541 = vshll.u32 %v2244, 16
      %v2543 = vrot.slane %v2541, 5
      %v2544 = vsel %vm354, %v2539, %v2543
      %v2546 = vshrl.u32 %v2245, 16
      %v2548 = vrot.slane %v2546, 4
      %v2549 = vshll.u32 %v2245, 16
      %v2551 = vrot.slane %v2549, 5
      %v2552 = vor.u32 %v2548, %v2551
      %v2553 = vrot.slane %v2552, 4
      %v2555 = vshll.u32 %v2246, 16
      %v2557 = vrot.slane %v2555, 5
      %v2558 = vsel %vm354, %v2553, %v2557
      %v2559 = vshrl.u32 %v2246, 16
      %v2561 = vrot.slane %v2559, 4
      %v2562 = vor.u32 %v2561, %v2557
      %v2563 = vrot.slane %v2562, 4
      %v2565 = vshll.u32 %v2247, 16
      %v2567 = vrot.slane %v2565, 5
      %v2568 = vsel %vm354, %v2563, %v2567
      %v2570 = vshrl.u32 %v2248, 16
      %v2572 = vrot.slane %v2570, 4
      %v2573 = vshll.u32 %v2248, 16
      %v2575 = vrot.slane %v2573, 5
      %v2576 = vor.u32 %v2572, %v2575
      %v2577 = vrot.slane %v2576, 4
      %v2579 = vshll.u32 %v2249, 16
      %v2581 = vrot.slane %v2579, 5
      %v2582 = vsel %vm354, %v2577, %v2581
      %v2583 = vshrl.u32 %v2249, 16
      %v2585 = vrot.slane %v2583, 4
      %v2586 = vor.u32 %v2585, %v2581
      %v2587 = vrot.slane %v2586, 4
      %v2589 = vshll.u32 %v2250, 16
      %v2591 = vrot.slane %v2589, 5
      %v2592 = vsel %vm354, %v2587, %v2591
      %v2594 = vshrl.u32 %v2251, 16
      %v2596 = vrot.slane %v2594, 4
      %v2597 = vshll.u32 %v2251, 16
      %v2599 = vrot.slane %v2597, 5
      %v2600 = vor.u32 %v2596, %v2599
      %v2601 = vrot.slane %v2600, 4
      %v2603 = vshll.u32 %v2252, 16
      %v2605 = vrot.slane %v2603, 5
      %v2606 = vsel %vm354, %v2601, %v2605
      %v2607 = vshrl.u32 %v2252, 16
      %v2609 = vrot.slane %v2607, 4
      %v2610 = vor.u32 %v2609, %v2605
      %v2611 = vrot.slane %v2610, 4
      %v2613 = vshll.u32 %v2253, 16
      %v2615 = vrot.slane %v2613, 5
      %v2616 = vsel %vm354, %v2611, %v2615
      %v2618 = vshrl.u32 %v2254, 16
      %v2620 = vrot.slane %v2618, 4
      %v2621 = vshll.u32 %v2254, 16
      %v2623 = vrot.slane %v2621, 5
      %v2624 = vor.u32 %v2620, %v2623
      %v2625 = vrot.slane %v2624, 4
      %v2627 = vshll.u32 %v2255, 16
      %v2629 = vrot.slane %v2627, 5
      %v2630 = vsel %vm354, %v2625, %v2629
      %v2631 = vshrl.u32 %v2255, 16
      %v2633 = vrot.slane %v2631, 4
      %v2634 = vor.u32 %v2633, %v2629
      %v2635 = vrot.slane %v2634, 4
      %v2637 = vshll.u32 %v2256, 16
      %v2639 = vrot.slane %v2637, 5
      %v2640 = vsel %vm354, %v2635, %v2639
      %s2641 = scalar_lea.vmem %s1, 256
      %v2642 = vld [vmem:[%s2641] sm:$0xf]
      %v2643 = vld [vmem:[%s2641 + $0x4] sm:$0xf]
      %v2644 = vld [vmem:[%s2641 + $0x8] sm:$0xf]
      %v2645 = vld [vmem:[%s2641 + $0xc] sm:$0xf]
      %v2646 = vld [vmem:[%s2641 + $0x10] sm:$0xf]
      %v2647 = vld [vmem:[%s2641 + $0x14] sm:$0xf]
      %v2648 = vld [vmem:[%s2641 + $0x18] sm:$0xf]
      %v2649 = vld [vmem:[%s2641 + $0x1c] sm:$0xf]
      %v2650 = vld [vmem:[%s2641 + $0x20] sm:$0xf]
      %v2651 = vld [vmem:[%s2641 + $0x24] sm:$0xf]
      %v2652 = vld [vmem:[%s2641 + $0x28] sm:$0xf]
      %v2653 = vld [vmem:[%s2641 + $0x2c] sm:$0xf]
      %v2654 = vld [vmem:[%s2641 + $0x30] sm:$0xf]
      %v2655 = vld [vmem:[%s2641 + $0x34] sm:$0xf]
      %v2656 = vld [vmem:[%s2641 + $0x38] sm:$0xf]
      %v2657 = vld [vmem:[%s2641 + $0x3c] sm:$0xf]
      %v2658 = vunpack.c.l.b16 %v2270
      %v2659 = vunpack.c.l.b16 %v2280
      %v2660 = vunpack.c.l.b16 %v2294
      %v2661 = vunpack.c.l.b16 %v2304
      %v2662 = vunpack.c.l.b16 %v2318
      %v2663 = vunpack.c.l.b16 %v2328
      %v2664 = vunpack.c.l.b16 %v2342
      %v2665 = vunpack.c.l.b16 %v2352
      %v2666 = vunpack.c.l.b16 %v2366
      %v2667 = vunpack.c.l.b16 %v2376
      %v2668 = vunpack.c.l.b16 %v2390
      %v2669 = vunpack.c.l.b16 %v2400
      %v2670 = vunpack.c.l.b16 %v2414
      %v2671 = vunpack.c.l.b16 %v2424
      %v2672 = vunpack.c.l.b16 %v2438
      %v2673 = vunpack.c.l.b16 %v2448
      %v2674 = vunpack.c.l.b16 %v2462
      %v2675 = vunpack.c.l.b16 %v2472
      %v2676 = vunpack.c.l.b16 %v2486
      %v2677 = vunpack.c.l.b16 %v2496
      %v2678 = vunpack.c.l.b16 %v2510
      %v2679 = vunpack.c.l.b16 %v2520
      %v2680 = vunpack.c.l.b16 %v2534
      %v2681 = vunpack.c.l.b16 %v2544
      %v2682 = vunpack.c.l.b16 %v2558
      %v2683 = vunpack.c.l.b16 %v2568
      %v2684 = vunpack.c.l.b16 %v2582
      %v2685 = vunpack.c.l.b16 %v2592
      %v2686 = vunpack.c.l.b16 %v2606
      %v2687 = vunpack.c.l.b16 %v2616
      %v2688 = vunpack.c.l.b16 %v2630
      %v2689 = vunpack.c.l.b16 %v2640
      %v2690 = vpack.c.b16 %v2659, %v2658
      %v2691 = vpack.c.b16 %v2661, %v2660
      %v2692 = vpack.c.b16 %v2663, %v2662
      %v2693 = vpack.c.b16 %v2665, %v2664
      %v2694 = vpack.c.b16 %v2667, %v2666
      %v2695 = vpack.c.b16 %v2669, %v2668
      %v2696 = vpack.c.b16 %v2671, %v2670
      %v2697 = vpack.c.b16 %v2673, %v2672
      %v2698 = vpack.c.b16 %v2675, %v2674
      %v2699 = vpack.c.b16 %v2677, %v2676
      %v2700 = vpack.c.b16 %v2679, %v2678
      %v2701 = vpack.c.b16 %v2681, %v2680
      %v2702 = vpack.c.b16 %v2683, %v2682
      %v2703 = vpack.c.b16 %v2685, %v2684
      %v2704 = vpack.c.b16 %v2687, %v2686
      %v2705 = vpack.c.b16 %v2689, %v2688
      %v2738 = vunpack.c.l.b16 %v2642
      %v2739 = vunpack.c.l.b16 %v2643
      %v2740 = vunpack.c.l.b16 %v2644
      %v2741 = vunpack.c.l.b16 %v2645
      %v2742 = vunpack.c.l.b16 %v2646
      %v2743 = vunpack.c.l.b16 %v2647
      %v2744 = vunpack.c.l.b16 %v2648
      %v2745 = vunpack.c.l.b16 %v2649
      %v2746 = vunpack.c.l.b16 %v2650
      %v2747 = vunpack.c.l.b16 %v2651
      %v2748 = vunpack.c.l.b16 %v2652
      %v2749 = vunpack.c.l.b16 %v2653
      %v2750 = vunpack.c.l.b16 %v2654
      %v2751 = vunpack.c.l.b16 %v2655
      %v2752 = vunpack.c.l.b16 %v2656
      %v2753 = vunpack.c.l.b16 %v2657
      %v2754 = vpack.c.b16 %v2739, %v2738
      %v2755 = vpack.c.b16 %v2741, %v2740
      %v2756 = vpack.c.b16 %v2743, %v2742
      %v2757 = vpack.c.b16 %v2745, %v2744
      %v2758 = vpack.c.b16 %v2747, %v2746
      %v2759 = vpack.c.b16 %v2749, %v2748
      %v2760 = vpack.c.b16 %v2751, %v2750
      %v2761 = vpack.c.b16 %v2753, %v2752
      %2770 = vmatprep.subr.bf16.mxu0 0
      %2771 = vmatpush1.bf16.msra.mxu0 %v2754
      %2772 = vmatprep.subr.bf16.mxu0 0
      %2773 = vmatpush1.bf16.msra.mxu0 %v2755
      %2774 = vmatprep.subr.bf16.mxu0 0
      %2775 = vmatpush1.bf16.msra.mxu0 %v2756
      %2776 = vmatprep.subr.bf16.mxu0 0
      %2777 = vmatpush1.bf16.msra.mxu0 %v2757
      %2778 = vmatprep.subr.bf16.mxu0 0
      %2779 = vmatpush1.bf16.msra.mxu0 %v2758
      %2780 = vmatprep.subr.bf16.mxu0 0
      %2781 = vmatpush1.bf16.msra.mxu0 %v2759
      %2782 = vmatprep.subr.bf16.mxu0 0
      %2783 = vmatpush1.bf16.msra.mxu0 %v2760
      %2784 = vmatprep.subr.bf16.mxu0 0
      %2785 = vmatpush1.bf16.msra.mxu0 %v2761
      %2786 = vmatprep.subr.bf16.mxu0 0
      %2787 = vmatpush1.bf16.msra.mxu0 0
      %2788 = vmatprep.subr.bf16.mxu0 0
      %2789 = vmatpush1.bf16.msra.mxu0 0
      %2790 = vmatprep.subr.bf16.mxu0 0
      %2791 = vmatpush1.bf16.msra.mxu0 0
      %2792 = vmatprep.subr.bf16.mxu0 0
      %2793 = vmatpush1.bf16.msra.mxu0 0
      %2794 = vmatprep.subr.bf16.mxu0 0
      %2795 = vmatpush1.bf16.msra.mxu0 0
      %2796 = vmatprep.subr.bf16.mxu0 0
      %2797 = vmatpush1.bf16.msra.mxu0 0
      %2798 = vmatprep.subr.bf16.mxu0 0
      %2799 = vmatpush1.bf16.msra.mxu0 0
      %2800 = vmatprep.subr.bf16.mxu0 0
      %2801 = vmatpush1.bf16.msra.mxu0 0
      %2802 = vmatprep.mubr.bf16.mxu0 0
      %2803 = vmatmul.mubr.bf16.gmra.mrb[0].mxu0 %v2690
      %v2804 = vpop.f32.mrb[0].mxu0
      %v2805 = vadd.f32 0.0, %v2804
      %v2806 = vpop.f32.mrb[0].mxu0
      %v2807 = vpop.f32.mrb[0].mxu0
      %v2808 = vadd.f32 0.0, %v2807
      %v2809 = vpop.f32.mrb[0].mxu0
      %2810 = vmatprep.mubr.bf16.mxu0 0
      %2811 = vmatmul.mubr.bf16.gmra.mrb[0].mxu0 %v2691
      %v2812 = vpop.f32.mrb[0].mxu0
      %v2813 = vadd.f32 0.0, %v2812
      %v2814 = vpop.f32.mrb[0].mxu0
      %v2815 = vpop.f32.mrb[0].mxu0
      %v2816 = vadd.f32 0.0, %v2815
      %v2817 = vpop.f32.mrb[0].mxu0
      %2818 = vmatprep.mubr.bf16.mxu0 0
      %2819 = vmatmul.mubr.bf16.gmra.mrb[0].mxu0 %v2692
      %v2820 = vpop.f32.mrb[0].mxu0
      %v2821 = vadd.f32 0.0, %v2820
      %v2822 = vpop.f32.mrb[0].mxu0
      %v2823 = vpop.f32.mrb[0].mxu0
      %v2824 = vadd.f32 0.0, %v2823
      %v2825 = vpop.f32.mrb[0].mxu0
      %2826 = vmatprep.mubr.bf16.mxu0 0
      %2827 = vmatmul.mubr.bf16.gmra.mrb[0].mxu0 %v2693
      %v2828 = vpop.f32.mrb[0].mxu0
      %v2829 = vadd.f32 0.0, %v2828
      %v2830 = vpop.f32.mrb[0].mxu0
      %v2831 = vpop.f32.mrb[0].mxu0
      %v2832 = vadd.f32 0.0, %v2831
      %v2833 = vpop.f32.mrb[0].mxu0
      %2834 = vmatprep.mubr.bf16.mxu0 0
      %2835 = vmatmul.mubr.bf16.gmra.mrb[0].mxu0 %v2694
      %v2836 = vpop.f32.mrb[0].mxu0
      %v2837 = vadd.f32 0.0, %v2836
      %v2838 = vpop.f32.mrb[0].mxu0
      %v2839 = vpop.f32.mrb[0].mxu0
      %v2840 = vadd.f32 0.0, %v2839
      %v2841 = vpop.f32.mrb[0].mxu0
      %2842 = vmatprep.mubr.bf16.mxu0 0
      %2843 = vmatmul.mubr.bf16.gmra.mrb[0].mxu0 %v2695
      %v2844 = vpop.f32.mrb[0].mxu0
      %v2845 = vadd.f32 0.0, %v2844
      %v2846 = vpop.f32.mrb[0].mxu0
      %v2847 = vpop.f32.mrb[0].mxu0
      %v2848 = vadd.f32 0.0, %v2847
      %v2849 = vpop.f32.mrb[0].mxu0
      %2850 = vmatprep.mubr.bf16.mxu0 0
      %2851 = vmatmul.mubr.bf16.gmra.mrb[0].mxu0 %v2696
      %v2852 = vpop.f32.mrb[0].mxu0
      %v2853 = vadd.f32 0.0, %v2852
      %v2854 = vpop.f32.mrb[0].mxu0
      %v2855 = vpop.f32.mrb[0].mxu0
      %v2856 = vadd.f32 0.0, %v2855
      %v2857 = vpop.f32.mrb[0].mxu0
      %2858 = vmatprep.mubr.bf16.mxu0 0
      %2859 = vmatmul.mubr.bf16.gmra.mrb[0].mxu0 %v2697
      %v2860 = vpop.f32.mrb[0].mxu0
      %v2861 = vadd.f32 0.0, %v2860
      %v2862 = vpop.f32.mrb[0].mxu0
      %v2863 = vpop.f32.mrb[0].mxu0
      %v2864 = vadd.f32 0.0, %v2863
      %v2865 = vpop.f32.mrb[0].mxu0
      %2866 = vmatprep.mubr.bf16.mxu0 0
      %2867 = vmatmul.mubr.bf16.gmra.mrb[0].mxu0 %v2698
      %v2868 = vpop.f32.mrb[0].mxu0
      %v2869 = vadd.f32 0.0, %v2868
      %v2870 = vpop.f32.mrb[0].mxu0
      %v2871 = vpop.f32.mrb[0].mxu0
      %v2872 = vadd.f32 0.0, %v2871
      %v2873 = vpop.f32.mrb[0].mxu0
      %2874 = vmatprep.mubr.bf16.mxu0 0
      %2875 = vmatmul.mubr.bf16.gmra.mrb[0].mxu0 %v2699
      %v2876 = vpop.f32.mrb[0].mxu0
      %v2877 = vadd.f32 0.0, %v2876
      %v2878 = vpop.f32.mrb[0].mxu0
      %v2879 = vpop.f32.mrb[0].mxu0
      %v2880 = vadd.f32 0.0, %v2879
      %v2881 = vpop.f32.mrb[0].mxu0
      %2882 = vmatprep.mubr.bf16.mxu0 0
      %2883 = vmatmul.mubr.bf16.gmra.mrb[0].mxu0 %v2700
      %v2884 = vpop.f32.mrb[0].mxu0
      %v2885 = vadd.f32 0.0, %v2884
      %v2886 = vpop.f32.mrb[0].mxu0
      %v2887 = vpop.f32.mrb[0].mxu0
      %v2888 = vadd.f32 0.0, %v2887
      %v2889 = vpop.f32.mrb[0].mxu0
      %2890 = vmatprep.mubr.bf16.mxu0 0
      %2891 = vmatmul.mubr.bf16.gmra.mrb[0].mxu0 %v2701
      %v2892 = vpop.f32.mrb[0].mxu0
      %v2893 = vadd.f32 0.0, %v2892
      %v2894 = vpop.f32.mrb[0].mxu0
      %v2895 = vpop.f32.mrb[0].mxu0
      %v2896 = vadd.f32 0.0, %v2895
      %v2897 = vpop.f32.mrb[0].mxu0
      %2898 = vmatprep.mubr.bf16.mxu0 0
      %2899 = vmatmul.mubr.bf16.gmra.mrb[0].mxu0 %v2702
      %v2900 = vpop.f32.mrb[0].mxu0
      %v2901 = vadd.f32 0.0, %v2900
      %v2902 = vpop.f32.mrb[0].mxu0
      %v2903 = vpop.f32.mrb[0].mxu0
      %v2904 = vadd.f32 0.0, %v2903
      %v2905 = vpop.f32.mrb[0].mxu0
      %2906 = vmatprep.mubr.bf16.mxu0 0
      %2907 = vmatmul.mubr.bf16.gmra.mrb[0].mxu0 %v2703
      %v2908 = vpop.f32.mrb[0].mxu0
      %v2909 = vadd.f32 0.0, %v2908
      %v2910 = vpop.f32.mrb[0].mxu0
      %v2911 = vpop.f32.mrb[0].mxu0
      %v2912 = vadd.f32 0.0, %v2911
      %v2913 = vpop.f32.mrb[0].mxu0
      %2914 = vmatprep.mubr.bf16.mxu0 0
      %2915 = vmatmul.mubr.bf16.gmra.mrb[0].mxu0 %v2704
      %v2916 = vpop.f32.mrb[0].mxu0
      %v2917 = vadd.f32 0.0, %v2916
      %v2918 = vpop.f32.mrb[0].mxu0
      %v2919 = vpop.f32.mrb[0].mxu0
      %v2920 = vadd.f32 0.0, %v2919
      %v2921 = vpop.f32.mrb[0].mxu0
      %2922 = vmatprep.mubr.bf16.mxu0 0
      %2923 = vmatmul.mubr.bf16.gmra.mrb[0].mxu0 %v2705
      %v2924 = vpop.f32.mrb[0].mxu0
      %v2925 = vadd.f32 0.0, %v2924
      %v2926 = vpop.f32.mrb[0].mxu0
      %v2927 = vpop.f32.mrb[0].mxu0
      %v2928 = vadd.f32 0.0, %v2927
      %v2929 = vpop.f32.mrb[0].mxu0
      %2930 = vdwg.mxu0
      %v2931 = vadd.f32 %v2177, %v2805
      %v2932 = vadd.f32 %v2178, %v2808
      %v2933 = vadd.f32 %v2179, %v2813
      %v2934 = vadd.f32 %v2180, %v2816
      %v2935 = vadd.f32 %v2181, %v2821
      %v2936 = vadd.f32 %v2182, %v2824
      %v2937 = vadd.f32 %v2183, %v2829
      %v2938 = vadd.f32 %v2184, %v2832
      %v2939 = vadd.f32 %v2185, %v2837
      %v2940 = vadd.f32 %v2186, %v2840
      %v2941 = vadd.f32 %v2187, %v2845
      %v2942 = vadd.f32 %v2188, %v2848
      %v2943 = vadd.f32 %v2189, %v2853
      %v2944 = vadd.f32 %v2190, %v2856
      %v2945 = vadd.f32 %v2191, %v2861
      %v2946 = vadd.f32 %v2192, %v2864
      %v2947 = vadd.f32 %v2193, %v2869
      %v2948 = vadd.f32 %v2194, %v2872
      %v2949 = vadd.f32 %v2195, %v2877
      %v2950 = vadd.f32 %v2196, %v2880
      %v2951 = vadd.f32 %v2197, %v2885
      %v2952 = vadd.f32 %v2198, %v2888
      %v2953 = vadd.f32 %v2199, %v2893
      %v2954 = vadd.f32 %v2200, %v2896
      %v2955 = vadd.f32 %v2201, %v2901
      %v2956 = vadd.f32 %v2202, %v2904
      %v2957 = vadd.f32 %v2203, %v2909
      %v2958 = vadd.f32 %v2204, %v2912
      %v2959 = vadd.f32 %v2205, %v2917
      %v2960 = vadd.f32 %v2206, %v2920
      %v2961 = vadd.f32 %v2207, %v2925
      %v2962 = vadd.f32 %v2208, %v2928
      %v2963 = vld [vmem:[%s1822] sm:$0xe]
      %v2964 = vld [vmem:[%s1822 + $0xc] sm:$0xe]
      %v2965 = vld [vmem:[%s1822 + $0x18] sm:$0xe]
      %v2966 = vld [vmem:[%s1822 + $0x24] sm:$0xe]
      %v2967 = vld [vmem:[%s1822 + $0x30] sm:$0xe]
      %v2968 = vld [vmem:[%s1822 + $0x3c] sm:$0xe]
      %v2969 = vld [vmem:[%s1822 + $0x48] sm:$0xe]
      %v2970 = vld [vmem:[%s1822 + $0x54] sm:$0xe]
      %v2971 = vld [vmem:[%s1822 + $0x60] sm:$0xe]
      %v2972 = vld [vmem:[%s1822 + $0x6c] sm:$0xe]
      %v2973 = vld [vmem:[%s1822 + $0x78] sm:$0xe]
      %v2974 = vld [vmem:[%s1822 + $0x84] sm:$0xe]
      %v2975 = vld [vmem:[%s1822 + $0x90] sm:$0xe]
      %v2976 = vld [vmem:[%s1822 + $0x9c] sm:$0xe]
      %v2977 = vld [vmem:[%s1822 + $0xa8] sm:$0xe]
      %v2978 = vld [vmem:[%s1822 + $0xb4] sm:$0xe]
      %v3027 = vrot.slane %v2963, 5
      %v3028 = vrot.slane %v3027, 4
      %v3029 = vrot.slane %v2210, 5
      %v3030 = vsel %vm1384, %v3028, %v3029
      %v3031 = vrot.slane %v3029, 4
      %v3032 = vrot.slane %v2211, 5
      %v3033 = vsel %vm1384, %v3031, %v3032
      %v3034 = vrot.slane %v2964, 5
      %v3035 = vrot.slane %v3034, 4
      %v3036 = vrot.slane %v2213, 5
      %v3037 = vsel %vm1384, %v3035, %v3036
      %v3038 = vrot.slane %v3036, 4
      %v3039 = vrot.slane %v2214, 5
      %v3040 = vsel %vm1384, %v3038, %v3039
      %v3041 = vrot.slane %v2965, 5
      %v3042 = vrot.slane %v3041, 4
      %v3043 = vrot.slane %v2216, 5
      %v3044 = vsel %vm1384, %v3042, %v3043
      %v3045 = vrot.slane %v3043, 4
      %v3046 = vrot.slane %v2217, 5
      %v3047 = vsel %vm1384, %v3045, %v3046
      %v3048 = vrot.slane %v2966, 5
      %v3049 = vrot.slane %v3048, 4
      %v3050 = vrot.slane %v2219, 5
      %v3051 = vsel %vm1384, %v3049, %v3050
      %v3052 = vrot.slane %v3050, 4
      %v3053 = vrot.slane %v2220, 5
      %v3054 = vsel %vm1384, %v3052, %v3053
      %v3055 = vrot.slane %v2967, 5
      %v3056 = vrot.slane %v3055, 4
      %v3057 = vrot.slane %v2222, 5
      %v3058 = vsel %vm1384, %v3056, %v3057
      %v3059 = vrot.slane %v3057, 4
      %v3060 = vrot.slane %v2223, 5
      %v3061 = vsel %vm1384, %v3059, %v3060
      %v3062 = vrot.slane %v2968, 5
      %v3063 = vrot.slane %v3062, 4
      %v3064 = vrot.slane %v2225, 5
      %v3065 = vsel %vm1384, %v3063, %v3064
      %v3066 = vrot.slane %v3064, 4
      %v3067 = vrot.slane %v2226, 5
      %v3068 = vsel %vm1384, %v3066, %v3067
      %v3069 = vrot.slane %v2969, 5
      %v3070 = vrot.slane %v3069, 4
      %v3071 = vrot.slane %v2228, 5
      %v3072 = vsel %vm1384, %v3070, %v3071
      %v3073 = vrot.slane %v3071, 4
      %v3074 = vrot.slane %v2229, 5
      %v3075 = vsel %vm1384, %v3073, %v3074
      %v3076 = vrot.slane %v2970, 5
      %v3077 = vrot.slane %v3076, 4
      %v3078 = vrot.slane %v2231, 5
      %v3079 = vsel %vm1384, %v3077, %v3078
      %v3080 = vrot.slane %v3078, 4
      %v3081 = vrot.slane %v2232, 5
      %v3082 = vsel %vm1384, %v3080, %v3081
      %v3083 = vrot.slane %v2971, 5
      %v3084 = vrot.slane %v3083, 4
      %v3085 = vrot.slane %v2234, 5
      %v3086 = vsel %vm1384, %v3084, %v3085
      %v3087 = vrot.slane %v3085, 4
      %v3088 = vrot.slane %v2235, 5
      %v3089 = vsel %vm1384, %v3087, %v3088
      %v3090 = vrot.slane %v2972, 5
      %v3091 = vrot.slane %v3090, 4
      %v3092 = vrot.slane %v2237, 5
      %v3093 = vsel %vm1384, %v3091, %v3092
      %v3094 = vrot.slane %v3092, 4
      %v3095 = vrot.slane %v2238, 5
      %v3096 = vsel %vm1384, %v3094, %v3095
      %v3097 = vrot.slane %v2973, 5
      %v3098 = vrot.slane %v3097, 4
      %v3099 = vrot.slane %v2240, 5
      %v3100 = vsel %vm1384, %v3098, %v3099
      %v3101 = vrot.slane %v3099, 4
      %v3102 = vrot.slane %v2241, 5
      %v3103 = vsel %vm1384, %v3101, %v3102
      %v3104 = vrot.slane %v2974, 5
      %v3105 = vrot.slane %v3104, 4
      %v3106 = vrot.slane %v2243, 5
      %v3107 = vsel %vm1384, %v3105, %v3106
      %v3108 = vrot.slane %v3106, 4
      %v3109 = vrot.slane %v2244, 5
      %v3110 = vsel %vm1384, %v3108, %v3109
      %v3111 = vrot.slane %v2975, 5
      %v3112 = vrot.slane %v3111, 4
      %v3113 = vrot.slane %v2246, 5
      %v3114 = vsel %vm1384, %v3112, %v3113
      %v3115 = vrot.slane %v3113, 4
      %v3116 = vrot.slane %v2247, 5
      %v3117 = vsel %vm1384, %v3115, %v3116
      %v3118 = vrot.slane %v2976, 5
      %v3119 = vrot.slane %v3118, 4
      %v3120 = vrot.slane %v2249, 5
      %v3121 = vsel %vm1384, %v3119, %v3120
      %v3122 = vrot.slane %v3120, 4
      %v3123 = vrot.slane %v2250, 5
      %v3124 = vsel %vm1384, %v3122, %v3123
      %v3125 = vrot.slane %v2977, 5
      %v3126 = vrot.slane %v3125, 4
      %v3127 = vrot.slane %v2252, 5
      %v3128 = vsel %vm1384, %v3126, %v3127
      %v3129 = vrot.slane %v3127, 4
      %v3130 = vrot.slane %v2253, 5
      %v3131 = vsel %vm1384, %v3129, %v3130
      %v3132 = vrot.slane %v2978, 5
      %v3133 = vrot.slane %v3132, 4
      %v3134 = vrot.slane %v2255, 5
      %v3135 = vsel %vm1384, %v3133, %v3134
      %v3136 = vrot.slane %v3134, 4
      %v3137 = vrot.slane %v2256, 5
      %v3138 = vsel %vm1384, %v3136, %v3137
      %s3139 = scalar_lea.vmem %s1, 320
      %v3140 = vld [vmem:[%s3139] sm:$0xf]
      %v3141 = vld [vmem:[%s3139 + $0x4] sm:$0xf]
      %v3142 = vld [vmem:[%s3139 + $0x8] sm:$0xf]
      %v3143 = vld [vmem:[%s3139 + $0xc] sm:$0xf]
      %v3144 = vld [vmem:[%s3139 + $0x10] sm:$0xf]
      %v3145 = vld [vmem:[%s3139 + $0x14] sm:$0xf]
      %v3146 = vld [vmem:[%s3139 + $0x18] sm:$0xf]
      %v3147 = vld [vmem:[%s3139 + $0x1c] sm:$0xf]
      %v3148 = vld [vmem:[%s3139 + $0x20] sm:$0xf]
      %v3149 = vld [vmem:[%s3139 + $0x24] sm:$0xf]
      %v3150 = vld [vmem:[%s3139 + $0x28] sm:$0xf]
      %v3151 = vld [vmem:[%s3139 + $0x2c] sm:$0xf]
      %v3152 = vld [vmem:[%s3139 + $0x30] sm:$0xf]
      %v3153 = vld [vmem:[%s3139 + $0x34] sm:$0xf]
      %v3154 = vld [vmem:[%s3139 + $0x38] sm:$0xf]
      %v3155 = vld [vmem:[%s3139 + $0x3c] sm:$0xf]
      %v3156 = vunpack.c.l.b16 %v3030
      %v3157 = vunpack.c.l.b16 %v3033
      %v3158 = vunpack.c.l.b16 %v3037
      %v3159 = vunpack.c.l.b16 %v3040
      %v3160 = vunpack.c.l.b16 %v3044
      %v3161 = vunpack.c.l.b16 %v3047
      %v3162 = vunpack.c.l.b16 %v3051
      %v3163 = vunpack.c.l.b16 %v3054
      %v3164 = vunpack.c.l.b16 %v3058
      %v3165 = vunpack.c.l.b16 %v3061
      %v3166 = vunpack.c.l.b16 %v3065
      %v3167 = vunpack.c.l.b16 %v3068
      %v3168 = vunpack.c.l.b16 %v3072
      %v3169 = vunpack.c.l.b16 %v3075
      %v3170 = vunpack.c.l.b16 %v3079
      %v3171 = vunpack.c.l.b16 %v3082
      %v3172 = vunpack.c.l.b16 %v3086
      %v3173 = vunpack.c.l.b16 %v3089
      %v3174 = vunpack.c.l.b16 %v3093
      %v3175 = vunpack.c.l.b16 %v3096
      %v3176 = vunpack.c.l.b16 %v3100
      %v3177 = vunpack.c.l.b16 %v3103
      %v3178 = vunpack.c.l.b16 %v3107
      %v3179 = vunpack.c.l.b16 %v3110
      %v3180 = vunpack.c.l.b16 %v3114
      %v3181 = vunpack.c.l.b16 %v3117
      %v3182 = vunpack.c.l.b16 %v3121
      %v3183 = vunpack.c.l.b16 %v3124
      %v3184 = vunpack.c.l.b16 %v3128
      %v3185 = vunpack.c.l.b16 %v3131
      %v3186 = vunpack.c.l.b16 %v3135
      %v3187 = vunpack.c.l.b16 %v3138
      %v3188 = vpack.c.b16 %v3157, %v3156
      %v3189 = vpack.c.b16 %v3159, %v3158
      %v3190 = vpack.c.b16 %v3161, %v3160
      %v3191 = vpack.c.b16 %v3163, %v3162
      %v3192 = vpack.c.b16 %v3165, %v3164
      %v3193 = vpack.c.b16 %v3167, %v3166
      %v3194 = vpack.c.b16 %v3169, %v3168
      %v3195 = vpack.c.b16 %v3171, %v3170
      %v3196 = vpack.c.b16 %v3173, %v3172
      %v3197 = vpack.c.b16 %v3175, %v3174
      %v3198 = vpack.c.b16 %v3177, %v3176
      %v3199 = vpack.c.b16 %v3179, %v3178
      %v3200 = vpack.c.b16 %v3181, %v3180
      %v3201 = vpack.c.b16 %v3183, %v3182
      %v3202 = vpack.c.b16 %v3185, %v3184
      %v3203 = vpack.c.b16 %v3187, %v3186
      %v3236 = vunpack.c.l.b16 %v3140
      %v3237 = vunpack.c.l.b16 %v3141
      %v3238 = vunpack.c.l.b16 %v3142
      %v3239 = vunpack.c.l.b16 %v3143
      %v3240 = vunpack.c.l.b16 %v3144
      %v3241 = vunpack.c.l.b16 %v3145
      %v3242 = vunpack.c.l.b16 %v3146
      %v3243 = vunpack.c.l.b16 %v3147
      %v3244 = vunpack.c.l.b16 %v3148
      %v3245 = vunpack.c.l.b16 %v3149
      %v3246 = vunpack.c.l.b16 %v3150
      %v3247 = vunpack.c.l.b16 %v3151
      %v3248 = vunpack.c.l.b16 %v3152
      %v3249 = vunpack.c.l.b16 %v3153
      %v3250 = vunpack.c.l.b16 %v3154
      %v3251 = vunpack.c.l.b16 %v3155
      %v3252 = vpack.c.b16 %v3237, %v3236
      %v3253 = vpack.c.b16 %v3239, %v3238
      %v3254 = vpack.c.b16 %v3241, %v3240
      %v3255 = vpack.c.b16 %v3243, %v3242
      %v3256 = vpack.c.b16 %v3245, %v3244
      %v3257 = vpack.c.b16 %v3247, %v3246
      %v3258 = vpack.c.b16 %v3249, %v3248
      %v3259 = vpack.c.b16 %v3251, %v3250
      %3268 = vmatprep.subr.bf16.mxu0 0
      %3269 = vmatpush1.bf16.msra.mxu0 %v3252
      %3270 = vmatprep.subr.bf16.mxu0 0
      %3271 = vmatpush1.bf16.msra.mxu0 %v3253
      %3272 = vmatprep.subr.bf16.mxu0 0
      %3273 = vmatpush1.bf16.msra.mxu0 %v3254
      %3274 = vmatprep.subr.bf16.mxu0 0
      %3275 = vmatpush1.bf16.msra.mxu0 %v3255
      %3276 = vmatprep.subr.bf16.mxu0 0
      %3277 = vmatpush1.bf16.msra.mxu0 %v3256
      %3278 = vmatprep.subr.bf16.mxu0 0
      %3279 = vmatpush1.bf16.msra.mxu0 %v3257
      %3280 = vmatprep.subr.bf16.mxu0 0
      %3281 = vmatpush1.bf16.msra.mxu0 %v3258
      %3282 = vmatprep.subr.bf16.mxu0 0
      %3283 = vmatpush1.bf16.msra.mxu0 %v3259
      %3284 = vmatprep.subr.bf16.mxu0 0
      %3285 = vmatpush1.bf16.msra.mxu0 0
      %3286 = vmatprep.subr.bf16.mxu0 0
      %3287 = vmatpush1.bf16.msra.mxu0 0
      %3288 = vmatprep.subr.bf16.mxu0 0
      %3289 = vmatpush1.bf16.msra.mxu0 0
      %3290 = vmatprep.subr.bf16.mxu0 0
      %3291 = vmatpush1.bf16.msra.mxu0 0
      %3292 = vmatprep.subr.bf16.mxu0 0
      %3293 = vmatpush1.bf16.msra.mxu0 0
      %3294 = vmatprep.subr.bf16.mxu0 0
      %3295 = vmatpush1.bf16.msra.mxu0 0
      %3296 = vmatprep.subr.bf16.mxu0 0
      %3297 = vmatpush1.bf16.msra.mxu0 0
      %3298 = vmatprep.subr.bf16.mxu0 0
      %3299 = vmatpush1.bf16.msra.mxu0 0
      %3300 = vmatprep.mubr.bf16.mxu0 0
      %3301 = vmatmul.mubr.bf16.gmra.mrb[0].mxu0 %v3188
      %v3302 = vpop.f32.mrb[0].mxu0
      %v3303 = vadd.f32 0.0, %v3302
      %v3304 = vpop.f32.mrb[0].mxu0
      %v3305 = vpop.f32.mrb[0].mxu0
      %v3306 = vadd.f32 0.0, %v3305
      %v3307 = vpop.f32.mrb[0].mxu0
      %3308 = vmatprep.mubr.bf16.mxu0 0
      %3309 = vmatmul.mubr.bf16.gmra.mrb[0].mxu0 %v3189
      %v3310 = vpop.f32.mrb[0].mxu0
      %v3311 = vadd.f32 0.0, %v3310
      %v3312 = vpop.f32.mrb[0].mxu0
      %v3313 = vpop.f32.mrb[0].mxu0
      %v3314 = vadd.f32 0.0, %v3313
      %v3315 = vpop.f32.mrb[0].mxu0
      %3316 = vmatprep.mubr.bf16.mxu0 0
      %3317 = vmatmul.mubr.bf16.gmra.mrb[0].mxu0 %v3190
      %v3318 = vpop.f32.mrb[0].mxu0
      %v3319 = vadd.f32 0.0, %v3318
      %v3320 = vpop.f32.mrb[0].mxu0
      %v3321 = vpop.f32.mrb[0].mxu0
      %v3322 = vadd.f32 0.0, %v3321
      %v3323 = vpop.f32.mrb[0].mxu0
      %3324 = vmatprep.mubr.bf16.mxu0 0
      %3325 = vmatmul.mubr.bf16.gmra.mrb[0].mxu0 %v3191
      %v3326 = vpop.f32.mrb[0].mxu0
      %v3327 = vadd.f32 0.0, %v3326
      %v3328 = vpop.f32.mrb[0].mxu0
      %v3329 = vpop.f32.mrb[0].mxu0
      %v3330 = vadd.f32 0.0, %v3329
      %v3331 = vpop.f32.mrb[0].mxu0
      %3332 = vmatprep.mubr.bf16.mxu0 0
      %3333 = vmatmul.mubr.bf16.gmra.mrb[0].mxu0 %v3192
      %v3334 = vpop.f32.mrb[0].mxu0
      %v3335 = vadd.f32 0.0, %v3334
      %v3336 = vpop.f32.mrb[0].mxu0
      %v3337 = vpop.f32.mrb[0].mxu0
      %v3338 = vadd.f32 0.0, %v3337
      %v3339 = vpop.f32.mrb[0].mxu0
      %3340 = vmatprep.mubr.bf16.mxu0 0
      %3341 = vmatmul.mubr.bf16.gmra.mrb[0].mxu0 %v3193
      %v3342 = vpop.f32.mrb[0].mxu0
      %v3343 = vadd.f32 0.0, %v3342
      %v3344 = vpop.f32.mrb[0].mxu0
      %v3345 = vpop.f32.mrb[0].mxu0
      %v3346 = vadd.f32 0.0, %v3345
      %v3347 = vpop.f32.mrb[0].mxu0
      %3348 = vmatprep.mubr.bf16.mxu0 0
      %3349 = vmatmul.mubr.bf16.gmra.mrb[0].mxu0 %v3194
      %v3350 = vpop.f32.mrb[0].mxu0
      %v3351 = vadd.f32 0.0, %v3350
      %v3352 = vpop.f32.mrb[0].mxu0
      %v3353 = vpop.f32.mrb[0].mxu0
      %v3354 = vadd.f32 0.0, %v3353
      %v3355 = vpop.f32.mrb[0].mxu0
      %3356 = vmatprep.mubr.bf16.mxu0 0
      %3357 = vmatmul.mubr.bf16.gmra.mrb[0].mxu0 %v3195
      %v3358 = vpop.f32.mrb[0].mxu0
      %v3359 = vadd.f32 0.0, %v3358
      %v3360 = vpop.f32.mrb[0].mxu0
      %v3361 = vpop.f32.mrb[0].mxu0
      %v3362 = vadd.f32 0.0, %v3361
      %v3363 = vpop.f32.mrb[0].mxu0
      %3364 = vmatprep.mubr.bf16.mxu0 0
      %3365 = vmatmul.mubr.bf16.gmra.mrb[0].mxu0 %v3196
      %v3366 = vpop.f32.mrb[0].mxu0
      %v3367 = vadd.f32 0.0, %v3366
      %v3368 = vpop.f32.mrb[0].mxu0
      %v3369 = vpop.f32.mrb[0].mxu0
      %v3370 = vadd.f32 0.0, %v3369
      %v3371 = vpop.f32.mrb[0].mxu0
      %3372 = vmatprep.mubr.bf16.mxu0 0
      %3373 = vmatmul.mubr.bf16.gmra.mrb[0].mxu0 %v3197
      %v3374 = vpop.f32.mrb[0].mxu0
      %v3375 = vadd.f32 0.0, %v3374
      %v3376 = vpop.f32.mrb[0].mxu0
      %v3377 = vpop.f32.mrb[0].mxu0
      %v3378 = vadd.f32 0.0, %v3377
      %v3379 = vpop.f32.mrb[0].mxu0
      %3380 = vmatprep.mubr.bf16.mxu0 0
      %3381 = vmatmul.mubr.bf16.gmra.mrb[0].mxu0 %v3198
      %v3382 = vpop.f32.mrb[0].mxu0
      %v3383 = vadd.f32 0.0, %v3382
      %v3384 = vpop.f32.mrb[0].mxu0
      %v3385 = vpop.f32.mrb[0].mxu0
      %v3386 = vadd.f32 0.0, %v3385
      %v3387 = vpop.f32.mrb[0].mxu0
      %3388 = vmatprep.mubr.bf16.mxu0 0
      %3389 = vmatmul.mubr.bf16.gmra.mrb[0].mxu0 %v3199
      %v3390 = vpop.f32.mrb[0].mxu0
      %v3391 = vadd.f32 0.0, %v3390
      %v3392 = vpop.f32.mrb[0].mxu0
      %v3393 = vpop.f32.mrb[0].mxu0
      %v3394 = vadd.f32 0.0, %v3393
      %v3395 = vpop.f32.mrb[0].mxu0
      %3396 = vmatprep.mubr.bf16.mxu0 0
      %3397 = vmatmul.mubr.bf16.gmra.mrb[0].mxu0 %v3200
      %v3398 = vpop.f32.mrb[0].mxu0
      %v3399 = vadd.f32 0.0, %v3398
      %v3400 = vpop.f32.mrb[0].mxu0
      %v3401 = vpop.f32.mrb[0].mxu0
      %v3402 = vadd.f32 0.0, %v3401
      %v3403 = vpop.f32.mrb[0].mxu0
      %3404 = vmatprep.mubr.bf16.mxu0 0
      %3405 = vmatmul.mubr.bf16.gmra.mrb[0].mxu0 %v3201
      %v3406 = vpop.f32.mrb[0].mxu0
      %v3407 = vadd.f32 0.0, %v3406
      %v3408 = vpop.f32.mrb[0].mxu0
      %v3409 = vpop.f32.mrb[0].mxu0
      %v3410 = vadd.f32 0.0, %v3409
      %v3411 = vpop.f32.mrb[0].mxu0
      %3412 = vmatprep.mubr.bf16.mxu0 0
      %3413 = vmatmul.mubr.bf16.gmra.mrb[0].mxu0 %v3202
      %v3414 = vpop.f32.mrb[0].mxu0
      %v3415 = vadd.f32 0.0, %v3414
      %v3416 = vpop.f32.mrb[0].mxu0
      %v3417 = vpop.f32.mrb[0].mxu0
      %v3418 = vadd.f32 0.0, %v3417
      %v3419 = vpop.f32.mrb[0].mxu0
      %3420 = vmatprep.mubr.bf16.mxu0 0
      %3421 = vmatmul.mubr.bf16.gmra.mrb[0].mxu0 %v3203
      %v3422 = vpop.f32.mrb[0].mxu0
      %v3423 = vadd.f32 0.0, %v3422
      %v3424 = vpop.f32.mrb[0].mxu0
      %v3425 = vpop.f32.mrb[0].mxu0
      %v3426 = vadd.f32 0.0, %v3425
      %v3427 = vpop.f32.mrb[0].mxu0
      %3428 = vdwg.mxu0
      %v3429 = vadd.f32 %v2931, %v3303
      %v3430 = vadd.f32 %v2932, %v3306
      %v3431 = vadd.f32 %v2933, %v3311
      %v3432 = vadd.f32 %v2934, %v3314
      %v3433 = vadd.f32 %v2935, %v3319
      %v3434 = vadd.f32 %v2936, %v3322
      %v3435 = vadd.f32 %v2937, %v3327
      %v3436 = vadd.f32 %v2938, %v3330
      %v3437 = vadd.f32 %v2939, %v3335
      %v3438 = vadd.f32 %v2940, %v3338
      %v3439 = vadd.f32 %v2941, %v3343
      %v3440 = vadd.f32 %v2942, %v3346
      %v3441 = vadd.f32 %v2943, %v3351
      %v3442 = vadd.f32 %v2944, %v3354
      %v3443 = vadd.f32 %v2945, %v3359
      %v3444 = vadd.f32 %v2946, %v3362
      %v3445 = vadd.f32 %v2947, %v3367
      %v3446 = vadd.f32 %v2948, %v3370
      %v3447 = vadd.f32 %v2949, %v3375
      %v3448 = vadd.f32 %v2950, %v3378
      %v3449 = vadd.f32 %v2951, %v3383
      %v3450 = vadd.f32 %v2952, %v3386
      %v3451 = vadd.f32 %v2953, %v3391
      %v3452 = vadd.f32 %v2954, %v3394
      %v3453 = vadd.f32 %v2955, %v3399
      %v3454 = vadd.f32 %v2956, %v3402
      %v3455 = vadd.f32 %v2957, %v3407
      %v3456 = vadd.f32 %v2958, %v3410
      %v3457 = vadd.f32 %v2959, %v3415
      %v3458 = vadd.f32 %v2960, %v3418
      %v3459 = vadd.f32 %v2961, %v3423
      %v3460 = vadd.f32 %v2962, %v3426
      %s3461 = sadd.s32 %s284, 2
      %s3462 = smul.u32 %s3461, 3
      %s3463 = smul.addr %s3462, 4
      %s3464 = scalar_lea.vmem %s259, %s3463
      %v3465 = vld [vmem:[%s3464] sm:$0xf]
      %v3466 = vld [vmem:[%s3464 + $0x4] sm:$0xf]
      %v3467 = vld [vmem:[%s3464 + $0xc] sm:$0xf]
      %v3468 = vld [vmem:[%s3464 + $0x10] sm:$0xf]
      %v3469 = vld [vmem:[%s3464 + $0x18] sm:$0xf]
      %v3470 = vld [vmem:[%s3464 + $0x1c] sm:$0xf]
      %v3471 = vld [vmem:[%s3464 + $0x24] sm:$0xf]
      %v3472 = vld [vmem:[%s3464 + $0x28] sm:$0xf]
      %v3473 = vld [vmem:[%s3464 + $0x30] sm:$0xf]
      %v3474 = vld [vmem:[%s3464 + $0x34] sm:$0xf]
      %v3475 = vld [vmem:[%s3464 + $0x3c] sm:$0xf]
      %v3476 = vld [vmem:[%s3464 + $0x40] sm:$0xf]
      %v3477 = vld [vmem:[%s3464 + $0x48] sm:$0xf]
      %v3478 = vld [vmem:[%s3464 + $0x4c] sm:$0xf]
      %v3479 = vld [vmem:[%s3464 + $0x54] sm:$0xf]
      %v3480 = vld [vmem:[%s3464 + $0x58] sm:$0xf]
      %v3481 = vld [vmem:[%s3464 + $0x60] sm:$0xf]
      %v3482 = vld [vmem:[%s3464 + $0x64] sm:$0xf]
      %v3483 = vld [vmem:[%s3464 + $0x6c] sm:$0xf]
      %v3484 = vld [vmem:[%s3464 + $0x70] sm:$0xf]
      %v3485 = vld [vmem:[%s3464 + $0x78] sm:$0xf]
      %v3486 = vld [vmem:[%s3464 + $0x7c] sm:$0xf]
      %v3487 = vld [vmem:[%s3464 + $0x84] sm:$0xf]
      %v3488 = vld [vmem:[%s3464 + $0x88] sm:$0xf]
      %v3489 = vld [vmem:[%s3464 + $0x90] sm:$0xf]
      %v3490 = vld [vmem:[%s3464 + $0x94] sm:$0xf]
      %v3491 = vld [vmem:[%s3464 + $0x9c] sm:$0xf]
      %v3492 = vld [vmem:[%s3464 + $0xa0] sm:$0xf]
      %v3493 = vld [vmem:[%s3464 + $0xa8] sm:$0xf]
      %v3494 = vld [vmem:[%s3464 + $0xac] sm:$0xf]
      %v3495 = vld [vmem:[%s3464 + $0xb4] sm:$0xf]
      %v3496 = vld [vmem:[%s3464 + $0xb8] sm:$0xf]
      %s3497 = scalar_lea.vmem %s1, 384
      %v3498 = vld [vmem:[%s3497] sm:$0xf]
      %v3499 = vld [vmem:[%s3497 + $0x4] sm:$0xf]
      %v3500 = vld [vmem:[%s3497 + $0x8] sm:$0xf]
      %v3501 = vld [vmem:[%s3497 + $0xc] sm:$0xf]
      %v3502 = vld [vmem:[%s3497 + $0x10] sm:$0xf]
      %v3503 = vld [vmem:[%s3497 + $0x14] sm:$0xf]
      %v3504 = vld [vmem:[%s3497 + $0x18] sm:$0xf]
      %v3505 = vld [vmem:[%s3497 + $0x1c] sm:$0xf]
      %v3506 = vld [vmem:[%s3497 + $0x20] sm:$0xf]
      %v3507 = vld [vmem:[%s3497 + $0x24] sm:$0xf]
      %v3508 = vld [vmem:[%s3497 + $0x28] sm:$0xf]
      %v3509 = vld [vmem:[%s3497 + $0x2c] sm:$0xf]
      %v3510 = vld [vmem:[%s3497 + $0x30] sm:$0xf]
      %v3511 = vld [vmem:[%s3497 + $0x34] sm:$0xf]
      %v3512 = vld [vmem:[%s3497 + $0x38] sm:$0xf]
      %v3513 = vld [vmem:[%s3497 + $0x3c] sm:$0xf]
      %v3546 = vunpack.c.l.b16 %v3465
      %v3547 = vunpack.c.l.b16 %v3466
      %v3548 = vunpack.c.l.b16 %v3467
      %v3549 = vunpack.c.l.b16 %v3468
      %v3550 = vunpack.c.l.b16 %v3469
      %v3551 = vunpack.c.l.b16 %v3470
      %v3552 = vunpack.c.l.b16 %v3471
      %v3553 = vunpack.c.l.b16 %v3472
      %v3554 = vunpack.c.l.b16 %v3473
      %v3555 = vunpack.c.l.b16 %v3474
      %v3556 = vunpack.c.l.b16 %v3475
      %v3557 = vunpack.c.l.b16 %v3476
      %v3558 = vunpack.c.l.b16 %v3477
      %v3559 = vunpack.c.l.b16 %v3478
      %v3560 = vunpack.c.l.b16 %v3479
      %v3561 = vunpack.c.l.b16 %v3480
      %v3562 = vunpack.c.l.b16 %v3481
      %v3563 = vunpack.c.l.b16 %v3482
      %v3564 = vunpack.c.l.b16 %v3483
      %v3565 = vunpack.c.l.b16 %v3484
      %v3566 = vunpack.c.l.b16 %v3485
      %v3567 = vunpack.c.l.b16 %v3486
      %v3568 = vunpack.c.l.b16 %v3487
      %v3569 = vunpack.c.l.b16 %v3488
      %v3570 = vunpack.c.l.b16 %v3489
      %v3571 = vunpack.c.l.b16 %v3490
      %v3572 = vunpack.c.l.b16 %v3491
      %v3573 = vunpack.c.l.b16 %v3492
      %v3574 = vunpack.c.l.b16 %v3493
      %v3575 = vunpack.c.l.b16 %v3494
      %v3576 = vunpack.c.l.b16 %v3495
      %v3577 = vunpack.c.l.b16 %v3496
      %v3578 = vpack.c.b16 %v3547, %v3546
      %v3579 = vpack.c.b16 %v3549, %v3548
      %v3580 = vpack.c.b16 %v3551, %v3550
      %v3581 = vpack.c.b16 %v3553, %v3552
      %v3582 = vpack.c.b16 %v3555, %v3554
      %v3583 = vpack.c.b16 %v3557, %v3556
      %v3584 = vpack.c.b16 %v3559, %v3558
      %v3585 = vpack.c.b16 %v3561, %v3560
      %v3586 = vpack.c.b16 %v3563, %v3562
      %v3587 = vpack.c.b16 %v3565, %v3564
      %v3588 = vpack.c.b16 %v3567, %v3566
      %v3589 = vpack.c.b16 %v3569, %v3568
      %v3590 = vpack.c.b16 %v3571, %v3570
      %v3591 = vpack.c.b16 %v3573, %v3572
      %v3592 = vpack.c.b16 %v3575, %v3574
      %v3593 = vpack.c.b16 %v3577, %v3576
      %v3626 = vunpack.c.l.b16 %v3498
      %v3627 = vunpack.c.l.b16 %v3499
      %v3628 = vunpack.c.l.b16 %v3500
      %v3629 = vunpack.c.l.b16 %v3501
      %v3630 = vunpack.c.l.b16 %v3502
      %v3631 = vunpack.c.l.b16 %v3503
      %v3632 = vunpack.c.l.b16 %v3504
      %v3633 = vunpack.c.l.b16 %v3505
      %v3634 = vunpack.c.l.b16 %v3506
      %v3635 = vunpack.c.l.b16 %v3507
      %v3636 = vunpack.c.l.b16 %v3508
      %v3637 = vunpack.c.l.b16 %v3509
      %v3638 = vunpack.c.l.b16 %v3510
      %v3639 = vunpack.c.l.b16 %v3511
      %v3640 = vunpack.c.l.b16 %v3512
      %v3641 = vunpack.c.l.b16 %v3513
      %v3642 = vpack.c.b16 %v3627, %v3626
      %v3643 = vpack.c.b16 %v3629, %v3628
      %v3644 = vpack.c.b16 %v3631, %v3630
      %v3645 = vpack.c.b16 %v3633, %v3632
      %v3646 = vpack.c.b16 %v3635, %v3634
      %v3647 = vpack.c.b16 %v3637, %v3636
      %v3648 = vpack.c.b16 %v3639, %v3638
      %v3649 = vpack.c.b16 %v3641, %v3640
      %3658 = vmatprep.subr.bf16.mxu0 0
      %3659 = vmatpush1.bf16.msra.mxu0 %v3642
      %3660 = vmatprep.subr.bf16.mxu0 0
      %3661 = vmatpush1.bf16.msra.mxu0 %v3643
      %3662 = vmatprep.subr.bf16.mxu0 0
      %3663 = vmatpush1.bf16.msra.mxu0 %v3644
      %3664 = vmatprep.subr.bf16.mxu0 0
      %3665 = vmatpush1.bf16.msra.mxu0 %v3645
      %3666 = vmatprep.subr.bf16.mxu0 0
      %3667 = vmatpush1.bf16.msra.mxu0 %v3646
      %3668 = vmatprep.subr.bf16.mxu0 0
      %3669 = vmatpush1.bf16.msra.mxu0 %v3647
      %3670 = vmatprep.subr.bf16.mxu0 0
      %3671 = vmatpush1.bf16.msra.mxu0 %v3648
      %3672 = vmatprep.subr.bf16.mxu0 0
      %3673 = vmatpush1.bf16.msra.mxu0 %v3649
      %3674 = vmatprep.subr.bf16.mxu0 0
      %3675 = vmatpush1.bf16.msra.mxu0 0
      %3676 = vmatprep.subr.bf16.mxu0 0
      %3677 = vmatpush1.bf16.msra.mxu0 0
      %3678 = vmatprep.subr.bf16.mxu0 0
      %3679 = vmatpush1.bf16.msra.mxu0 0
      %3680 = vmatprep.subr.bf16.mxu0 0
      %3681 = vmatpush1.bf16.msra.mxu0 0
      %3682 = vmatprep.subr.bf16.mxu0 0
      %3683 = vmatpush1.bf16.msra.mxu0 0
      %3684 = vmatprep.subr.bf16.mxu0 0
      %3685 = vmatpush1.bf16.msra.mxu0 0
      %3686 = vmatprep.subr.bf16.mxu0 0
      %3687 = vmatpush1.bf16.msra.mxu0 0
      %3688 = vmatprep.subr.bf16.mxu0 0
      %3689 = vmatpush1.bf16.msra.mxu0 0
      %3690 = vmatprep.mubr.bf16.mxu0 0
      %3691 = vmatmul.mubr.bf16.gmra.mrb[0].mxu0 %v3578
      %v3692 = vpop.f32.mrb[0].mxu0
      %v3693 = vadd.f32 0.0, %v3692
      %v3694 = vpop.f32.mrb[0].mxu0
      %v3695 = vpop.f32.mrb[0].mxu0
      %v3696 = vadd.f32 0.0, %v3695
      %v3697 = vpop.f32.mrb[0].mxu0
      %3698 = vmatprep.mubr.bf16.mxu0 0
      %3699 = vmatmul.mubr.bf16.gmra.mrb[0].mxu0 %v3579
      %v3700 = vpop.f32.mrb[0].mxu0
      %v3701 = vadd.f32 0.0, %v3700
      %v3702 = vpop.f32.mrb[0].mxu0
      %v3703 = vpop.f32.mrb[0].mxu0
      %v3704 = vadd.f32 0.0, %v3703
      %v3705 = vpop.f32.mrb[0].mxu0
      %3706 = vmatprep.mubr.bf16.mxu0 0
      %3707 = vmatmul.mubr.bf16.gmra.mrb[0].mxu0 %v3580
      %v3708 = vpop.f32.mrb[0].mxu0
      %v3709 = vadd.f32 0.0, %v3708
      %v3710 = vpop.f32.mrb[0].mxu0
      %v3711 = vpop.f32.mrb[0].mxu0
      %v3712 = vadd.f32 0.0, %v3711
      %v3713 = vpop.f32.mrb[0].mxu0
      %3714 = vmatprep.mubr.bf16.mxu0 0
      %3715 = vmatmul.mubr.bf16.gmra.mrb[0].mxu0 %v3581
      %v3716 = vpop.f32.mrb[0].mxu0
      %v3717 = vadd.f32 0.0, %v3716
      %v3718 = vpop.f32.mrb[0].mxu0
      %v3719 = vpop.f32.mrb[0].mxu0
      %v3720 = vadd.f32 0.0, %v3719
      %v3721 = vpop.f32.mrb[0].mxu0
      %3722 = vmatprep.mubr.bf16.mxu0 0
      %3723 = vmatmul.mubr.bf16.gmra.mrb[0].mxu0 %v3582
      %v3724 = vpop.f32.mrb[0].mxu0
      %v3725 = vadd.f32 0.0, %v3724
      %v3726 = vpop.f32.mrb[0].mxu0
      %v3727 = vpop.f32.mrb[0].mxu0
      %v3728 = vadd.f32 0.0, %v3727
      %v3729 = vpop.f32.mrb[0].mxu0
      %3730 = vmatprep.mubr.bf16.mxu0 0
      %3731 = vmatmul.mubr.bf16.gmra.mrb[0].mxu0 %v3583
      %v3732 = vpop.f32.mrb[0].mxu0
      %v3733 = vadd.f32 0.0, %v3732
      %v3734 = vpop.f32.mrb[0].mxu0
      %v3735 = vpop.f32.mrb[0].mxu0
      %v3736 = vadd.f32 0.0, %v3735
      %v3737 = vpop.f32.mrb[0].mxu0
      %3738 = vmatprep.mubr.bf16.mxu0 0
      %3739 = vmatmul.mubr.bf16.gmra.mrb[0].mxu0 %v3584
      %v3740 = vpop.f32.mrb[0].mxu0
      %v3741 = vadd.f32 0.0, %v3740
      %v3742 = vpop.f32.mrb[0].mxu0
      %v3743 = vpop.f32.mrb[0].mxu0
      %v3744 = vadd.f32 0.0, %v3743
      %v3745 = vpop.f32.mrb[0].mxu0
      %3746 = vmatprep.mubr.bf16.mxu0 0
      %3747 = vmatmul.mubr.bf16.gmra.mrb[0].mxu0 %v3585
      %v3748 = vpop.f32.mrb[0].mxu0
      %v3749 = vadd.f32 0.0, %v3748
      %v3750 = vpop.f32.mrb[0].mxu0
      %v3751 = vpop.f32.mrb[0].mxu0
      %v3752 = vadd.f32 0.0, %v3751
      %v3753 = vpop.f32.mrb[0].mxu0
      %3754 = vmatprep.mubr.bf16.mxu0 0
      %3755 = vmatmul.mubr.bf16.gmra.mrb[0].mxu0 %v3586
      %v3756 = vpop.f32.mrb[0].mxu0
      %v3757 = vadd.f32 0.0, %v3756
      %v3758 = vpop.f32.mrb[0].mxu0
      %v3759 = vpop.f32.mrb[0].mxu0
      %v3760 = vadd.f32 0.0, %v3759
      %v3761 = vpop.f32.mrb[0].mxu0
      %3762 = vmatprep.mubr.bf16.mxu0 0
      %3763 = vmatmul.mubr.bf16.gmra.mrb[0].mxu0 %v3587
      %v3764 = vpop.f32.mrb[0].mxu0
      %v3765 = vadd.f32 0.0, %v3764
      %v3766 = vpop.f32.mrb[0].mxu0
      %v3767 = vpop.f32.mrb[0].mxu0
      %v3768 = vadd.f32 0.0, %v3767
      %v3769 = vpop.f32.mrb[0].mxu0
      %3770 = vmatprep.mubr.bf16.mxu0 0
      %3771 = vmatmul.mubr.bf16.gmra.mrb[0].mxu0 %v3588
      %v3772 = vpop.f32.mrb[0].mxu0
      %v3773 = vadd.f32 0.0, %v3772
      %v3774 = vpop.f32.mrb[0].mxu0
      %v3775 = vpop.f32.mrb[0].mxu0
      %v3776 = vadd.f32 0.0, %v3775
      %v3777 = vpop.f32.mrb[0].mxu0
      %3778 = vmatprep.mubr.bf16.mxu0 0
      %3779 = vmatmul.mubr.bf16.gmra.mrb[0].mxu0 %v3589
      %v3780 = vpop.f32.mrb[0].mxu0
      %v3781 = vadd.f32 0.0, %v3780
      %v3782 = vpop.f32.mrb[0].mxu0
      %v3783 = vpop.f32.mrb[0].mxu0
      %v3784 = vadd.f32 0.0, %v3783
      %v3785 = vpop.f32.mrb[0].mxu0
      %3786 = vmatprep.mubr.bf16.mxu0 0
      %3787 = vmatmul.mubr.bf16.gmra.mrb[0].mxu0 %v3590
      %v3788 = vpop.f32.mrb[0].mxu0
      %v3789 = vadd.f32 0.0, %v3788
      %v3790 = vpop.f32.mrb[0].mxu0
      %v3791 = vpop.f32.mrb[0].mxu0
      %v3792 = vadd.f32 0.0, %v3791
      %v3793 = vpop.f32.mrb[0].mxu0
      %3794 = vmatprep.mubr.bf16.mxu0 0
      %3795 = vmatmul.mubr.bf16.gmra.mrb[0].mxu0 %v3591
      %v3796 = vpop.f32.mrb[0].mxu0
      %v3797 = vadd.f32 0.0, %v3796
      %v3798 = vpop.f32.mrb[0].mxu0
      %v3799 = vpop.f32.mrb[0].mxu0
      %v3800 = vadd.f32 0.0, %v3799
      %v3801 = vpop.f32.mrb[0].mxu0
      %3802 = vmatprep.mubr.bf16.mxu0 0
      %3803 = vmatmul.mubr.bf16.gmra.mrb[0].mxu0 %v3592
      %v3804 = vpop.f32.mrb[0].mxu0
      %v3805 = vadd.f32 0.0, %v3804
      %v3806 = vpop.f32.mrb[0].mxu0
      %v3807 = vpop.f32.mrb[0].mxu0
      %v3808 = vadd.f32 0.0, %v3807
      %v3809 = vpop.f32.mrb[0].mxu0
      %3810 = vmatprep.mubr.bf16.mxu0 0
      %3811 = vmatmul.mubr.bf16.gmra.mrb[0].mxu0 %v3593
      %v3812 = vpop.f32.mrb[0].mxu0
      %v3813 = vadd.f32 0.0, %v3812
      %v3814 = vpop.f32.mrb[0].mxu0
      %v3815 = vpop.f32.mrb[0].mxu0
      %v3816 = vadd.f32 0.0, %v3815
      %v3817 = vpop.f32.mrb[0].mxu0
      %3818 = vdwg.mxu0
      %v3819 = vadd.f32 %v3429, %v3693
      %v3820 = vadd.f32 %v3430, %v3696
      %v3821 = vadd.f32 %v3431, %v3701
      %v3822 = vadd.f32 %v3432, %v3704
      %v3823 = vadd.f32 %v3433, %v3709
      %v3824 = vadd.f32 %v3434, %v3712
      %v3825 = vadd.f32 %v3435, %v3717
      %v3826 = vadd.f32 %v3436, %v3720
      %v3827 = vadd.f32 %v3437, %v3725
      %v3828 = vadd.f32 %v3438, %v3728
      %v3829 = vadd.f32 %v3439, %v3733
      %v3830 = vadd.f32 %v3440, %v3736
      %v3831 = vadd.f32 %v3441, %v3741
      %v3832 = vadd.f32 %v3442, %v3744
      %v3833 = vadd.f32 %v3443, %v3749
      %v3834 = vadd.f32 %v3444, %v3752
      %v3835 = vadd.f32 %v3445, %v3757
      %v3836 = vadd.f32 %v3446, %v3760
      %v3837 = vadd.f32 %v3447, %v3765
      %v3838 = vadd.f32 %v3448, %v3768
      %v3839 = vadd.f32 %v3449, %v3773
      %v3840 = vadd.f32 %v3450, %v3776
      %v3841 = vadd.f32 %v3451, %v3781
      %v3842 = vadd.f32 %v3452, %v3784
      %v3843 = vadd.f32 %v3453, %v3789
      %v3844 = vadd.f32 %v3454, %v3792
      %v3845 = vadd.f32 %v3455, %v3797
      %v3846 = vadd.f32 %v3456, %v3800
      %v3847 = vadd.f32 %v3457, %v3805
      %v3848 = vadd.f32 %v3458, %v3808
      %v3849 = vadd.f32 %v3459, %v3813
      %v3850 = vadd.f32 %v3460, %v3816
      %v3851 = vld [vmem:[%s3464] sm:$0xf]
      %v3852 = vld [vmem:[%s3464 + $0x4] sm:$0xf]
      %v3853 = vld [vmem:[%s3464 + $0x8] sm:$0x1]
      %v3854 = vld [vmem:[%s3464 + $0xc] sm:$0xf]
      %v3855 = vld [vmem:[%s3464 + $0x10] sm:$0xf]
      %v3856 = vld [vmem:[%s3464 + $0x14] sm:$0x1]
      %v3857 = vld [vmem:[%s3464 + $0x18] sm:$0xf]
      %v3858 = vld [vmem:[%s3464 + $0x1c] sm:$0xf]
      %v3859 = vld [vmem:[%s3464 + $0x20] sm:$0x1]
      %v3860 = vld [vmem:[%s3464 + $0x24] sm:$0xf]
      %v3861 = vld [vmem:[%s3464 + $0x28] sm:$0xf]
      %v3862 = vld [vmem:[%s3464 + $0x2c] sm:$0x1]
      %v3863 = vld [vmem:[%s3464 + $0x30] sm:$0xf]
      %v3864 = vld [vmem:[%s3464 + $0x34] sm:$0xf]
      %v3865 = vld [vmem:[%s3464 + $0x38] sm:$0x1]
      %v3866 = vld [vmem:[%s3464 + $0x3c] sm:$0xf]
      %v3867 = vld [vmem:[%s3464 + $0x40] sm:$0xf]
      %v3868 = vld [vmem:[%s3464 + $0x44] sm:$0x1]
      %v3869 = vld [vmem:[%s3464 + $0x48] sm:$0xf]
      %v3870 = vld [vmem:[%s3464 + $0x4c] sm:$0xf]
      %v3871 = vld [vmem:[%s3464 + $0x50] sm:$0x1]
      %v3872 = vld [vmem:[%s3464 + $0x54] sm:$0xf]
      %v3873 = vld [vmem:[%s3464 + $0x58] sm:$0xf]
      %v3874 = vld [vmem:[%s3464 + $0x5c] sm:$0x1]
      %v3875 = vld [vmem:[%s3464 + $0x60] sm:$0xf]
      %v3876 = vld [vmem:[%s3464 + $0x64] sm:$0xf]
      %v3877 = vld [vmem:[%s3464 + $0x68] sm:$0x1]
      %v3878 = vld [vmem:[%s3464 + $0x6c] sm:$0xf]
      %v3879 = vld [vmem:[%s3464 + $0x70] sm:$0xf]
      %v3880 = vld [vmem:[%s3464 + $0x74] sm:$0x1]
      %v3881 = vld [vmem:[%s3464 + $0x78] sm:$0xf]
      %v3882 = vld [vmem:[%s3464 + $0x7c] sm:$0xf]
      %v3883 = vld [vmem:[%s3464 + $0x80] sm:$0x1]
      %v3884 = vld [vmem:[%s3464 + $0x84] sm:$0xf]
      %v3885 = vld [vmem:[%s3464 + $0x88] sm:$0xf]
      %v3886 = vld [vmem:[%s3464 + $0x8c] sm:$0x1]
      %v3887 = vld [vmem:[%s3464 + $0x90] sm:$0xf]
      %v3888 = vld [vmem:[%s3464 + $0x94] sm:$0xf]
      %v3889 = vld [vmem:[%s3464 + $0x98] sm:$0x1]
      %v3890 = vld [vmem:[%s3464 + $0x9c] sm:$0xf]
      %v3891 = vld [vmem:[%s3464 + $0xa0] sm:$0xf]
      %v3892 = vld [vmem:[%s3464 + $0xa4] sm:$0x1]
      %v3893 = vld [vmem:[%s3464 + $0xa8] sm:$0xf]
      %v3894 = vld [vmem:[%s3464 + $0xac] sm:$0xf]
      %v3895 = vld [vmem:[%s3464 + $0xb0] sm:$0x1]
      %v3896 = vld [vmem:[%s3464 + $0xb4] sm:$0xf]
      %v3897 = vld [vmem:[%s3464 + $0xb8] sm:$0xf]
      %v3898 = vld [vmem:[%s3464 + $0xbc] sm:$0x1]
      %v3900 = vshrl.u32 %v3851, 16
      %v3902 = vrot.slane %v3900, 4
      %v3903 = vshll.u32 %v3851, 16
      %v3905 = vrot.slane %v3903, 5
      %v3906 = vor.u32 %v3902, %v3905
      %v3907 = vrot.slane %v3906, 4
      %v3909 = vshll.u32 %v3852, 16
      %v3911 = vrot.slane %v3909, 5
      %v3912 = vsel %vm354, %v3907, %v3911
      %v3913 = vshrl.u32 %v3852, 16
      %v3915 = vrot.slane %v3913, 4
      %v3916 = vor.u32 %v3915, %v3911
      %v3917 = vrot.slane %v3916, 4
      %v3919 = vshll.u32 %v3853, 16
      %v3921 = vrot.slane %v3919, 5
      %v3922 = vsel %vm354, %v3917, %v3921
      %v3924 = vshrl.u32 %v3854, 16
      %v3926 = vrot.slane %v3924, 4
      %v3927 = vshll.u32 %v3854, 16
      %v3929 = vrot.slane %v3927, 5
      %v3930 = vor.u32 %v3926, %v3929
      %v3931 = vrot.slane %v3930, 4
      %v3933 = vshll.u32 %v3855, 16
      %v3935 = vrot.slane %v3933, 5
      %v3936 = vsel %vm354, %v3931, %v3935
      %v3937 = vshrl.u32 %v3855, 16
      %v3939 = vrot.slane %v3937, 4
      %v3940 = vor.u32 %v3939, %v3935
      %v3941 = vrot.slane %v3940, 4
      %v3943 = vshll.u32 %v3856, 16
      %v3945 = vrot.slane %v3943, 5
      %v3946 = vsel %vm354, %v3941, %v3945
      %v3948 = vshrl.u32 %v3857, 16
      %v3950 = vrot.slane %v3948, 4
      %v3951 = vshll.u32 %v3857, 16
      %v3953 = vrot.slane %v3951, 5
      %v3954 = vor.u32 %v3950, %v3953
      %v3955 = vrot.slane %v3954, 4
      %v3957 = vshll.u32 %v3858, 16
      %v3959 = vrot.slane %v3957, 5
      %v3960 = vsel %vm354, %v3955, %v3959
      %v3961 = vshrl.u32 %v3858, 16
      %v3963 = vrot.slane %v3961, 4
      %v3964 = vor.u32 %v3963, %v3959
      %v3965 = vrot.slane %v3964, 4
      %v3967 = vshll.u32 %v3859, 16
      %v3969 = vrot.slane %v3967, 5
      %v3970 = vsel %vm354, %v3965, %v3969
      %v3972 = vshrl.u32 %v3860, 16
      %v3974 = vrot.slane %v3972, 4
      %v3975 = vshll.u32 %v3860, 16
      %v3977 = vrot.slane %v3975, 5
      %v3978 = vor.u32 %v3974, %v3977
      %v3979 = vrot.slane %v3978, 4
      %v3981 = vshll.u32 %v3861, 16
      %v3983 = vrot.slane %v3981, 5
      %v3984 = vsel %vm354, %v3979, %v3983
      %v3985 = vshrl.u32 %v3861, 16
      %v3987 = vrot.slane %v3985, 4
      %v3988 = vor.u32 %v3987, %v3983
      %v3989 = vrot.slane %v3988, 4
      %v3991 = vshll.u32 %v3862, 16
      %v3993 = vrot.slane %v3991, 5
      %v3994 = vsel %vm354, %v3989, %v3993
      %v3996 = vshrl.u32 %v3863, 16
      %v3998 = vrot.slane %v3996, 4
      %v3999 = vshll.u32 %v3863, 16
      %v4001 = vrot.slane %v3999, 5
      %v4002 = vor.u32 %v3998, %v4001
      %v4003 = vrot.slane %v4002, 4
      %v4005 = vshll.u32 %v3864, 16
      %v4007 = vrot.slane %v4005, 5
      %v4008 = vsel %vm354, %v4003, %v4007
      %v4009 = vshrl.u32 %v3864, 16
      %v4011 = vrot.slane %v4009, 4
      %v4012 = vor.u32 %v4011, %v4007
      %v4013 = vrot.slane %v4012, 4
      %v4015 = vshll.u32 %v3865, 16
      %v4017 = vrot.slane %v4015, 5
      %v4018 = vsel %vm354, %v4013, %v4017
      %v4020 = vshrl.u32 %v3866, 16
      %v4022 = vrot.slane %v4020, 4
      %v4023 = vshll.u32 %v3866, 16
      %v4025 = vrot.slane %v4023, 5
      %v4026 = vor.u32 %v4022, %v4025
      %v4027 = vrot.slane %v4026, 4
      %v4029 = vshll.u32 %v3867, 16
      %v4031 = vrot.slane %v4029, 5
      %v4032 = vsel %vm354, %v4027, %v4031
      %v4033 = vshrl.u32 %v3867, 16
      %v4035 = vrot.slane %v4033, 4
      %v4036 = vor.u32 %v4035, %v4031
      %v4037 = vrot.slane %v4036, 4
      %v4039 = vshll.u32 %v3868, 16
      %v4041 = vrot.slane %v4039, 5
      %v4042 = vsel %vm354, %v4037, %v4041
      %v4044 = vshrl.u32 %v3869, 16
      %v4046 = vrot.slane %v4044, 4
      %v4047 = vshll.u32 %v3869, 16
      %v4049 = vrot.slane %v4047, 5
      %v4050 = vor.u32 %v4046, %v4049
      %v4051 = vrot.slane %v4050, 4
      %v4053 = vshll.u32 %v3870, 16
      %v4055 = vrot.slane %v4053, 5
      %v4056 = vsel %vm354, %v4051, %v4055
      %v4057 = vshrl.u32 %v3870, 16
      %v4059 = vrot.slane %v4057, 4
      %v4060 = vor.u32 %v4059, %v4055
      %v4061 = vrot.slane %v4060, 4
      %v4063 = vshll.u32 %v3871, 16
      %v4065 = vrot.slane %v4063, 5
      %v4066 = vsel %vm354, %v4061, %v4065
      %v4068 = vshrl.u32 %v3872, 16
      %v4070 = vrot.slane %v4068, 4
      %v4071 = vshll.u32 %v3872, 16
      %v4073 = vrot.slane %v4071, 5
      %v4074 = vor.u32 %v4070, %v4073
      %v4075 = vrot.slane %v4074, 4
      %v4077 = vshll.u32 %v3873, 16
      %v4079 = vrot.slane %v4077, 5
      %v4080 = vsel %vm354, %v4075, %v4079
      %v4081 = vshrl.u32 %v3873, 16
      %v4083 = vrot.slane %v4081, 4
      %v4084 = vor.u32 %v4083, %v4079
      %v4085 = vrot.slane %v4084, 4
      %v4087 = vshll.u32 %v3874, 16
      %v4089 = vrot.slane %v4087, 5
      %v4090 = vsel %vm354, %v4085, %v4089
      %v4092 = vshrl.u32 %v3875, 16
      %v4094 = vrot.slane %v4092, 4
      %v4095 = vshll.u32 %v3875, 16
      %v4097 = vrot.slane %v4095, 5
      %v4098 = vor.u32 %v4094, %v4097
      %v4099 = vrot.slane %v4098, 4
      %v4101 = vshll.u32 %v3876, 16
      %v4103 = vrot.slane %v4101, 5
      %v4104 = vsel %vm354, %v4099, %v4103
      %v4105 = vshrl.u32 %v3876, 16
      %v4107 = vrot.slane %v4105, 4
      %v4108 = vor.u32 %v4107, %v4103
      %v4109 = vrot.slane %v4108, 4
      %v4111 = vshll.u32 %v3877, 16
      %v4113 = vrot.slane %v4111, 5
      %v4114 = vsel %vm354, %v4109, %v4113
      %v4116 = vshrl.u32 %v3878, 16
      %v4118 = vrot.slane %v4116, 4
      %v4119 = vshll.u32 %v3878, 16
      %v4121 = vrot.slane %v4119, 5
      %v4122 = vor.u32 %v4118, %v4121
      %v4123 = vrot.slane %v4122, 4
      %v4125 = vshll.u32 %v3879, 16
      %v4127 = vrot.slane %v4125, 5
      %v4128 = vsel %vm354, %v4123, %v4127
      %v4129 = vshrl.u32 %v3879, 16
      %v4131 = vrot.slane %v4129, 4
      %v4132 = vor.u32 %v4131, %v4127
      %v4133 = vrot.slane %v4132, 4
      %v4135 = vshll.u32 %v3880, 16
      %v4137 = vrot.slane %v4135, 5
      %v4138 = vsel %vm354, %v4133, %v4137
      %v4140 = vshrl.u32 %v3881, 16
      %v4142 = vrot.slane %v4140, 4
      %v4143 = vshll.u32 %v3881, 16
      %v4145 = vrot.slane %v4143, 5
      %v4146 = vor.u32 %v4142, %v4145
      %v4147 = vrot.slane %v4146, 4
      %v4149 = vshll.u32 %v3882, 16
      %v4151 = vrot.slane %v4149, 5
      %v4152 = vsel %vm354, %v4147, %v4151
      %v4153 = vshrl.u32 %v3882, 16
      %v4155 = vrot.slane %v4153, 4
      %v4156 = vor.u32 %v4155, %v4151
      %v4157 = vrot.slane %v4156, 4
      %v4159 = vshll.u32 %v3883, 16
      %v4161 = vrot.slane %v4159, 5
      %v4162 = vsel %vm354, %v4157, %v4161
      %v4164 = vshrl.u32 %v3884, 16
      %v4166 = vrot.slane %v4164, 4
      %v4167 = vshll.u32 %v3884, 16
      %v4169 = vrot.slane %v4167, 5
      %v4170 = vor.u32 %v4166, %v4169
      %v4171 = vrot.slane %v4170, 4
      %v4173 = vshll.u32 %v3885, 16
      %v4175 = vrot.slane %v4173, 5
      %v4176 = vsel %vm354, %v4171, %v4175
      %v4177 = vshrl.u32 %v3885, 16
      %v4179 = vrot.slane %v4177, 4
      %v4180 = vor.u32 %v4179, %v4175
      %v4181 = vrot.slane %v4180, 4
      %v4183 = vshll.u32 %v3886, 16
      %v4185 = vrot.slane %v4183, 5
      %v4186 = vsel %vm354, %v4181, %v4185
      %v4188 = vshrl.u32 %v3887, 16
      %v4190 = vrot.slane %v4188, 4
      %v4191 = vshll.u32 %v3887, 16
      %v4193 = vrot.slane %v4191, 5
      %v4194 = vor.u32 %v4190, %v4193
      %v4195 = vrot.slane %v4194, 4
      %v4197 = vshll.u32 %v3888, 16
      %v4199 = vrot.slane %v4197, 5
      %v4200 = vsel %vm354, %v4195, %v4199
      %v4201 = vshrl.u32 %v3888, 16
      %v4203 = vrot.slane %v4201, 4
      %v4204 = vor.u32 %v4203, %v4199
      %v4205 = vrot.slane %v4204, 4
      %v4207 = vshll.u32 %v3889, 16
      %v4209 = vrot.slane %v4207, 5
      %v4210 = vsel %vm354, %v4205, %v4209
      %v4212 = vshrl.u32 %v3890, 16
      %v4214 = vrot.slane %v4212, 4
      %v4215 = vshll.u32 %v3890, 16
      %v4217 = vrot.slane %v4215, 5
      %v4218 = vor.u32 %v4214, %v4217
      %v4219 = vrot.slane %v4218, 4
      %v4221 = vshll.u32 %v3891, 16
      %v4223 = vrot.slane %v4221, 5
      %v4224 = vsel %vm354, %v4219, %v4223
      %v4225 = vshrl.u32 %v3891, 16
      %v4227 = vrot.slane %v4225, 4
      %v4228 = vor.u32 %v4227, %v4223
      %v4229 = vrot.slane %v4228, 4
      %v4231 = vshll.u32 %v3892, 16
      %v4233 = vrot.slane %v4231, 5
      %v4234 = vsel %vm354, %v4229, %v4233
      %v4236 = vshrl.u32 %v3893, 16
      %v4238 = vrot.slane %v4236, 4
      %v4239 = vshll.u32 %v3893, 16
      %v4241 = vrot.slane %v4239, 5
      %v4242 = vor.u32 %v4238, %v4241
      %v4243 = vrot.slane %v4242, 4
      %v4245 = vshll.u32 %v3894, 16
      %v4247 = vrot.slane %v4245, 5
      %v4248 = vsel %vm354, %v4243, %v4247
      %v4249 = vshrl.u32 %v3894, 16
      %v4251 = vrot.slane %v4249, 4
      %v4252 = vor.u32 %v4251, %v4247
      %v4253 = vrot.slane %v4252, 4
      %v4255 = vshll.u32 %v3895, 16
      %v4257 = vrot.slane %v4255, 5
      %v4258 = vsel %vm354, %v4253, %v4257
      %v4260 = vshrl.u32 %v3896, 16
      %v4262 = vrot.slane %v4260, 4
      %v4263 = vshll.u32 %v3896, 16
      %v4265 = vrot.slane %v4263, 5
      %v4266 = vor.u32 %v4262, %v4265
      %v4267 = vrot.slane %v4266, 4
      %v4269 = vshll.u32 %v3897, 16
      %v4271 = vrot.slane %v4269, 5
      %v4272 = vsel %vm354, %v4267, %v4271
      %v4273 = vshrl.u32 %v3897, 16
      %v4275 = vrot.slane %v4273, 4
      %v4276 = vor.u32 %v4275, %v4271
      %v4277 = vrot.slane %v4276, 4
      %v4279 = vshll.u32 %v3898, 16
      %v4281 = vrot.slane %v4279, 5
      %v4282 = vsel %vm354, %v4277, %v4281
      %s4283 = scalar_lea.vmem %s1, 448
      %v4284 = vld [vmem:[%s4283] sm:$0xf]
      %v4285 = vld [vmem:[%s4283 + $0x4] sm:$0xf]
      %v4286 = vld [vmem:[%s4283 + $0x8] sm:$0xf]
      %v4287 = vld [vmem:[%s4283 + $0xc] sm:$0xf]
      %v4288 = vld [vmem:[%s4283 + $0x10] sm:$0xf]
      %v4289 = vld [vmem:[%s4283 + $0x14] sm:$0xf]
      %v4290 = vld [vmem:[%s4283 + $0x18] sm:$0xf]
      %v4291 = vld [vmem:[%s4283 + $0x1c] sm:$0xf]
      %v4292 = vld [vmem:[%s4283 + $0x20] sm:$0xf]
      %v4293 = vld [vmem:[%s4283 + $0x24] sm:$0xf]
      %v4294 = vld [vmem:[%s4283 + $0x28] sm:$0xf]
      %v4295 = vld [vmem:[%s4283 + $0x2c] sm:$0xf]
      %v4296 = vld [vmem:[%s4283 + $0x30] sm:$0xf]
      %v4297 = vld [vmem:[%s4283 + $0x34] sm:$0xf]
      %v4298 = vld [vmem:[%s4283 + $0x38] sm:$0xf]
      %v4299 = vld [vmem:[%s4283 + $0x3c] sm:$0xf]
      %v4300 = vunpack.c.l.b16 %v3912
      %v4301 = vunpack.c.l.b16 %v3922
      %v4302 = vunpack.c.l.b16 %v3936
      %v4303 = vunpack.c.l.b16 %v3946
      %v4304 = vunpack.c.l.b16 %v3960
      %v4305 = vunpack.c.l.b16 %v3970
      %v4306 = vunpack.c.l.b16 %v3984
      %v4307 = vunpack.c.l.b16 %v3994
      %v4308 = vunpack.c.l.b16 %v4008
      %v4309 = vunpack.c.l.b16 %v4018
      %v4310 = vunpack.c.l.b16 %v4032
      %v4311 = vunpack.c.l.b16 %v4042
      %v4312 = vunpack.c.l.b16 %v4056
      %v4313 = vunpack.c.l.b16 %v4066
      %v4314 = vunpack.c.l.b16 %v4080
      %v4315 = vunpack.c.l.b16 %v4090
      %v4316 = vunpack.c.l.b16 %v4104
      %v4317 = vunpack.c.l.b16 %v4114
      %v4318 = vunpack.c.l.b16 %v4128
      %v4319 = vunpack.c.l.b16 %v4138
      %v4320 = vunpack.c.l.b16 %v4152
      %v4321 = vunpack.c.l.b16 %v4162
      %v4322 = vunpack.c.l.b16 %v4176
      %v4323 = vunpack.c.l.b16 %v4186
      %v4324 = vunpack.c.l.b16 %v4200
      %v4325 = vunpack.c.l.b16 %v4210
      %v4326 = vunpack.c.l.b16 %v4224
      %v4327 = vunpack.c.l.b16 %v4234
      %v4328 = vunpack.c.l.b16 %v4248
      %v4329 = vunpack.c.l.b16 %v4258
      %v4330 = vunpack.c.l.b16 %v4272
      %v4331 = vunpack.c.l.b16 %v4282
      %v4332 = vpack.c.b16 %v4301, %v4300
      %v4333 = vpack.c.b16 %v4303, %v4302
      %v4334 = vpack.c.b16 %v4305, %v4304
      %v4335 = vpack.c.b16 %v4307, %v4306
      %v4336 = vpack.c.b16 %v4309, %v4308
      %v4337 = vpack.c.b16 %v4311, %v4310
      %v4338 = vpack.c.b16 %v4313, %v4312
      %v4339 = vpack.c.b16 %v4315, %v4314
      %v4340 = vpack.c.b16 %v4317, %v4316
      %v4341 = vpack.c.b16 %v4319, %v4318
      %v4342 = vpack.c.b16 %v4321, %v4320
      %v4343 = vpack.c.b16 %v4323, %v4322
      %v4344 = vpack.c.b16 %v4325, %v4324
      %v4345 = vpack.c.b16 %v4327, %v4326
      %v4346 = vpack.c.b16 %v4329, %v4328
      %v4347 = vpack.c.b16 %v4331, %v4330
      %v4380 = vunpack.c.l.b16 %v4284
      %v4381 = vunpack.c.l.b16 %v4285
      %v4382 = vunpack.c.l.b16 %v4286
      %v4383 = vunpack.c.l.b16 %v4287
      %v4384 = vunpack.c.l.b16 %v4288
      %v4385 = vunpack.c.l.b16 %v4289
      %v4386 = vunpack.c.l.b16 %v4290
      %v4387 = vunpack.c.l.b16 %v4291
      %v4388 = vunpack.c.l.b16 %v4292
      %v4389 = vunpack.c.l.b16 %v4293
      %v4390 = vunpack.c.l.b16 %v4294
      %v4391 = vunpack.c.l.b16 %v4295
      %v4392 = vunpack.c.l.b16 %v4296
      %v4393 = vunpack.c.l.b16 %v4297
      %v4394 = vunpack.c.l.b16 %v4298
      %v4395 = vunpack.c.l.b16 %v4299
      %v4396 = vpack.c.b16 %v4381, %v4380
      %v4397 = vpack.c.b16 %v4383, %v4382
      %v4398 = vpack.c.b16 %v4385, %v4384
      %v4399 = vpack.c.b16 %v4387, %v4386
      %v4400 = vpack.c.b16 %v4389, %v4388
      %v4401 = vpack.c.b16 %v4391, %v4390
      %v4402 = vpack.c.b16 %v4393, %v4392
      %v4403 = vpack.c.b16 %v4395, %v4394
      %4412 = vmatprep.subr.bf16.mxu0 0
      %4413 = vmatpush1.bf16.msra.mxu0 %v4396
      %4414 = vmatprep.subr.bf16.mxu0 0
      %4415 = vmatpush1.bf16.msra.mxu0 %v4397
      %4416 = vmatprep.subr.bf16.mxu0 0
      %4417 = vmatpush1.bf16.msra.mxu0 %v4398
      %4418 = vmatprep.subr.bf16.mxu0 0
      %4419 = vmatpush1.bf16.msra.mxu0 %v4399
      %4420 = vmatprep.subr.bf16.mxu0 0
      %4421 = vmatpush1.bf16.msra.mxu0 %v4400
      %4422 = vmatprep.subr.bf16.mxu0 0
      %4423 = vmatpush1.bf16.msra.mxu0 %v4401
      %4424 = vmatprep.subr.bf16.mxu0 0
      %4425 = vmatpush1.bf16.msra.mxu0 %v4402
      %4426 = vmatprep.subr.bf16.mxu0 0
      %4427 = vmatpush1.bf16.msra.mxu0 %v4403
      %4428 = vmatprep.subr.bf16.mxu0 0
      %4429 = vmatpush1.bf16.msra.mxu0 0
      %4430 = vmatprep.subr.bf16.mxu0 0
      %4431 = vmatpush1.bf16.msra.mxu0 0
      %4432 = vmatprep.subr.bf16.mxu0 0
      %4433 = vmatpush1.bf16.msra.mxu0 0
      %4434 = vmatprep.subr.bf16.mxu0 0
      %4435 = vmatpush1.bf16.msra.mxu0 0
      %4436 = vmatprep.subr.bf16.mxu0 0
      %4437 = vmatpush1.bf16.msra.mxu0 0
      %4438 = vmatprep.subr.bf16.mxu0 0
      %4439 = vmatpush1.bf16.msra.mxu0 0
      %4440 = vmatprep.subr.bf16.mxu0 0
      %4441 = vmatpush1.bf16.msra.mxu0 0
      %4442 = vmatprep.subr.bf16.mxu0 0
      %4443 = vmatpush1.bf16.msra.mxu0 0
      %4444 = vmatprep.mubr.bf16.mxu0 0
      %4445 = vmatmul.mubr.bf16.gmra.mrb[0].mxu0 %v4332
      %v4446 = vpop.f32.mrb[0].mxu0
      %v4447 = vadd.f32 0.0, %v4446
      %v4448 = vpop.f32.mrb[0].mxu0
      %v4449 = vpop.f32.mrb[0].mxu0
      %v4450 = vadd.f32 0.0, %v4449
      %v4451 = vpop.f32.mrb[0].mxu0
      %4452 = vmatprep.mubr.bf16.mxu0 0
      %4453 = vmatmul.mubr.bf16.gmra.mrb[0].mxu0 %v4333
      %v4454 = vpop.f32.mrb[0].mxu0
      %v4455 = vadd.f32 0.0, %v4454
      %v4456 = vpop.f32.mrb[0].mxu0
      %v4457 = vpop.f32.mrb[0].mxu0
      %v4458 = vadd.f32 0.0, %v4457
      %v4459 = vpop.f32.mrb[0].mxu0
      %4460 = vmatprep.mubr.bf16.mxu0 0
      %4461 = vmatmul.mubr.bf16.gmra.mrb[0].mxu0 %v4334
      %v4462 = vpop.f32.mrb[0].mxu0
      %v4463 = vadd.f32 0.0, %v4462
      %v4464 = vpop.f32.mrb[0].mxu0
      %v4465 = vpop.f32.mrb[0].mxu0
      %v4466 = vadd.f32 0.0, %v4465
      %v4467 = vpop.f32.mrb[0].mxu0
      %4468 = vmatprep.mubr.bf16.mxu0 0
      %4469 = vmatmul.mubr.bf16.gmra.mrb[0].mxu0 %v4335
      %v4470 = vpop.f32.mrb[0].mxu0
      %v4471 = vadd.f32 0.0, %v4470
      %v4472 = vpop.f32.mrb[0].mxu0
      %v4473 = vpop.f32.mrb[0].mxu0
      %v4474 = vadd.f32 0.0, %v4473
      %v4475 = vpop.f32.mrb[0].mxu0
      %4476 = vmatprep.mubr.bf16.mxu0 0
      %4477 = vmatmul.mubr.bf16.gmra.mrb[0].mxu0 %v4336
      %v4478 = vpop.f32.mrb[0].mxu0
      %v4479 = vadd.f32 0.0, %v4478
      %v4480 = vpop.f32.mrb[0].mxu0
      %v4481 = vpop.f32.mrb[0].mxu0
      %v4482 = vadd.f32 0.0, %v4481
      %v4483 = vpop.f32.mrb[0].mxu0
      %4484 = vmatprep.mubr.bf16.mxu0 0
      %4485 = vmatmul.mubr.bf16.gmra.mrb[0].mxu0 %v4337
      %v4486 = vpop.f32.mrb[0].mxu0
      %v4487 = vadd.f32 0.0, %v4486
      %v4488 = vpop.f32.mrb[0].mxu0
      %v4489 = vpop.f32.mrb[0].mxu0
      %v4490 = vadd.f32 0.0, %v4489
      %v4491 = vpop.f32.mrb[0].mxu0
      %4492 = vmatprep.mubr.bf16.mxu0 0
      %4493 = vmatmul.mubr.bf16.gmra.mrb[0].mxu0 %v4338
      %v4494 = vpop.f32.mrb[0].mxu0
      %v4495 = vadd.f32 0.0, %v4494
      %v4496 = vpop.f32.mrb[0].mxu0
      %v4497 = vpop.f32.mrb[0].mxu0
      %v4498 = vadd.f32 0.0, %v4497
      %v4499 = vpop.f32.mrb[0].mxu0
      %4500 = vmatprep.mubr.bf16.mxu0 0
      %4501 = vmatmul.mubr.bf16.gmra.mrb[0].mxu0 %v4339
      %v4502 = vpop.f32.mrb[0].mxu0
      %v4503 = vadd.f32 0.0, %v4502
      %v4504 = vpop.f32.mrb[0].mxu0
      %v4505 = vpop.f32.mrb[0].mxu0
      %v4506 = vadd.f32 0.0, %v4505
      %v4507 = vpop.f32.mrb[0].mxu0
      %4508 = vmatprep.mubr.bf16.mxu0 0
      %4509 = vmatmul.mubr.bf16.gmra.mrb[0].mxu0 %v4340
      %v4510 = vpop.f32.mrb[0].mxu0
      %v4511 = vadd.f32 0.0, %v4510
      %v4512 = vpop.f32.mrb[0].mxu0
      %v4513 = vpop.f32.mrb[0].mxu0
      %v4514 = vadd.f32 0.0, %v4513
      %v4515 = vpop.f32.mrb[0].mxu0
      %4516 = vmatprep.mubr.bf16.mxu0 0
      %4517 = vmatmul.mubr.bf16.gmra.mrb[0].mxu0 %v4341
      %v4518 = vpop.f32.mrb[0].mxu0
      %v4519 = vadd.f32 0.0, %v4518
      %v4520 = vpop.f32.mrb[0].mxu0
      %v4521 = vpop.f32.mrb[0].mxu0
      %v4522 = vadd.f32 0.0, %v4521
      %v4523 = vpop.f32.mrb[0].mxu0
      %4524 = vmatprep.mubr.bf16.mxu0 0
      %4525 = vmatmul.mubr.bf16.gmra.mrb[0].mxu0 %v4342
      %v4526 = vpop.f32.mrb[0].mxu0
      %v4527 = vadd.f32 0.0, %v4526
      %v4528 = vpop.f32.mrb[0].mxu0
      %v4529 = vpop.f32.mrb[0].mxu0
      %v4530 = vadd.f32 0.0, %v4529
      %v4531 = vpop.f32.mrb[0].mxu0
      %4532 = vmatprep.mubr.bf16.mxu0 0
      %4533 = vmatmul.mubr.bf16.gmra.mrb[0].mxu0 %v4343
      %v4534 = vpop.f32.mrb[0].mxu0
      %v4535 = vadd.f32 0.0, %v4534
      %v4536 = vpop.f32.mrb[0].mxu0
      %v4537 = vpop.f32.mrb[0].mxu0
      %v4538 = vadd.f32 0.0, %v4537
      %v4539 = vpop.f32.mrb[0].mxu0
      %4540 = vmatprep.mubr.bf16.mxu0 0
      %4541 = vmatmul.mubr.bf16.gmra.mrb[0].mxu0 %v4344
      %v4542 = vpop.f32.mrb[0].mxu0
      %v4543 = vadd.f32 0.0, %v4542
      %v4544 = vpop.f32.mrb[0].mxu0
      %v4545 = vpop.f32.mrb[0].mxu0
      %v4546 = vadd.f32 0.0, %v4545
      %v4547 = vpop.f32.mrb[0].mxu0
      %4548 = vmatprep.mubr.bf16.mxu0 0
      %4549 = vmatmul.mubr.bf16.gmra.mrb[0].mxu0 %v4345
      %v4550 = vpop.f32.mrb[0].mxu0
      %v4551 = vadd.f32 0.0, %v4550
      %v4552 = vpop.f32.mrb[0].mxu0
      %v4553 = vpop.f32.mrb[0].mxu0
      %v4554 = vadd.f32 0.0, %v4553
      %v4555 = vpop.f32.mrb[0].mxu0
      %4556 = vmatprep.mubr.bf16.mxu0 0
      %4557 = vmatmul.mubr.bf16.gmra.mrb[0].mxu0 %v4346
      %v4558 = vpop.f32.mrb[0].mxu0
      %v4559 = vadd.f32 0.0, %v4558
      %v4560 = vpop.f32.mrb[0].mxu0
      %v4561 = vpop.f32.mrb[0].mxu0
      %v4562 = vadd.f32 0.0, %v4561
      %v4563 = vpop.f32.mrb[0].mxu0
      %4564 = vmatprep.mubr.bf16.mxu0 0
      %4565 = vmatmul.mubr.bf16.gmra.mrb[0].mxu0 %v4347
      %v4566 = vpop.f32.mrb[0].mxu0
      %v4567 = vadd.f32 0.0, %v4566
      %v4568 = vpop.f32.mrb[0].mxu0
      %v4569 = vpop.f32.mrb[0].mxu0
      %v4570 = vadd.f32 0.0, %v4569
      %v4571 = vpop.f32.mrb[0].mxu0
      %4572 = vdwg.mxu0
      %v4573 = vadd.f32 %v3819, %v4447
      %v4574 = vadd.f32 %v3820, %v4450
      %v4575 = vadd.f32 %v3821, %v4455
      %v4576 = vadd.f32 %v3822, %v4458
      %v4577 = vadd.f32 %v3823, %v4463
      %v4578 = vadd.f32 %v3824, %v4466
      %v4579 = vadd.f32 %v3825, %v4471
      %v4580 = vadd.f32 %v3826, %v4474
      %v4581 = vadd.f32 %v3827, %v4479
      %v4582 = vadd.f32 %v3828, %v4482
      %v4583 = vadd.f32 %v3829, %v4487
      %v4584 = vadd.f32 %v3830, %v4490
      %v4585 = vadd.f32 %v3831, %v4495
      %v4586 = vadd.f32 %v3832, %v4498
      %v4587 = vadd.f32 %v3833, %v4503
      %v4588 = vadd.f32 %v3834, %v4506
      %v4589 = vadd.f32 %v3835, %v4511
      %v4590 = vadd.f32 %v3836, %v4514
      %v4591 = vadd.f32 %v3837, %v4519
      %v4592 = vadd.f32 %v3838, %v4522
      %v4593 = vadd.f32 %v3839, %v4527
      %v4594 = vadd.f32 %v3840, %v4530
      %v4595 = vadd.f32 %v3841, %v4535
      %v4596 = vadd.f32 %v3842, %v4538
      %v4597 = vadd.f32 %v3843, %v4543
      %v4598 = vadd.f32 %v3844, %v4546
      %v4599 = vadd.f32 %v3845, %v4551
      %v4600 = vadd.f32 %v3846, %v4554
      %v4601 = vadd.f32 %v3847, %v4559
      %v4602 = vadd.f32 %v3848, %v4562
      %v4603 = vadd.f32 %v3849, %v4567
      %v4604 = vadd.f32 %v3850, %v4570
      %v4605 = vld [vmem:[%s3464] sm:$0xe]
      %v4606 = vld [vmem:[%s3464 + $0xc] sm:$0xe]
      %v4607 = vld [vmem:[%s3464 + $0x18] sm:$0xe]
      %v4608 = vld [vmem:[%s3464 + $0x24] sm:$0xe]
      %v4609 = vld [vmem:[%s3464 + $0x30] sm:$0xe]
      %v4610 = vld [vmem:[%s3464 + $0x3c] sm:$0xe]
      %v4611 = vld [vmem:[%s3464 + $0x48] sm:$0xe]
      %v4612 = vld [vmem:[%s3464 + $0x54] sm:$0xe]
      %v4613 = vld [vmem:[%s3464 + $0x60] sm:$0xe]
      %v4614 = vld [vmem:[%s3464 + $0x6c] sm:$0xe]
      %v4615 = vld [vmem:[%s3464 + $0x78] sm:$0xe]
      %v4616 = vld [vmem:[%s3464 + $0x84] sm:$0xe]
      %v4617 = vld [vmem:[%s3464 + $0x90] sm:$0xe]
      %v4618 = vld [vmem:[%s3464 + $0x9c] sm:$0xe]
      %v4619 = vld [vmem:[%s3464 + $0xa8] sm:$0xe]
      %v4620 = vld [vmem:[%s3464 + $0xb4] sm:$0xe]
      %v4669 = vrot.slane %v4605, 5
      %v4670 = vrot.slane %v4669, 4
      %v4671 = vrot.slane %v3852, 5
      %v4672 = vsel %vm1384, %v4670, %v4671
      %v4673 = vrot.slane %v4671, 4
      %v4674 = vrot.slane %v3853, 5
      %v4675 = vsel %vm1384, %v4673, %v4674
      %v4676 = vrot.slane %v4606, 5
      %v4677 = vrot.slane %v4676, 4
      %v4678 = vrot.slane %v3855, 5
      %v4679 = vsel %vm1384, %v4677, %v4678
      %v4680 = vrot.slane %v4678, 4
      %v4681 = vrot.slane %v3856, 5
      %v4682 = vsel %vm1384, %v4680, %v4681
      %v4683 = vrot.slane %v4607, 5
      %v4684 = vrot.slane %v4683, 4
      %v4685 = vrot.slane %v3858, 5
      %v4686 = vsel %vm1384, %v4684, %v4685
      %v4687 = vrot.slane %v4685, 4
      %v4688 = vrot.slane %v3859, 5
      %v4689 = vsel %vm1384, %v4687, %v4688
      %v4690 = vrot.slane %v4608, 5
      %v4691 = vrot.slane %v4690, 4
      %v4692 = vrot.slane %v3861, 5
      %v4693 = vsel %vm1384, %v4691, %v4692
      %v4694 = vrot.slane %v4692, 4
      %v4695 = vrot.slane %v3862, 5
      %v4696 = vsel %vm1384, %v4694, %v4695
      %v4697 = vrot.slane %v4609, 5
      %v4698 = vrot.slane %v4697, 4
      %v4699 = vrot.slane %v3864, 5
      %v4700 = vsel %vm1384, %v4698, %v4699
      %v4701 = vrot.slane %v4699, 4
      %v4702 = vrot.slane %v3865, 5
      %v4703 = vsel %vm1384, %v4701, %v4702
      %v4704 = vrot.slane %v4610, 5
      %v4705 = vrot.slane %v4704, 4
      %v4706 = vrot.slane %v3867, 5
      %v4707 = vsel %vm1384, %v4705, %v4706
      %v4708 = vrot.slane %v4706, 4
      %v4709 = vrot.slane %v3868, 5
      %v4710 = vsel %vm1384, %v4708, %v4709
      %v4711 = vrot.slane %v4611, 5
      %v4712 = vrot.slane %v4711, 4
      %v4713 = vrot.slane %v3870, 5
      %v4714 = vsel %vm1384, %v4712, %v4713
      %v4715 = vrot.slane %v4713, 4
      %v4716 = vrot.slane %v3871, 5
      %v4717 = vsel %vm1384, %v4715, %v4716
      %v4718 = vrot.slane %v4612, 5
      %v4719 = vrot.slane %v4718, 4
      %v4720 = vrot.slane %v3873, 5
      %v4721 = vsel %vm1384, %v4719, %v4720
      %v4722 = vrot.slane %v4720, 4
      %v4723 = vrot.slane %v3874, 5
      %v4724 = vsel %vm1384, %v4722, %v4723
      %v4725 = vrot.slane %v4613, 5
      %v4726 = vrot.slane %v4725, 4
      %v4727 = vrot.slane %v3876, 5
      %v4728 = vsel %vm1384, %v4726, %v4727
      %v4729 = vrot.slane %v4727, 4
      %v4730 = vrot.slane %v3877, 5
      %v4731 = vsel %vm1384, %v4729, %v4730
      %v4732 = vrot.slane %v4614, 5
      %v4733 = vrot.slane %v4732, 4
      %v4734 = vrot.slane %v3879, 5
      %v4735 = vsel %vm1384, %v4733, %v4734
      %v4736 = vrot.slane %v4734, 4
      %v4737 = vrot.slane %v3880, 5
      %v4738 = vsel %vm1384, %v4736, %v4737
      %v4739 = vrot.slane %v4615, 5
      %v4740 = vrot.slane %v4739, 4
      %v4741 = vrot.slane %v3882, 5
      %v4742 = vsel %vm1384, %v4740, %v4741
      %v4743 = vrot.slane %v4741, 4
      %v4744 = vrot.slane %v3883, 5
      %v4745 = vsel %vm1384, %v4743, %v4744
      %v4746 = vrot.slane %v4616, 5
      %v4747 = vrot.slane %v4746, 4
      %v4748 = vrot.slane %v3885, 5
      %v4749 = vsel %vm1384, %v4747, %v4748
      %v4750 = vrot.slane %v4748, 4
      %v4751 = vrot.slane %v3886, 5
      %v4752 = vsel %vm1384, %v4750, %v4751
      %v4753 = vrot.slane %v4617, 5
      %v4754 = vrot.slane %v4753, 4
      %v4755 = vrot.slane %v3888, 5
      %v4756 = vsel %vm1384, %v4754, %v4755
      %v4757 = vrot.slane %v4755, 4
      %v4758 = vrot.slane %v3889, 5
      %v4759 = vsel %vm1384, %v4757, %v4758
      %v4760 = vrot.slane %v4618, 5
      %v4761 = vrot.slane %v4760, 4
      %v4762 = vrot.slane %v3891, 5
      %v4763 = vsel %vm1384, %v4761, %v4762
      %v4764 = vrot.slane %v4762, 4
      %v4765 = vrot.slane %v3892, 5
      %v4766 = vsel %vm1384, %v4764, %v4765
      %v4767 = vrot.slane %v4619, 5
      %v4768 = vrot.slane %v4767, 4
      %v4769 = vrot.slane %v3894, 5
      %v4770 = vsel %vm1384, %v4768, %v4769
      %v4771 = vrot.slane %v4769, 4
      %v4772 = vrot.slane %v3895, 5
      %v4773 = vsel %vm1384, %v4771, %v4772
      %v4774 = vrot.slane %v4620, 5
      %v4775 = vrot.slane %v4774, 4
      %v4776 = vrot.slane %v3897, 5
      %v4777 = vsel %vm1384, %v4775, %v4776
      %v4778 = vrot.slane %v4776, 4
      %v4779 = vrot.slane %v3898, 5
      %v4780 = vsel %vm1384, %v4778, %v4779
      %s4781 = scalar_lea.vmem %s1, 512
      %v4782 = vld [vmem:[%s4781] sm:$0xf]
      %v4783 = vld [vmem:[%s4781 + $0x4] sm:$0xf]
      %v4784 = vld [vmem:[%s4781 + $0x8] sm:$0xf]
      %v4785 = vld [vmem:[%s4781 + $0xc] sm:$0xf]
      %v4786 = vld [vmem:[%s4781 + $0x10] sm:$0xf]
      %v4787 = vld [vmem:[%s4781 + $0x14] sm:$0xf]
      %v4788 = vld [vmem:[%s4781 + $0x18] sm:$0xf]
      %v4789 = vld [vmem:[%s4781 + $0x1c] sm:$0xf]
      %v4790 = vld [vmem:[%s4781 + $0x20] sm:$0xf]
      %v4791 = vld [vmem:[%s4781 + $0x24] sm:$0xf]
      %v4792 = vld [vmem:[%s4781 + $0x28] sm:$0xf]
      %v4793 = vld [vmem:[%s4781 + $0x2c] sm:$0xf]
      %v4794 = vld [vmem:[%s4781 + $0x30] sm:$0xf]
      %v4795 = vld [vmem:[%s4781 + $0x34] sm:$0xf]
      %v4796 = vld [vmem:[%s4781 + $0x38] sm:$0xf]
      %v4797 = vld [vmem:[%s4781 + $0x3c] sm:$0xf]
      %v4798 = vunpack.c.l.b16 %v4672
      %v4799 = vunpack.c.l.b16 %v4675
      %v4800 = vunpack.c.l.b16 %v4679
      %v4801 = vunpack.c.l.b16 %v4682
      %v4802 = vunpack.c.l.b16 %v4686
      %v4803 = vunpack.c.l.b16 %v4689
      %v4804 = vunpack.c.l.b16 %v4693
      %v4805 = vunpack.c.l.b16 %v4696
      %v4806 = vunpack.c.l.b16 %v4700
      %v4807 = vunpack.c.l.b16 %v4703
      %v4808 = vunpack.c.l.b16 %v4707
      %v4809 = vunpack.c.l.b16 %v4710
      %v4810 = vunpack.c.l.b16 %v4714
      %v4811 = vunpack.c.l.b16 %v4717
      %v4812 = vunpack.c.l.b16 %v4721
      %v4813 = vunpack.c.l.b16 %v4724
      %v4814 = vunpack.c.l.b16 %v4728
      %v4815 = vunpack.c.l.b16 %v4731
      %v4816 = vunpack.c.l.b16 %v4735
      %v4817 = vunpack.c.l.b16 %v4738
      %v4818 = vunpack.c.l.b16 %v4742
      %v4819 = vunpack.c.l.b16 %v4745
      %v4820 = vunpack.c.l.b16 %v4749
      %v4821 = vunpack.c.l.b16 %v4752
      %v4822 = vunpack.c.l.b16 %v4756
      %v4823 = vunpack.c.l.b16 %v4759
      %v4824 = vunpack.c.l.b16 %v4763
      %v4825 = vunpack.c.l.b16 %v4766
      %v4826 = vunpack.c.l.b16 %v4770
      %v4827 = vunpack.c.l.b16 %v4773
      %v4828 = vunpack.c.l.b16 %v4777
      %v4829 = vunpack.c.l.b16 %v4780
      %v4830 = vpack.c.b16 %v4799, %v4798
      %v4831 = vpack.c.b16 %v4801, %v4800
      %v4832 = vpack.c.b16 %v4803, %v4802
      %v4833 = vpack.c.b16 %v4805, %v4804
      %v4834 = vpack.c.b16 %v4807, %v4806
      %v4835 = vpack.c.b16 %v4809, %v4808
      %v4836 = vpack.c.b16 %v4811, %v4810
      %v4837 = vpack.c.b16 %v4813, %v4812
      %v4838 = vpack.c.b16 %v4815, %v4814
      %v4839 = vpack.c.b16 %v4817, %v4816
      %v4840 = vpack.c.b16 %v4819, %v4818
      %v4841 = vpack.c.b16 %v4821, %v4820
      %v4842 = vpack.c.b16 %v4823, %v4822
      %v4843 = vpack.c.b16 %v4825, %v4824
      %v4844 = vpack.c.b16 %v4827, %v4826
      %v4845 = vpack.c.b16 %v4829, %v4828
      %v4878 = vunpack.c.l.b16 %v4782
      %v4879 = vunpack.c.l.b16 %v4783
      %v4880 = vunpack.c.l.b16 %v4784
      %v4881 = vunpack.c.l.b16 %v4785
      %v4882 = vunpack.c.l.b16 %v4786
      %v4883 = vunpack.c.l.b16 %v4787
      %v4884 = vunpack.c.l.b16 %v4788
      %v4885 = vunpack.c.l.b16 %v4789
      %v4886 = vunpack.c.l.b16 %v4790
      %v4887 = vunpack.c.l.b16 %v4791
      %v4888 = vunpack.c.l.b16 %v4792
      %v4889 = vunpack.c.l.b16 %v4793
      %v4890 = vunpack.c.l.b16 %v4794
      %v4891 = vunpack.c.l.b16 %v4795
      %v4892 = vunpack.c.l.b16 %v4796
      %v4893 = vunpack.c.l.b16 %v4797
      %v4894 = vpack.c.b16 %v4879, %v4878
      %v4895 = vpack.c.b16 %v4881, %v4880
      %v4896 = vpack.c.b16 %v4883, %v4882
      %v4897 = vpack.c.b16 %v4885, %v4884
      %v4898 = vpack.c.b16 %v4887, %v4886
      %v4899 = vpack.c.b16 %v4889, %v4888
      %v4900 = vpack.c.b16 %v4891, %v4890
      %v4901 = vpack.c.b16 %v4893, %v4892
      %4910 = vmatprep.subr.bf16.mxu0 0
      %4911 = vmatpush1.bf16.msra.mxu0 %v4894
      %4912 = vmatprep.subr.bf16.mxu0 0
      %4913 = vmatpush1.bf16.msra.mxu0 %v4895
      %4914 = vmatprep.subr.bf16.mxu0 0
      %4915 = vmatpush1.bf16.msra.mxu0 %v4896
      %4916 = vmatprep.subr.bf16.mxu0 0
      %4917 = vmatpush1.bf16.msra.mxu0 %v4897
      %4918 = vmatprep.subr.bf16.mxu0 0
      %4919 = vmatpush1.bf16.msra.mxu0 %v4898
      %4920 = vmatprep.subr.bf16.mxu0 0
      %4921 = vmatpush1.bf16.msra.mxu0 %v4899
      %4922 = vmatprep.subr.bf16.mxu0 0
      %4923 = vmatpush1.bf16.msra.mxu0 %v4900
      %4924 = vmatprep.subr.bf16.mxu0 0
      %4925 = vmatpush1.bf16.msra.mxu0 %v4901
      %4926 = vmatprep.subr.bf16.mxu0 0
      %4927 = vmatpush1.bf16.msra.mxu0 0
      %4928 = vmatprep.subr.bf16.mxu0 0
      %4929 = vmatpush1.bf16.msra.mxu0 0
      %4930 = vmatprep.subr.bf16.mxu0 0
      %4931 = vmatpush1.bf16.msra.mxu0 0
      %4932 = vmatprep.subr.bf16.mxu0 0
      %4933 = vmatpush1.bf16.msra.mxu0 0
      %4934 = vmatprep.subr.bf16.mxu0 0
      %4935 = vmatpush1.bf16.msra.mxu0 0
      %4936 = vmatprep.subr.bf16.mxu0 0
      %4937 = vmatpush1.bf16.msra.mxu0 0
      %4938 = vmatprep.subr.bf16.mxu0 0
      %4939 = vmatpush1.bf16.msra.mxu0 0
      %4940 = vmatprep.subr.bf16.mxu0 0
      %4941 = vmatpush1.bf16.msra.mxu0 0
      %4942 = vmatprep.mubr.bf16.mxu0 0
      %4943 = vmatmul.mubr.bf16.gmra.mrb[0].mxu0 %v4830
      %v4944 = vpop.f32.mrb[0].mxu0
      %v4945 = vadd.f32 0.0, %v4944
      %v4946 = vpop.f32.mrb[0].mxu0
      %v4947 = vpop.f32.mrb[0].mxu0
      %v4948 = vadd.f32 0.0, %v4947
      %v4949 = vpop.f32.mrb[0].mxu0
      %4950 = vmatprep.mubr.bf16.mxu0 0
      %4951 = vmatmul.mubr.bf16.gmra.mrb[0].mxu0 %v4831
      %v4952 = vpop.f32.mrb[0].mxu0
      %v4953 = vadd.f32 0.0, %v4952
      %v4954 = vpop.f32.mrb[0].mxu0
      %v4955 = vpop.f32.mrb[0].mxu0
      %v4956 = vadd.f32 0.0, %v4955
      %v4957 = vpop.f32.mrb[0].mxu0
      %4958 = vmatprep.mubr.bf16.mxu0 0
      %4959 = vmatmul.mubr.bf16.gmra.mrb[0].mxu0 %v4832
      %v4960 = vpop.f32.mrb[0].mxu0
      %v4961 = vadd.f32 0.0, %v4960
      %v4962 = vpop.f32.mrb[0].mxu0
      %v4963 = vpop.f32.mrb[0].mxu0
      %v4964 = vadd.f32 0.0, %v4963
      %v4965 = vpop.f32.mrb[0].mxu0
      %4966 = vmatprep.mubr.bf16.mxu0 0
      %4967 = vmatmul.mubr.bf16.gmra.mrb[0].mxu0 %v4833
      %v4968 = vpop.f32.mrb[0].mxu0
      %v4969 = vadd.f32 0.0, %v4968
      %v4970 = vpop.f32.mrb[0].mxu0
      %v4971 = vpop.f32.mrb[0].mxu0
      %v4972 = vadd.f32 0.0, %v4971
      %v4973 = vpop.f32.mrb[0].mxu0
      %4974 = vmatprep.mubr.bf16.mxu0 0
      %4975 = vmatmul.mubr.bf16.gmra.mrb[0].mxu0 %v4834
      %v4976 = vpop.f32.mrb[0].mxu0
      %v4977 = vadd.f32 0.0, %v4976
      %v4978 = vpop.f32.mrb[0].mxu0
      %v4979 = vpop.f32.mrb[0].mxu0
      %v4980 = vadd.f32 0.0, %v4979
      %v4981 = vpop.f32.mrb[0].mxu0
      %4982 = vmatprep.mubr.bf16.mxu0 0
      %4983 = vmatmul.mubr.bf16.gmra.mrb[0].mxu0 %v4835
      %v4984 = vpop.f32.mrb[0].mxu0
      %v4985 = vadd.f32 0.0, %v4984
      %v4986 = vpop.f32.mrb[0].mxu0
      %v4987 = vpop.f32.mrb[0].mxu0
      %v4988 = vadd.f32 0.0, %v4987
      %v4989 = vpop.f32.mrb[0].mxu0
      %4990 = vmatprep.mubr.bf16.mxu0 0
      %4991 = vmatmul.mubr.bf16.gmra.mrb[0].mxu0 %v4836
      %v4992 = vpop.f32.mrb[0].mxu0
      %v4993 = vadd.f32 0.0, %v4992
      %v4994 = vpop.f32.mrb[0].mxu0
      %v4995 = vpop.f32.mrb[0].mxu0
      %v4996 = vadd.f32 0.0, %v4995
      %v4997 = vpop.f32.mrb[0].mxu0
      %4998 = vmatprep.mubr.bf16.mxu0 0
      %4999 = vmatmul.mubr.bf16.gmra.mrb[0].mxu0 %v4837
      %v5000 = vpop.f32.mrb[0].mxu0
      %v5001 = vadd.f32 0.0, %v5000
      %v5002 = vpop.f32.mrb[0].mxu0
      %v5003 = vpop.f32.mrb[0].mxu0
      %v5004 = vadd.f32 0.0, %v5003
      %v5005 = vpop.f32.mrb[0].mxu0
      %5006 = vmatprep.mubr.bf16.mxu0 0
      %5007 = vmatmul.mubr.bf16.gmra.mrb[0].mxu0 %v4838
      %v5008 = vpop.f32.mrb[0].mxu0
      %v5009 = vadd.f32 0.0, %v5008
      %v5010 = vpop.f32.mrb[0].mxu0
      %v5011 = vpop.f32.mrb[0].mxu0
      %v5012 = vadd.f32 0.0, %v5011
      %v5013 = vpop.f32.mrb[0].mxu0
      %5014 = vmatprep.mubr.bf16.mxu0 0
      %5015 = vmatmul.mubr.bf16.gmra.mrb[0].mxu0 %v4839
      %v5016 = vpop.f32.mrb[0].mxu0
      %v5017 = vadd.f32 0.0, %v5016
      %v5018 = vpop.f32.mrb[0].mxu0
      %v5019 = vpop.f32.mrb[0].mxu0
      %v5020 = vadd.f32 0.0, %v5019
      %v5021 = vpop.f32.mrb[0].mxu0
      %5022 = vmatprep.mubr.bf16.mxu0 0
      %5023 = vmatmul.mubr.bf16.gmra.mrb[0].mxu0 %v4840
      %v5024 = vpop.f32.mrb[0].mxu0
      %v5025 = vadd.f32 0.0, %v5024
      %v5026 = vpop.f32.mrb[0].mxu0
      %v5027 = vpop.f32.mrb[0].mxu0
      %v5028 = vadd.f32 0.0, %v5027
      %v5029 = vpop.f32.mrb[0].mxu0
      %5030 = vmatprep.mubr.bf16.mxu0 0
      %5031 = vmatmul.mubr.bf16.gmra.mrb[0].mxu0 %v4841
      %v5032 = vpop.f32.mrb[0].mxu0
      %v5033 = vadd.f32 0.0, %v5032
      %v5034 = vpop.f32.mrb[0].mxu0
      %v5035 = vpop.f32.mrb[0].mxu0
      %v5036 = vadd.f32 0.0, %v5035
      %v5037 = vpop.f32.mrb[0].mxu0
      %5038 = vmatprep.mubr.bf16.mxu0 0
      %5039 = vmatmul.mubr.bf16.gmra.mrb[0].mxu0 %v4842
      %v5040 = vpop.f32.mrb[0].mxu0
      %v5041 = vadd.f32 0.0, %v5040
      %v5042 = vpop.f32.mrb[0].mxu0
      %v5043 = vpop.f32.mrb[0].mxu0
      %v5044 = vadd.f32 0.0, %v5043
      %v5045 = vpop.f32.mrb[0].mxu0
      %5046 = vmatprep.mubr.bf16.mxu0 0
      %5047 = vmatmul.mubr.bf16.gmra.mrb[0].mxu0 %v4843
      %v5048 = vpop.f32.mrb[0].mxu0
      %v5049 = vadd.f32 0.0, %v5048
      %v5050 = vpop.f32.mrb[0].mxu0
      %v5051 = vpop.f32.mrb[0].mxu0
      %v5052 = vadd.f32 0.0, %v5051
      %v5053 = vpop.f32.mrb[0].mxu0
      %5054 = vmatprep.mubr.bf16.mxu0 0
      %5055 = vmatmul.mubr.bf16.gmra.mrb[0].mxu0 %v4844
      %v5056 = vpop.f32.mrb[0].mxu0
      %v5057 = vadd.f32 0.0, %v5056
      %v5058 = vpop.f32.mrb[0].mxu0
      %v5059 = vpop.f32.mrb[0].mxu0
      %v5060 = vadd.f32 0.0, %v5059
      %v5061 = vpop.f32.mrb[0].mxu0
      %5062 = vmatprep.mubr.bf16.mxu0 0
      %5063 = vmatmul.mubr.bf16.gmra.mrb[0].mxu0 %v4845
      %v5064 = vpop.f32.mrb[0].mxu0
      %v5065 = vadd.f32 0.0, %v5064
      %v5066 = vpop.f32.mrb[0].mxu0
      %v5067 = vpop.f32.mrb[0].mxu0
      %v5068 = vadd.f32 0.0, %v5067
      %v5069 = vpop.f32.mrb[0].mxu0
      %5070 = vdwg.mxu0
      %v5071 = vadd.f32 %v4573, %v4945
      %v5072 = vadd.f32 %v4574, %v4948
      %v5073 = vadd.f32 %v4575, %v4953
      %v5074 = vadd.f32 %v4576, %v4956
      %v5075 = vadd.f32 %v4577, %v4961
      %v5076 = vadd.f32 %v4578, %v4964
      %v5077 = vadd.f32 %v4579, %v4969
      %v5078 = vadd.f32 %v4580, %v4972
      %v5079 = vadd.f32 %v4581, %v4977
      %v5080 = vadd.f32 %v4582, %v4980
      %v5081 = vadd.f32 %v4583, %v4985
      %v5082 = vadd.f32 %v4584, %v4988
      %v5083 = vadd.f32 %v4585, %v4993
      %v5084 = vadd.f32 %v4586, %v4996
      %v5085 = vadd.f32 %v4587, %v5001
      %v5086 = vadd.f32 %v4588, %v5004
      %v5087 = vadd.f32 %v4589, %v5009
      %v5088 = vadd.f32 %v4590, %v5012
      %v5089 = vadd.f32 %v4591, %v5017
      %v5090 = vadd.f32 %v4592, %v5020
      %v5091 = vadd.f32 %v4593, %v5025
      %v5092 = vadd.f32 %v4594, %v5028
      %v5093 = vadd.f32 %v4595, %v5033
      %v5094 = vadd.f32 %v4596, %v5036
      %v5095 = vadd.f32 %v4597, %v5041
      %v5096 = vadd.f32 %v4598, %v5044
      %v5097 = vadd.f32 %v4599, %v5049
      %v5098 = vadd.f32 %v4600, %v5052
      %v5099 = vadd.f32 %v4601, %v5057
      %v5100 = vadd.f32 %v4602, %v5060
      %v5101 = vadd.f32 %v4603, %v5065
      %v5102 = vadd.f32 %v4604, %v5068
      %v5103 = vld [vmem:[%s2] sm:$0x1]
      %v5105 = vlaneseq
      %v5106 = vshrl.u32 %v5105, 7
      %v5107 = vsub.s32 0, %v5106
      %v5108 = vrot.slane %v5103, %v5107
      %v5110 = vadd.f32 %v5071, %v5108
      %v5111 = vadd.f32 %v5072, %v5108
      %v5112 = vadd.f32 %v5073, %v5108
      %v5113 = vadd.f32 %v5074, %v5108
      %v5114 = vadd.f32 %v5075, %v5108
      %v5115 = vadd.f32 %v5076, %v5108
      %v5116 = vadd.f32 %v5077, %v5108
      %v5117 = vadd.f32 %v5078, %v5108
      %v5118 = vadd.f32 %v5079, %v5108
      %v5119 = vadd.f32 %v5080, %v5108
      %v5120 = vadd.f32 %v5081, %v5108
      %v5121 = vadd.f32 %v5082, %v5108
      %v5122 = vadd.f32 %v5083, %v5108
      %v5123 = vadd.f32 %v5084, %v5108
      %v5124 = vadd.f32 %v5085, %v5108
      %v5125 = vadd.f32 %v5086, %v5108
      %v5126 = vadd.f32 %v5087, %v5108
      %v5127 = vadd.f32 %v5088, %v5108
      %v5128 = vadd.f32 %v5089, %v5108
      %v5129 = vadd.f32 %v5090, %v5108
      %v5130 = vadd.f32 %v5091, %v5108
      %v5131 = vadd.f32 %v5092, %v5108
      %v5132 = vadd.f32 %v5093, %v5108
      %v5133 = vadd.f32 %v5094, %v5108
      %v5134 = vadd.f32 %v5095, %v5108
      %v5135 = vadd.f32 %v5096, %v5108
      %v5136 = vadd.f32 %v5097, %v5108
      %v5137 = vadd.f32 %v5098, %v5108
      %v5138 = vadd.f32 %v5099, %v5108
      %v5139 = vadd.f32 %v5100, %v5108
      %v5140 = vadd.f32 %v5101, %v5108
      %v5141 = vadd.f32 %v5102, %v5108
      %5142 = vst [vmem:[%s269] sm:$0xff] %v5110
      %5143 = vst [vmem:[%s269 + $0x8] sm:$0xff] %v5111
      %5144 = vst [vmem:[%s269 + $0x10] sm:$0xff] %v5112
      %5145 = vst [vmem:[%s269 + $0x18] sm:$0xff] %v5113
      %5146 = vst [vmem:[%s269 + $0x20] sm:$0xff] %v5114
      %5147 = vst [vmem:[%s269 + $0x28] sm:$0xff] %v5115
      %5148 = vst [vmem:[%s269 + $0x30] sm:$0xff] %v5116
      %5149 = vst [vmem:[%s269 + $0x38] sm:$0xff] %v5117
      %5150 = vst [vmem:[%s269 + $0x40] sm:$0xff] %v5118
      %5151 = vst [vmem:[%s269 + $0x48] sm:$0xff] %v5119
      %5152 = vst [vmem:[%s269 + $0x50] sm:$0xff] %v5120
      %5153 = vst [vmem:[%s269 + $0x58] sm:$0xff] %v5121
      %5154 = vst [vmem:[%s269 + $0x60] sm:$0xff] %v5122
      %5155 = vst [vmem:[%s269 + $0x68] sm:$0xff] %v5123
      %5156 = vst [vmem:[%s269 + $0x70] sm:$0xff] %v5124
      %5157 = vst [vmem:[%s269 + $0x78] sm:$0xff] %v5125
      %5158 = vst [vmem:[%s269 + $0x80] sm:$0xff] %v5126
      %5159 = vst [vmem:[%s269 + $0x88] sm:$0xff] %v5127
      %5160 = vst [vmem:[%s269 + $0x90] sm:$0xff] %v5128
      %5161 = vst [vmem:[%s269 + $0x98] sm:$0xff] %v5129
      %5162 = vst [vmem:[%s269 + $0xa0] sm:$0xff] %v5130
      %5163 = vst [vmem:[%s269 + $0xa8] sm:$0xff] %v5131
      %5164 = vst [vmem:[%s269 + $0xb0] sm:$0xff] %v5132
      %5165 = vst [vmem:[%s269 + $0xb8] sm:$0xff] %v5133
      %5166 = vst [vmem:[%s269 + $0xc0] sm:$0xff] %v5134
      %5167 = vst [vmem:[%s269 + $0xc8] sm:$0xff] %v5135
      %5168 = vst [vmem:[%s269 + $0xd0] sm:$0xff] %v5136
      %5169 = vst [vmem:[%s269 + $0xd8] sm:$0xff] %v5137
      %5170 = vst [vmem:[%s269 + $0xe0] sm:$0xff] %v5138
      %5171 = vst [vmem:[%s269 + $0xe8] sm:$0xff] %v5139
      %5172 = vst [vmem:[%s269 + $0xf0] sm:$0xff] %v5140
      %5173 = vst [vmem:[%s269 + $0xf8] sm:$0xff] %v5141
      %v5174 = vadd.f32 %v5110, %v5111
      %v5175 = vadd.f32 %v5174, %v5112
      %v5176 = vadd.f32 %v5175, %v5113
      %v5177 = vadd.f32 %v5176, %v5114
      %v5178 = vadd.f32 %v5177, %v5115
      %v5179 = vadd.f32 %v5178, %v5116
      %v5180 = vadd.f32 %v5179, %v5117
      %v5181 = vadd.f32 %v5180, %v5118
      %v5182 = vadd.f32 %v5181, %v5119
      %v5183 = vadd.f32 %v5182, %v5120
      %v5184 = vadd.f32 %v5183, %v5121
      %v5185 = vadd.f32 %v5184, %v5122
      %v5186 = vadd.f32 %v5185, %v5123
      %v5187 = vadd.f32 %v5186, %v5124
      %v5188 = vadd.f32 %v5187, %v5125
      %v5189 = vadd.f32 %v5188, %v5126
      %v5190 = vadd.f32 %v5189, %v5127
      %v5191 = vadd.f32 %v5190, %v5128
      %v5192 = vadd.f32 %v5191, %v5129
      %v5193 = vadd.f32 %v5192, %v5130
      %v5194 = vadd.f32 %v5193, %v5131
      %v5195 = vadd.f32 %v5194, %v5132
      %v5196 = vadd.f32 %v5195, %v5133
      %v5197 = vadd.f32 %v5196, %v5134
      %v5198 = vadd.f32 %v5197, %v5135
      %v5199 = vadd.f32 %v5198, %v5136
      %v5200 = vadd.f32 %v5199, %v5137
      %v5201 = vadd.f32 %v5200, %v5138
      %v5202 = vadd.f32 %v5201, %v5139
      %v5203 = vadd.f32 %v5202, %v5140
      %v5204 = vadd.f32 %v5203, %v5141
      %v5205 = vrot.slane %v5204, 4
      %v5206 = vadd.f32 %v5204, %v5205
      %v5207 = vrot.slane %v5206, 2
      %v5208 = vadd.f32 %v5206, %v5207
      %v5209 = vrot.slane %v5208, 1
      %v5210 = vadd.f32 %v5208, %v5209
      %5211 = vst [vmem:[%s276] sm:$0x1] %v5210
      %v5212 = vmul.f32 %v5110, %v5110
      %v5213 = vmul.f32 %v5111, %v5111
      %v5214 = vmul.f32 %v5112, %v5112
      %v5215 = vmul.f32 %v5113, %v5113
      %v5216 = vmul.f32 %v5114, %v5114
      %v5217 = vmul.f32 %v5115, %v5115
      %v5218 = vmul.f32 %v5116, %v5116
      %v5219 = vmul.f32 %v5117, %v5117
      %v5220 = vmul.f32 %v5118, %v5118
      %v5221 = vmul.f32 %v5119, %v5119
      %v5222 = vmul.f32 %v5120, %v5120
      %v5223 = vmul.f32 %v5121, %v5121
      %v5224 = vmul.f32 %v5122, %v5122
      %v5225 = vmul.f32 %v5123, %v5123
      %v5226 = vmul.f32 %v5124, %v5124
      %v5227 = vmul.f32 %v5125, %v5125
      %v5228 = vmul.f32 %v5126, %v5126
      %v5229 = vmul.f32 %v5127, %v5127
      %v5230 = vmul.f32 %v5128, %v5128
      %v5231 = vmul.f32 %v5129, %v5129
      %v5232 = vmul.f32 %v5130, %v5130
      %v5233 = vmul.f32 %v5131, %v5131
      %v5234 = vmul.f32 %v5132, %v5132
      %v5235 = vmul.f32 %v5133, %v5133
      %v5236 = vmul.f32 %v5134, %v5134
      %v5237 = vmul.f32 %v5135, %v5135
      %v5238 = vmul.f32 %v5136, %v5136
      %v5239 = vmul.f32 %v5137, %v5137
      %v5240 = vmul.f32 %v5138, %v5138
      %v5241 = vmul.f32 %v5139, %v5139
      %v5242 = vmul.f32 %v5140, %v5140
      %v5243 = vmul.f32 %v5141, %v5141
      %v5244 = vadd.f32 %v5212, %v5213
      %v5245 = vadd.f32 %v5244, %v5214
      %v5246 = vadd.f32 %v5245, %v5215
      %v5247 = vadd.f32 %v5246, %v5216
      %v5248 = vadd.f32 %v5247, %v5217
      %v5249 = vadd.f32 %v5248, %v5218
      %v5250 = vadd.f32 %v5249, %v5219
      %v5251 = vadd.f32 %v5250, %v5220
      %v5252 = vadd.f32 %v5251, %v5221
      %v5253 = vadd.f32 %v5252, %v5222
      %v5254 = vadd.f32 %v5253, %v5223
      %v5255 = vadd.f32 %v5254, %v5224
      %v5256 = vadd.f32 %v5255, %v5225
      %v5257 = vadd.f32 %v5256, %v5226
      %v5258 = vadd.f32 %v5257, %v5227
      %v5259 = vadd.f32 %v5258, %v5228
      %v5260 = vadd.f32 %v5259, %v5229
      %v5261 = vadd.f32 %v5260, %v5230
      %v5262 = vadd.f32 %v5261, %v5231
      %v5263 = vadd.f32 %v5262, %v5232
      %v5264 = vadd.f32 %v5263, %v5233
      %v5265 = vadd.f32 %v5264, %v5234
      %v5266 = vadd.f32 %v5265, %v5235
      %v5267 = vadd.f32 %v5266, %v5236
      %v5268 = vadd.f32 %v5267, %v5237
      %v5269 = vadd.f32 %v5268, %v5238
      %v5270 = vadd.f32 %v5269, %v5239
      %v5271 = vadd.f32 %v5270, %v5240
      %v5272 = vadd.f32 %v5271, %v5241
      %v5273 = vadd.f32 %v5272, %v5242
      %v5274 = vadd.f32 %v5273, %v5243
      %v5275 = vrot.slane %v5274, 4
      %v5276 = vadd.f32 %v5274, %v5275
      %v5277 = vrot.slane %v5276, 2
      %v5278 = vadd.f32 %v5276, %v5277
      %v5279 = vrot.slane %v5278, 1
      %v5280 = vadd.f32 %v5278, %v5279
      %5281 = vst [vmem:[%s282] sm:$0x1] %v5280
      %s5282 = smul.u32 16, %s22
      %p5283 = scmp.lt.s32.totalorder %s21, 1
      %s5284 = scalar_select %p5283, %s21, 1
      %p5285 = scmp.lt.s32.totalorder %s5282, 15
      %s5286 = scalar_select %p5285, %s5282, 15
      %s5287 = smul.addr %s5286, 2
      %s5288 = smul.addr %s5284, 32
      %s5289 = sadd.s32 %s5287, %s5288
      %s5290 = smul.addr %s5289, 8
      %s5291 = scalar_lea.vmem %s3, %s5290
      %p5292 = scmp.lt.s32.totalorder %s21, 1
      %s5293 = scalar_select %p5292, %s21, 1
      %p5294 = scmp.lt.s32.totalorder %s22, 0
      %s5295 = scalar_select %p5294, %s22, 0
      %s5296 = sadd.s32 %s5295, %s5293
      %s5297 = scalar_lea.vmem %s4, %s5296
      %p5298 = scmp.lt.s32.totalorder %s21, 1
      %s5299 = scalar_select %p5298, %s21, 1
      %p5300 = scmp.lt.s32.totalorder %s22, 0
      %s5301 = scalar_select %p5300, %s22, 0
      %s5302 = sadd.s32 %s5301, %s5299
      %s5303 = scalar_lea.vmem %s5, %s5302
      // Predicated region
      $region33: #{conv_block_forward.4} parent=31 // pred_check
        %p5304 = pneg %p117
      $region34: #{conv_block_forward.4} parent=31 // pred_check_branch
        %5306 = sbr.rel (%p5304) target = $region36
      $region35: #{conv_block_forward.4} parent=31 // pred_region
        %s5307 = smul.u32 16, %s22
      $region36: #{conv_block_forward.4} parent=31 // pred_fallthru
        _
      // Predicated region
      $region37: #{conv_block_forward.4} parent=31 // pred_check
        %p5308 = pneg %p145
      $region38: #{conv_block_forward.4} parent=31 // pred_check_branch
        %5310 = sbr.rel (%p5308) target = $region40
      $region39: #{conv_block_forward.4} parent=31 // pred_region
        _
      $region40: #{conv_block_forward.4} parent=31 // pred_fallthru
        _
      // Predicated region
      $region41: #{conv_block_forward.4} parent=31 // pred_check
        %p5311 = pneg %p173
      $region42: #{conv_block_forward.4} parent=31 // pred_check_branch
        %5313 = sbr.rel (%p5311) target = $region44
      $region43: #{conv_block_forward.4} parent=31 // pred_region
        _
      $region44: #{conv_block_forward.4} parent=31 // pred_fallthru
        _
    $region32: #{conv_block_forward.4} parent=5 // pred_fallthru
      _
    %p5314 = scmp.le.s32.totalorder 2, %s12
    // Predicated region
    $region45: #{conv_block_forward.4} parent=5 // pred_check
      %p5315 = pneg %p5314
    $region46: #{conv_block_forward.4} parent=5 // pred_check_branch
      %5317 = sbr.rel (%p5315) target = $region48
    $region47: #{conv_block_forward.4} parent=5 // pred_region
      %s5318 = ssub.s32 %s12, 2
      // Predicated region
      $region49: #{conv_block_forward.4} parent=47 // pred_check
        %p5319 = pneg %p123
      $region50: #{conv_block_forward.4} parent=47 // pred_check_branch
        %5321 = sbr.rel (%p5319) target = $region52
      $region51: #{conv_block_forward.4} parent=47 // pred_region
        %s5322 = smul.u32 16, %s24
        %p5323 = scmp.lt.s32.totalorder %s23, 1
        %s5324 = scalar_select %p5323, %s23, 1
        %p5325 = scmp.lt.s32.totalorder %s5322, 15
        %s5326 = scalar_select %p5325, %s5322, 15
        %s5327 = smul.addr %s5326, 2
        %s5328 = smul.addr %s5324, 32
        %s5329 = sadd.s32 %s5327, %s5328
        %s5330 = smul.addr %s5329, 8
        %s5331 = scalar_lea.vmem %s3, %s5330
      $region52: #{conv_block_forward.4} parent=47 // pred_fallthru
        _
      // Predicated region
      $region53: #{conv_block_forward.4} parent=47 // pred_check
        %p5332 = pneg %p151
      $region54: #{conv_block_forward.4} parent=47 // pred_check_branch
        %5334 = sbr.rel (%p5332) target = $region56
      $region55: #{conv_block_forward.4} parent=47 // pred_region
        %p5335 = scmp.lt.s32.totalorder %s23, 1
        %s5336 = scalar_select %p5335, %s23, 1
        %p5337 = scmp.lt.s32.totalorder %s24, 0
        %s5338 = scalar_select %p5337, %s24, 0
        %s5339 = sadd.s32 %s5338, %s5336
        %s5340 = scalar_lea.vmem %s4, %s5339
      $region56: #{conv_block_forward.4} parent=47 // pred_fallthru
        _
      // Predicated region
      $region57: #{conv_block_forward.4} parent=47 // pred_check
        %p5341 = pneg %p179
      $region58: #{conv_block_forward.4} parent=47 // pred_check_branch
        %5343 = sbr.rel (%p5341) target = $region60
      $region59: #{conv_block_forward.4} parent=47 // pred_region
        %p5344 = scmp.lt.s32.totalorder %s23, 1
        %s5345 = scalar_select %p5344, %s23, 1
        %p5346 = scmp.lt.s32.totalorder %s24, 0
        %s5347 = scalar_select %p5346, %s24, 0
        %s5348 = sadd.s32 %s5347, %s5345
        %s5349 = scalar_lea.vmem %s5, %s5348
      $region60: #{conv_block_forward.4} parent=47 // pred_fallthru
        _
    $region48: #{conv_block_forward.4} parent=5 // pred_fallthru
      _
  $region6: #{conv_block_forward.4} parent=0 // loop_footer
    %s16 = sadd.s32 1, %s12
  $region7: #{conv_block_forward.4} parent=0 // loop_footer_branch
    %11 = sbr.rel target = $region3
  $region8: #{conv_block_forward.4} parent=0 // loop_exit
    _

</llo_original>
